<compile_context>
chip_gen: v5e
topology: v5e:2x2
jax: 0.10.0
libtpu: 0.0.40
codegen_flags: <defaults>
</compile_context>

<pallas_src>
import functools

import jax
import jax.numpy as jnp
from jax.experimental import pallas as pl
from jax.experimental.pallas import tpu as pltpu

NEG_SLOPE = 0.2        # GATConv LeakyReLU negative_slope
NEG_INF = -1e9         # pure-JAX reference mask fill
M_INIT = -1e30         # online-softmax running-max init (finite: no inf-inf NaN)
MASK_FILL = -2e30      # masked-logit fill; << M_INIT so exp(fill - m) == 0 exactly
ATT_PAD = 8            # attention selector columns padded to one sublane group


def _vmem_limit_bytes():
    """Explicit scoped-VMEM limit with headroom, re-derived per chip
    (64 MiB physical on v7x vs 128 MiB on v5e/v6e)."""
    try:
        cap = pltpu.get_tpu_info().vmem_capacity_bytes
        return int(min(cap * 3 // 4, 96 * 1024 * 1024))
    except Exception:
        return 32 * 1024 * 1024


# -----------------------------------------------------------------------------
# Path 1: whole-network fused kernel (everything VMEM-resident).
# -----------------------------------------------------------------------------
def _make_fused_kernel(n_layers, num_heads, f_hidden, n_classes):
    """refs = [x, adj_0..adj_{L-1}, (w,al,ar,bias)*L, out, h_scratch_0..L-2]."""

    def kernel(*refs):
        x_ref = refs[0]
        adj_refs = refs[1:1 + n_layers]
        par_refs = refs[1 + n_layers:1 + 5 * n_layers]
        out_ref = refs[1 + 5 * n_layers]
        h_scratch = refs[2 + 5 * n_layers:]

        h = x_ref[...]                                      # (N_0, D_in) bf16
        for l in range(n_layers):
            last = (l == n_layers - 1)
            f_out = n_classes if last else f_hidden
            hf = num_heads * f_out
            w_ref, al_ref, ar_ref, b_ref = par_refs[4 * l:4 * l + 4]
            adj = adj_refs[l][...]                          # (N_dst, N_src) bf16 0/1
            n_dst = adj.shape[0]

            # Head-fused src+dst projection: one bf16 MXU matmul.
            z = jnp.dot(h, w_ref[...], preferred_element_type=jnp.float32)
            zs = z[:, :hf]                                  # (N_src, H*F) f32
            zd = z[:n_dst, hf:]                             # (N_dst, H*F); dst = prefix of src
            zs_b = zs.astype(jnp.bfloat16)                  # cast once, reused per head

            # Attention logits: contract on the small selector's lane axis and
            # transpose only the tiny (N_src, ATT_PAD) result.
            el_rows = jnp.dot(zs, al_ref[...],
                              preferred_element_type=jnp.float32).T   # (ATT_PAD, N_src)
            er = jnp.dot(zd, ar_ref[...],
                         preferred_element_type=jnp.float32)          # (N_dst, ATT_PAD)

            mask = adj > 0                                  # single boolean mask, no f32 copy
            bias = b_ref[...]                               # (1, H*F) f32

            acc = None
            for hd in range(num_heads):                     # small static head loop
                sl = slice(hd * f_out, (hd + 1) * f_out)
                e = er[:, hd:hd + 1] + el_rows[hd:hd + 1, :]          # (N_dst, N_src)
                e = jnp.maximum(e, NEG_SLOPE * e)                     # LeakyReLU
                e = jnp.where(mask, e, MASK_FILL)                     # masked logits
                m = jnp.max(e, axis=1, keepdims=True)                 # max over real edges
                p = jnp.exp(e - m)                                    # exactly 0 off-edge
                inv = pl.reciprocal(jnp.sum(p, axis=1, keepdims=True), approx=True)
                agg = jnp.dot(p.astype(jnp.bfloat16), zs_b[:, sl],
                              preferred_element_type=jnp.float32)     # (N_dst, F)
                o = agg * inv + bias[:, sl]
                if last:
                    acc = o if acc is None else acc + o
                else:
                    # Direct per-head slice store (no concatenate); hidden
                    # activation assumed ReLU.
                    h_scratch[l][:, sl] = jnp.maximum(o, 0.0).astype(jnp.bfloat16)
            if last:
                out_ref[...] = (acc * (1.0 / num_heads)).astype(out_ref.dtype)
            else:
                h = h_scratch[l][...]                       # next layer input, stays in VMEM

    return kernel


def gat_forward_fused(blocks, x, packed_params, n_layers, *, num_heads):
    f_hidden = packed_params[0][3].shape[1] // num_heads
    n_classes = packed_params[-1][3].shape[1] // num_heads
    n_dst = [adj.shape[0] for adj in blocks]

    inputs = [x.astype(jnp.bfloat16)]
    inputs += [adj.astype(jnp.bfloat16) for adj in blocks]
    for packed in packed_params:
        inputs.extend(packed)

    vmem = pl.BlockSpec(memory_space=pltpu.MemorySpace.VMEM)
    kernel = _make_fused_kernel(n_layers, num_heads, f_hidden, n_classes)
    return pl.pallas_call(
        kernel,
        out_shape=jax.ShapeDtypeStruct((n_dst[-1], n_classes), jnp.float32),
        in_specs=[vmem] * len(inputs),
        out_specs=vmem,
        scratch_shapes=[pltpu.VMEM((n_dst[l], num_heads * f_hidden), jnp.bfloat16)
                        for l in range(n_layers - 1)],
        compiler_params=pltpu.CompilerParams(vmem_limit_bytes=_vmem_limit_bytes()),
    )(*inputs)


# -----------------------------------------------------------------------------
# Path 2: per-layer tiled kernel (scalable; dst parallel, src reduction).
# -----------------------------------------------------------------------------
def _gat_tiled_kernel(h_src_ref, h_dst_ref, adj_ref, w_ref, al_ref, ar_ref, b_ref,
                      out_ref, m_sc, l_sc, acc_sc, *,
                      num_heads, f_out, apply_relu, mean_heads):
    hf = num_heads * f_out
    k = pl.program_id(1)

    @pl.when(k == 0)
    def _():
        m_sc[...] = jnp.full_like(m_sc, M_INIT)
        l_sc[...] = jnp.zeros_like(l_sc)
        acc_sc[...] = jnp.zeros_like(acc_sc)

    # Per-tile head-fused projections (src tile -> fc_src half, dst -> fc_dst).
    zs = jnp.dot(h_src_ref[...], w_ref[:, :hf], preferred_element_type=jnp.float32)
    zs_b = zs.astype(jnp.bfloat16)
    zd = jnp.dot(h_dst_ref[...], w_ref[:, hf:], preferred_element_type=jnp.float32)

    el_rows = jnp.dot(zs, al_ref[...], preferred_element_type=jnp.float32).T  # (ATT_PAD, TS)
    er = jnp.dot(zd, ar_ref[...], preferred_element_type=jnp.float32)         # (TD, ATT_PAD)
    mask = adj_ref[...] > 0

    for hd in range(num_heads):
        sl = slice(hd * f_out, (hd + 1) * f_out)
        e = er[:, hd:hd + 1] + el_rows[hd:hd + 1, :]            # (TD, TS)
        e = jnp.maximum(e, NEG_SLOPE * e)                       # LeakyReLU
        e = jnp.where(mask, e, MASK_FILL)                       # masked logits
        m_prev = m_sc[:, hd:hd + 1]
        m_new = jnp.maximum(m_prev, jnp.max(e, axis=1, keepdims=True))
        scale = jnp.exp(m_prev - m_new)                         # online-softmax rescale
        p = jnp.exp(e - m_new)                                  # exactly 0 off-edge
        l_sc[:, hd:hd + 1] = scale * l_sc[:, hd:hd + 1] + jnp.sum(p, axis=1, keepdims=True)
        acc_sc[:, sl] = scale * acc_sc[:, sl] + jnp.dot(
            p.astype(jnp.bfloat16), zs_b[:, sl], preferred_element_type=jnp.float32)
        m_sc[:, hd:hd + 1] = m_new

    @pl.when(k == pl.num_programs(1) - 1)
    def _():
        bias = b_ref[...]
        if mean_heads:                     # last layer: fused mean over heads
            acc = None
            for hd in range(num_heads):
                sl = slice(hd * f_out, (hd + 1) * f_out)
                inv = pl.reciprocal(l_sc[:, hd:hd + 1], approx=True)
                o = acc_sc[:, sl] * inv + bias[:, sl]
                acc = o if acc is None else acc + o
            out_ref[...] = (acc * (1.0 / num_heads)).astype(out_ref.dtype)
        else:                              # hidden layer: per-head slice stores
            for hd in range(num_heads):
                sl = slice(hd * f_out, (hd + 1) * f_out)
                inv = pl.reciprocal(l_sc[:, hd:hd + 1], approx=True)
                o = acc_sc[:, sl] * inv + bias[:, sl]
                if apply_relu:
                    o = jnp.maximum(o, 0.0)
                out_ref[:, sl] = o.astype(out_ref.dtype)


def _pick_dst_tile(n_dst, td_max):
    td = min(td_max, n_dst)
    if n_dst % td == 0 and td % 8 == 0:
        return td
    return n_dst


def _pick_src_tile(n_src, ts_max):
    if n_src > ts_max and n_src % ts_max == 0 and ts_max % 128 == 0:
        return ts_max
    return n_src


def gat_conv_tiled(h, adj, packed, *, num_heads, apply_relu, mean_heads,
                   td_max=64, ts_max=128):
    """One GATConv layer on a (dst 'parallel', src 'arbitrary') grid with
    flash-style online edge-softmax.  h: (N_src, D_in) bf16, adj: (N_dst, N_src)
    bf16 0/1.  Demo tile maxima are small; scale to ~512-1024 (v5e/v6e) or
    about half that on v7x."""
    w_cat, al_col, ar_col, bias = packed
    hf = bias.shape[1]
    f_out = hf // num_heads
    att_pad = al_col.shape[1]
    n_dst, n_src = adj.shape
    d_in = h.shape[1]
    out_cols = f_out if mean_heads else hf
    out_dtype = jnp.float32 if mean_heads else jnp.bfloat16

    td = _pick_dst_tile(n_dst, td_max)
    ts = _pick_src_tile(n_src, ts_max)

    kernel = functools.partial(_gat_tiled_kernel, num_heads=num_heads, f_out=f_out,
                               apply_relu=apply_relu, mean_heads=mean_heads)
    grid_spec = pltpu.PrefetchScalarGridSpec(
        num_scalar_prefetch=0,
        grid=(n_dst // td, n_src // ts),
        in_specs=[
            pl.BlockSpec((ts, d_in), lambda i, k: (k, 0)),       # h, src tile
            pl.BlockSpec((td, d_in), lambda i, k: (i, 0)),       # h, dst tile (prefix rows)
            pl.BlockSpec((td, ts), lambda i, k: (i, k)),         # adjacency tile
            pl.BlockSpec((d_in, 2 * hf), lambda i, k: (0, 0)),   # fused [fc_src | fc_dst]
            pl.BlockSpec((hf, att_pad), lambda i, k: (0, 0)),    # attn_l selector
            pl.BlockSpec((hf, att_pad), lambda i, k: (0, 0)),    # attn_r selector
            pl.BlockSpec((1, hf), lambda i, k: (0, 0)),          # bias
        ],
        out_specs=pl.BlockSpec((td, out_cols), lambda i, k: (i, 0)),
        scratch_shapes=[
            pltpu.VMEM((td, num_heads), jnp.float32),            # running max
            pltpu.VMEM((td, num_heads), jnp.float32),            # running sum
            pltpu.VMEM((td, hf), jnp.float32),                   # running aggregate
        ],
    )
    return pl.pallas_call(
        kernel,
        out_shape=jax.ShapeDtypeStruct((n_dst, out_cols), out_dtype),
        grid_spec=grid_spec,
        compiler_params=pltpu.CompilerParams(
            dimension_semantics=("parallel", "arbitrary"),
            vmem_limit_bytes=_vmem_limit_bytes()),
    )(h, h, adj, w_cat, al_col, ar_col, bias)


def gat_forward_tiled(blocks, x, packed_params, n_layers, *, num_heads,
                      td_max=64, ts_max=128):
    h = x.astype(jnp.bfloat16)
    for l, (adj, packed) in enumerate(zip(blocks, packed_params)):
        last = (l == n_layers - 1)
        h = gat_conv_tiled(h, adj.astype(jnp.bfloat16), packed,
                           num_heads=num_heads, apply_relu=not last,
                           mean_heads=last, td_max=td_max, ts_max=ts_max)
    return h


# -----------------------------------------------------------------------------
# Parameters, packing, synthetic graph, pure-JAX reference.
# -----------------------------------------------------------------------------
def init_gat_params(key, in_feats, n_hidden, n_classes, n_layers, num_heads):
    """Deterministic synthetic parameters matching DGL GATConv per-head shapes."""
    params = []
    dims_in = [in_feats] + [n_hidden * num_heads] * (n_layers - 1)
    dims_out = [n_hidden] * (n_layers - 1) + [n_classes]
    for l in range(n_layers):
        key, k0, k1, k2, k3 = jax.random.split(key, 5)
        d_in, d_out = dims_in[l], dims_out[l]
        scale = (2.0 / (d_in + d_out)) ** 0.5
        w_src = scale * jax.random.normal(k0, (num_heads, d_in, d_out), jnp.float32)
        w_dst = scale * jax.random.normal(k1, (num_heads, d_in, d_out), jnp.float32)
        attn_l = scale * jax.random.normal(k2, (num_heads, 1, d_out), jnp.float32)
        attn_r = scale * jax.random.normal(k3, (num_heads, 1, d_out), jnp.float32)
        bias = jnp.zeros((num_heads, 1, d_out), jnp.float32)
        params.append((w_src, w_dst, attn_l, attn_r, bias))
    return params


def pack_layer_params(layer_params, att_pad=ATT_PAD):
    """Head-fused, kernel-ready parameter layout (MXU weights in bf16)."""
    w_src, w_dst, attn_l, attn_r, bias = layer_params
    num_heads, d_in, f = w_src.shape
    hf = num_heads * f
    # (D_in, H*F) head-major columns, [fc_src | fc_dst] side by side.
    w_src_f = jnp.transpose(w_src, (1, 0, 2)).reshape(d_in, hf)
    w_dst_f = jnp.transpose(w_dst, (1, 0, 2)).reshape(d_in, hf)
    w_cat = jnp.concatenate([w_src_f, w_dst_f], axis=1).astype(jnp.bfloat16)
    # Block-diagonal attention selectors as (H*F, pad) column matrices so the
    # kernel contracts on the selector's lane axis (no relayout of zs/zd).
    pad = max(att_pad, num_heads)
    eye = jnp.eye(num_heads, pad, dtype=jnp.float32)          # (H, pad)
    al_col = (attn_l[:, 0, :, None] * eye[:, None, :]).reshape(hf, pad)
    ar_col = (attn_r[:, 0, :, None] * eye[:, None, :]).reshape(hf, pad)
    bias_flat = bias[:, 0, :].reshape(1, hf)
    return w_cat, al_col, ar_col, bias_flat


def make_block_adj(n_dst, n_src):
    """Dense adjacency for one sampled block; self-loops guarantee in-degree >= 1."""
    u = jnp.arange(n_src)[None, :]
    v = jnp.arange(n_dst)[:, None]
    adj = ((u + v) % 3 == 0) | (u == v)
    return adj.astype(jnp.float32)


def gat_forward_ref(blocks, x, layer_params, n_layers):
    """Pure-JAX f32 reference of the module's forward pass."""
    h = x
    for l, (adj, params) in enumerate(zip(blocks, layer_params)):
        w_src, w_dst, attn_l, attn_r, bias = params
        n_dst = adj.shape[0]
        zs = jnp.einsum('ud,hdf->uhf', h, w_src)                 # (N_src, H, F)
        zd = jnp.einsum('vd,hdf->vhf', h[:n_dst], w_dst)         # (N_dst, H, F)
        el = jnp.sum(zs * attn_l[None, :, 0, :], axis=-1)        # (N_src, H)
        er = jnp.sum(zd * attn_r[None, :, 0, :], axis=-1)        # (N_dst, H)
        e = er[:, None, :] + el[None, :, :]                      # (N_dst, N_src, H)
        e = jnp.where(e > 0, e, NEG_SLOPE * e)
        e = jnp.where(adj[:, :, None] > 0, e, NEG_INF)
        alpha = jax.nn.softmax(e, axis=1)
        out = jnp.einsum('vuh,uhf->vhf', alpha, zs) + bias[None, :, 0, :]
        if l < n_layers - 1:
            h = jnp.maximum(out, 0.0).reshape(n_dst, -1)
        else:
            h = out
    return h.mean(axis=1)


# TODO(synk): DGL graph / MultiLayerFullNeighborSampler / NodeDataLoader have no
# Pallas equivalent; sampled blocks are modeled as dense per-layer adjacencies.

if __name__ == "__main__":
    in_feats, n_hidden, n_classes = 16, 8, 8
    n_layers, num_heads = 3, 2
    # node counts along the sampled blocks: src of layer l = node_counts[l],
    # dst of layer l = node_counts[l + 1] (dst nodes are a prefix of src nodes)
    node_counts = [256, 128, 64, 32]

    key = jax.random.PRNGKey(0)
    key, xkey = jax.random.split(key)
    x = jax.random.normal(xkey, (node_counts[0], in_feats), jnp.float32)

    blocks = [make_block_adj(node_counts[l + 1], node_counts[l]) for l in range(n_layers)]
    params = init_gat_params(key, in_feats, n_hidden, n_classes, n_layers, num_heads)
    packed = [pack_layer_params(p) for p in params]

    out_fused = gat_forward_fused(blocks, x, packed, n_layers, num_heads=num_heads)
    out_tiled = gat_forward_tiled(blocks, x, packed, n_layers, num_heads=num_heads)
    out_fused, out_tiled = jax.block_until_ready((out_fused, out_tiled))

    assert out_fused.shape == (node_counts[-1], n_classes)
    assert out_tiled.shape == (node_counts[-1], n_classes)
    assert bool(jnp.all(jnp.isfinite(out_fused)))
    assert bool(jnp.all(jnp.isfinite(out_tiled)))

    # Pure-JAX f32 reference (loose tolerance: kernels run matmul operands in
    # bf16 and use the EUP approximate reciprocal).
    ref = gat_forward_ref(blocks, x, params, n_layers)
    for name, out in (("fused", out_fused), ("tiled", out_tiled)):
        o32 = out.astype(jnp.float32)
        assert bool(jnp.allclose(o32, ref, atol=2e-1, rtol=2e-1)), (
            "%s max abs err = %f" % (name, float(jnp.max(jnp.abs(o32 - ref)))))

    print("KERNEL_OK")
</pallas_src>

<mosaic_0001>
module attributes {stable_mosaic.version = 11 : i64} {
  func.func @kernel(%arg0: memref<256x16xbf16, #tpu.memory_space<vmem>>, %arg1: memref<128x256xbf16, #tpu.memory_space<vmem>>, %arg2: memref<64x128xbf16, #tpu.memory_space<vmem>>, %arg3: memref<32x64xbf16, #tpu.memory_space<vmem>>, %arg4: memref<16x32xbf16, #tpu.memory_space<vmem>>, %arg5: memref<16x8xf32, #tpu.memory_space<vmem>>, %arg6: memref<16x8xf32, #tpu.memory_space<vmem>>, %arg7: memref<1x16xf32, #tpu.memory_space<vmem>>, %arg8: memref<16x32xbf16, #tpu.memory_space<vmem>>, %arg9: memref<16x8xf32, #tpu.memory_space<vmem>>, %arg10: memref<16x8xf32, #tpu.memory_space<vmem>>, %arg11: memref<1x16xf32, #tpu.memory_space<vmem>>, %arg12: memref<16x32xbf16, #tpu.memory_space<vmem>>, %arg13: memref<16x8xf32, #tpu.memory_space<vmem>>, %arg14: memref<16x8xf32, #tpu.memory_space<vmem>>, %arg15: memref<1x16xf32, #tpu.memory_space<vmem>>, %arg16: memref<32x8xf32, #tpu.memory_space<vmem>>, %arg17: memref<128x16xbf16, #tpu.memory_space<vmem>>, %arg18: memref<64x16xbf16, #tpu.memory_space<vmem>>) attributes {dimension_semantics = [], scalar_prefetch = 0 : i64, scratch_operands = 2 : i64, tpu.core_type = #tpu.core_type<tc>} {
    %c0 = arith.constant 0 : index
    %c0_0 = arith.constant 0 : index
    %0 = vector.load %arg0[%c0, %c0_0] : memref<256x16xbf16, #tpu.memory_space<vmem>>, vector<256x16xbf16>
    %c0_1 = arith.constant 0 : index
    %c0_2 = arith.constant 0 : index
    %1 = vector.load %arg1[%c0_1, %c0_2] : memref<128x256xbf16, #tpu.memory_space<vmem>>, vector<128x256xbf16>
    %c0_3 = arith.constant 0 : index
    %c0_4 = arith.constant 0 : index
    %2 = vector.load %arg4[%c0_3, %c0_4] : memref<16x32xbf16, #tpu.memory_space<vmem>>, vector<16x32xbf16>
    %cst = arith.constant dense<0.000000e+00> : vector<256x32xf32>
    %3 = tpu.matmul %0, %2, %cst {dimension_numbers = #tpu.dot_dimension_numbers<[1], [0], [0], [1], [0, 0, 1, 1], [], []>} : vector<256x16xbf16>, vector<16x32xbf16>, vector<256x32xf32> -> vector<256x32xf32>
    %4 = vector.extract_strided_slice %3 {offsets = [0, 0], sizes = [256, 16], strides = [1, 1]} : vector<256x32xf32> to vector<256x16xf32>
    %5 = vector.extract_strided_slice %3 {offsets = [0, 16], sizes = [128, 16], strides = [1, 1]} : vector<256x32xf32> to vector<128x16xf32>
    %6 = arith.truncf %4 : vector<256x16xf32> to vector<256x16xbf16>
    %c0_5 = arith.constant 0 : index
    %c0_6 = arith.constant 0 : index
    %7 = vector.load %arg5[%c0_5, %c0_6] : memref<16x8xf32, #tpu.memory_space<vmem>>, vector<16x8xf32>
    %cst_7 = arith.constant dense<0.000000e+00> : vector<256x8xf32>
    %8 = tpu.matmul %4, %7, %cst_7 {dimension_numbers = #tpu.dot_dimension_numbers<[1], [0], [0], [1], [0, 0, 1, 1], [], []>} : vector<256x16xf32>, vector<16x8xf32>, vector<256x8xf32> -> vector<256x8xf32>
    %9 = tpu.transpose %8, [1, 0] : vector<256x8xf32> -> vector<8x256xf32>
    %c0_8 = arith.constant 0 : index
    %c0_9 = arith.constant 0 : index
    %10 = vector.load %arg6[%c0_8, %c0_9] : memref<16x8xf32, #tpu.memory_space<vmem>>, vector<16x8xf32>
    %cst_10 = arith.constant dense<0.000000e+00> : vector<128x8xf32>
    %11 = tpu.matmul %5, %10, %cst_10 {dimension_numbers = #tpu.dot_dimension_numbers<[1], [0], [0], [1], [0, 0, 1, 1], [], []>} : vector<128x16xf32>, vector<16x8xf32>, vector<128x8xf32> -> vector<128x8xf32>
    %cst_11 = arith.constant 0.000000e+00 : bf16
    %12 = vector.broadcast %cst_11 : bf16 to vector<128x256xbf16>
    %13 = arith.cmpf ogt, %1, %12 : vector<128x256xbf16>
    %c0_12 = arith.constant 0 : index
    %c0_13 = arith.constant 0 : index
    %14 = vector.load %arg7[%c0_12, %c0_13] : memref<1x16xf32, #tpu.memory_space<vmem>>, vector<1x16xf32>
    %15 = vector.extract_strided_slice %11 {offsets = [0, 0], sizes = [128, 1], strides = [1, 1]} : vector<128x8xf32> to vector<128x1xf32>
    %16 = vector.extract_strided_slice %9 {offsets = [0, 0], sizes = [1, 256], strides = [1, 1]} : vector<8x256xf32> to vector<1x256xf32>
    %17 = vector.broadcast %15 : vector<128x1xf32> to vector<128x256xf32>
    %18 = vector.broadcast %16 : vector<1x256xf32> to vector<128x256xf32>
    %19 = arith.addf %17, %18 : vector<128x256xf32>
    %cst_14 = arith.constant 2.000000e-01 : f32
    %20 = vector.broadcast %cst_14 : f32 to vector<128x256xf32>
    %21 = arith.mulf %20, %19 : vector<128x256xf32>
    %22 = arith.maximumf %19, %21 : vector<128x256xf32>
    %cst_15 = arith.constant -2.000000e+30 : f32
    %23 = vector.broadcast %cst_15 : f32 to vector<128x256xf32>
    %24 = arith.select %13, %22, %23 : vector<128x256xi1>, vector<128x256xf32>
    %cst_16 = arith.constant dense<0xFF800000> : vector<128xf32>
    %25 = vector.multi_reduction <maximumf>, %24, %cst_16 [1] : vector<128x256xf32> to vector<128xf32>
    %26 = vector.shape_cast %25 : vector<128xf32> to vector<128x1xf32>
    %27 = vector.broadcast %26 : vector<128x1xf32> to vector<128x256xf32>
    %28 = arith.subf %24, %27 : vector<128x256xf32>
    %29 = math.exp %28 : vector<128x256xf32>
    %cst_17 = arith.constant dense<0.000000e+00> : vector<128xf32>
    %30 = vector.multi_reduction <add>, %29, %cst_17 [1] : vector<128x256xf32> to vector<128xf32>
    %31 = vector.shape_cast %30 : vector<128xf32> to vector<128x1xf32>
    %32 = tpu.reciprocal %31 {approx = true} : vector<128x1xf32> -> vector<128x1xf32>
    %33 = arith.truncf %29 : vector<128x256xf32> to vector<128x256xbf16>
    %34 = vector.extract_strided_slice %6 {offsets = [0, 0], sizes = [256, 8], strides = [1, 1]} : vector<256x16xbf16> to vector<256x8xbf16>
    %cst_18 = arith.constant dense<0.000000e+00> : vector<128x8xf32>
    %35 = tpu.matmul %33, %34, %cst_18 {dimension_numbers = #tpu.dot_dimension_numbers<[1], [0], [0], [1], [0, 0, 1, 1], [], []>} : vector<128x256xbf16>, vector<256x8xbf16>, vector<128x8xf32> -> vector<128x8xf32>
    %36 = vector.broadcast %32 : vector<128x1xf32> to vector<128x8xf32>
    %37 = arith.mulf %35, %36 : vector<128x8xf32>
    %38 = vector.extract_strided_slice %14 {offsets = [0, 0], sizes = [1, 8], strides = [1, 1]} : vector<1x16xf32> to vector<1x8xf32>
    %39 = vector.broadcast %38 : vector<1x8xf32> to vector<128x8xf32>
    %40 = arith.addf %37, %39 : vector<128x8xf32>
    %cst_19 = arith.constant 0.000000e+00 : f32
    %41 = vector.broadcast %cst_19 : f32 to vector<128x8xf32>
    %42 = arith.maximumf %40, %41 : vector<128x8xf32>
    %43 = arith.truncf %42 : vector<128x8xf32> to vector<128x8xbf16>
    %c0_20 = arith.constant 0 : index
    %c0_21 = arith.constant 0 : index
    %44 = vector.load %arg17[%c0_20, %c0_21] : memref<128x16xbf16, #tpu.memory_space<vmem>>, vector<128x8xbf16>
    tpu.vector_store %arg17[%c0_20, %c0_21], %43 {strides = array<i32>} : memref<128x16xbf16, #tpu.memory_space<vmem>>, vector<128x8xbf16>,
    %45 = vector.extract_strided_slice %11 {offsets = [0, 1], sizes = [128, 1], strides = [1, 1]} : vector<128x8xf32> to vector<128x1xf32>
    %46 = vector.extract_strided_slice %9 {offsets = [1, 0], sizes = [1, 256], strides = [1, 1]} : vector<8x256xf32> to vector<1x256xf32>
    %47 = vector.broadcast %45 : vector<128x1xf32> to vector<128x256xf32>
    %48 = vector.broadcast %46 : vector<1x256xf32> to vector<128x256xf32>
    %49 = arith.addf %47, %48 : vector<128x256xf32>
    %cst_22 = arith.constant 2.000000e-01 : f32
    %50 = vector.broadcast %cst_22 : f32 to vector<128x256xf32>
    %51 = arith.mulf %50, %49 : vector<128x256xf32>
    %52 = arith.maximumf %49, %51 : vector<128x256xf32>
    %cst_23 = arith.constant -2.000000e+30 : f32
    %53 = vector.broadcast %cst_23 : f32 to vector<128x256xf32>
    %54 = arith.select %13, %52, %53 : vector<128x256xi1>, vector<128x256xf32>
    %cst_24 = arith.constant dense<0xFF800000> : vector<128xf32>
    %55 = vector.multi_reduction <maximumf>, %54, %cst_24 [1] : vector<128x256xf32> to vector<128xf32>
    %56 = vector.shape_cast %55 : vector<128xf32> to vector<128x1xf32>
    %57 = vector.broadcast %56 : vector<128x1xf32> to vector<128x256xf32>
    %58 = arith.subf %54, %57 : vector<128x256xf32>
    %59 = math.exp %58 : vector<128x256xf32>
    %cst_25 = arith.constant dense<0.000000e+00> : vector<128xf32>
    %60 = vector.multi_reduction <add>, %59, %cst_25 [1] : vector<128x256xf32> to vector<128xf32>
    %61 = vector.shape_cast %60 : vector<128xf32> to vector<128x1xf32>
    %62 = tpu.reciprocal %61 {approx = true} : vector<128x1xf32> -> vector<128x1xf32>
    %63 = arith.truncf %59 : vector<128x256xf32> to vector<128x256xbf16>
    %64 = vector.extract_strided_slice %6 {offsets = [0, 8], sizes = [256, 8], strides = [1, 1]} : vector<256x16xbf16> to vector<256x8xbf16>
    %cst_26 = arith.constant dense<0.000000e+00> : vector<128x8xf32>
    %65 = tpu.matmul %63, %64, %cst_26 {dimension_numbers = #tpu.dot_dimension_numbers<[1], [0], [0], [1], [0, 0, 1, 1], [], []>} : vector<128x256xbf16>, vector<256x8xbf16>, vector<128x8xf32> -> vector<128x8xf32>
    %66 = vector.broadcast %62 : vector<128x1xf32> to vector<128x8xf32>
    %67 = arith.mulf %65, %66 : vector<128x8xf32>
    %68 = vector.extract_strided_slice %14 {offsets = [0, 8], sizes = [1, 8], strides = [1, 1]} : vector<1x16xf32> to vector<1x8xf32>
    %69 = vector.broadcast %68 : vector<1x8xf32> to vector<128x8xf32>
    %70 = arith.addf %67, %69 : vector<128x8xf32>
    %cst_27 = arith.constant 0.000000e+00 : f32
    %71 = vector.broadcast %cst_27 : f32 to vector<128x8xf32>
    %72 = arith.maximumf %70, %71 : vector<128x8xf32>
    %73 = arith.truncf %72 : vector<128x8xf32> to vector<128x8xbf16>
    %c0_28 = arith.constant 0 : index
    %c8 = arith.constant 8 : index
    %74 = vector.load %arg17[%c0_28, %c8] : memref<128x16xbf16, #tpu.memory_space<vmem>>, vector<128x8xbf16>
    tpu.vector_store %arg17[%c0_28, %c8], %73 {strides = array<i32>} : memref<128x16xbf16, #tpu.memory_space<vmem>>, vector<128x8xbf16>,
    %c0_29 = arith.constant 0 : index
    %c0_30 = arith.constant 0 : index
    %75 = vector.load %arg17[%c0_29, %c0_30] : memref<128x16xbf16, #tpu.memory_space<vmem>>, vector<128x16xbf16>
    %c0_31 = arith.constant 0 : index
    %c0_32 = arith.constant 0 : index
    %76 = vector.load %arg2[%c0_31, %c0_32] : memref<64x128xbf16, #tpu.memory_space<vmem>>, vector<64x128xbf16>
    %c0_33 = arith.constant 0 : index
    %c0_34 = arith.constant 0 : index
    %77 = vector.load %arg8[%c0_33, %c0_34] : memref<16x32xbf16, #tpu.memory_space<vmem>>, vector<16x32xbf16>
    %cst_35 = arith.constant dense<0.000000e+00> : vector<128x32xf32>
    %78 = tpu.matmul %75, %77, %cst_35 {dimension_numbers = #tpu.dot_dimension_numbers<[1], [0], [0], [1], [0, 0, 1, 1], [], []>} : vector<128x16xbf16>, vector<16x32xbf16>, vector<128x32xf32> -> vector<128x32xf32>
    %79 = vector.extract_strided_slice %78 {offsets = [0, 0], sizes = [128, 16], strides = [1, 1]} : vector<128x32xf32> to vector<128x16xf32>
    %80 = vector.extract_strided_slice %78 {offsets = [0, 16], sizes = [64, 16], strides = [1, 1]} : vector<128x32xf32> to vector<64x16xf32>
    %81 = arith.truncf %79 : vector<128x16xf32> to vector<128x16xbf16>
    %c0_36 = arith.constant 0 : index
    %c0_37 = arith.constant 0 : index
    %82 = vector.load %arg9[%c0_36, %c0_37] : memref<16x8xf32, #tpu.memory_space<vmem>>, vector<16x8xf32>
    %cst_38 = arith.constant dense<0.000000e+00> : vector<128x8xf32>
    %83 = tpu.matmul %79, %82, %cst_38 {dimension_numbers = #tpu.dot_dimension_numbers<[1], [0], [0], [1], [0, 0, 1, 1], [], []>} : vector<128x16xf32>, vector<16x8xf32>, vector<128x8xf32> -> vector<128x8xf32>
    %84 = tpu.transpose %83, [1, 0] : vector<128x8xf32> -> vector<8x128xf32>
    %c0_39 = arith.constant 0 : index
    %c0_40 = arith.constant 0 : index
    %85 = vector.load %arg10[%c0_39, %c0_40] : memref<16x8xf32, #tpu.memory_space<vmem>>, vector<16x8xf32>
    %cst_41 = arith.constant dense<0.000000e+00> : vector<64x8xf32>
    %86 = tpu.matmul %80, %85, %cst_41 {dimension_numbers = #tpu.dot_dimension_numbers<[1], [0], [0], [1], [0, 0, 1, 1], [], []>} : vector<64x16xf32>, vector<16x8xf32>, vector<64x8xf32> -> vector<64x8xf32>
    %cst_42 = arith.constant 0.000000e+00 : bf16
    %87 = vector.broadcast %cst_42 : bf16 to vector<64x128xbf16>
    %88 = arith.cmpf ogt, %76, %87 : vector<64x128xbf16>
    %c0_43 = arith.constant 0 : index
    %c0_44 = arith.constant 0 : index
    %89 = vector.load %arg11[%c0_43, %c0_44] : memref<1x16xf32, #tpu.memory_space<vmem>>, vector<1x16xf32>
    %90 = vector.extract_strided_slice %86 {offsets = [0, 0], sizes = [64, 1], strides = [1, 1]} : vector<64x8xf32> to vector<64x1xf32>
    %91 = vector.extract_strided_slice %84 {offsets = [0, 0], sizes = [1, 128], strides = [1, 1]} : vector<8x128xf32> to vector<1x128xf32>
    %92 = vector.broadcast %90 : vector<64x1xf32> to vector<64x128xf32>
    %93 = vector.broadcast %91 : vector<1x128xf32> to vector<64x128xf32>
    %94 = arith.addf %92, %93 : vector<64x128xf32>
    %cst_45 = arith.constant 2.000000e-01 : f32
    %95 = vector.broadcast %cst_45 : f32 to vector<64x128xf32>
    %96 = arith.mulf %95, %94 : vector<64x128xf32>
    %97 = arith.maximumf %94, %96 : vector<64x128xf32>
    %cst_46 = arith.constant -2.000000e+30 : f32
    %98 = vector.broadcast %cst_46 : f32 to vector<64x128xf32>
    %99 = arith.select %88, %97, %98 : vector<64x128xi1>, vector<64x128xf32>
    %cst_47 = arith.constant dense<0xFF800000> : vector<64xf32>
    %100 = vector.multi_reduction <maximumf>, %99, %cst_47 [1] : vector<64x128xf32> to vector<64xf32>
    %101 = vector.shape_cast %100 : vector<64xf32> to vector<64x1xf32>
    %102 = vector.broadcast %101 : vector<64x1xf32> to vector<64x128xf32>
    %103 = arith.subf %99, %102 : vector<64x128xf32>
    %104 = math.exp %103 : vector<64x128xf32>
    %cst_48 = arith.constant dense<0.000000e+00> : vector<64xf32>
    %105 = vector.multi_reduction <add>, %104, %cst_48 [1] : vector<64x128xf32> to vector<64xf32>
    %106 = vector.shape_cast %105 : vector<64xf32> to vector<64x1xf32>
    %107 = tpu.reciprocal %106 {approx = true} : vector<64x1xf32> -> vector<64x1xf32>
    %108 = arith.truncf %104 : vector<64x128xf32> to vector<64x128xbf16>
    %109 = vector.extract_strided_slice %81 {offsets = [0, 0], sizes = [128, 8], strides = [1, 1]} : vector<128x16xbf16> to vector<128x8xbf16>
    %cst_49 = arith.constant dense<0.000000e+00> : vector<64x8xf32>
    %110 = tpu.matmul %108, %109, %cst_49 {dimension_numbers = #tpu.dot_dimension_numbers<[1], [0], [0], [1], [0, 0, 1, 1], [], []>} : vector<64x128xbf16>, vector<128x8xbf16>, vector<64x8xf32> -> vector<64x8xf32>
    %111 = vector.broadcast %107 : vector<64x1xf32> to vector<64x8xf32>
    %112 = arith.mulf %110, %111 : vector<64x8xf32>
    %113 = vector.extract_strided_slice %89 {offsets = [0, 0], sizes = [1, 8], strides = [1, 1]} : vector<1x16xf32> to vector<1x8xf32>
    %114 = vector.broadcast %113 : vector<1x8xf32> to vector<64x8xf32>
    %115 = arith.addf %112, %114 : vector<64x8xf32>
    %cst_50 = arith.constant 0.000000e+00 : f32
    %116 = vector.broadcast %cst_50 : f32 to vector<64x8xf32>
    %117 = arith.maximumf %115, %116 : vector<64x8xf32>
    %118 = arith.truncf %117 : vector<64x8xf32> to vector<64x8xbf16>
    %c0_51 = arith.constant 0 : index
    %c0_52 = arith.constant 0 : index
    %119 = vector.load %arg18[%c0_51, %c0_52] : memref<64x16xbf16, #tpu.memory_space<vmem>>, vector<64x8xbf16>
    tpu.vector_store %arg18[%c0_51, %c0_52], %118 {strides = array<i32>} : memref<64x16xbf16, #tpu.memory_space<vmem>>, vector<64x8xbf16>,
    %120 = vector.extract_strided_slice %86 {offsets = [0, 1], sizes = [64, 1], strides = [1, 1]} : vector<64x8xf32> to vector<64x1xf32>
    %121 = vector.extract_strided_slice %84 {offsets = [1, 0], sizes = [1, 128], strides = [1, 1]} : vector<8x128xf32> to vector<1x128xf32>
    %122 = vector.broadcast %120 : vector<64x1xf32> to vector<64x128xf32>
    %123 = vector.broadcast %121 : vector<1x128xf32> to vector<64x128xf32>
    %124 = arith.addf %122, %123 : vector<64x128xf32>
    %cst_53 = arith.constant 2.000000e-01 : f32
    %125 = vector.broadcast %cst_53 : f32 to vector<64x128xf32>
    %126 = arith.mulf %125, %124 : vector<64x128xf32>
    %127 = arith.maximumf %124, %126 : vector<64x128xf32>
    %cst_54 = arith.constant -2.000000e+30 : f32
    %128 = vector.broadcast %cst_54 : f32 to vector<64x128xf32>
    %129 = arith.select %88, %127, %128 : vector<64x128xi1>, vector<64x128xf32>
    %cst_55 = arith.constant dense<0xFF800000> : vector<64xf32>
    %130 = vector.multi_reduction <maximumf>, %129, %cst_55 [1] : vector<64x128xf32> to vector<64xf32>
    %131 = vector.shape_cast %130 : vector<64xf32> to vector<64x1xf32>
    %132 = vector.broadcast %131 : vector<64x1xf32> to vector<64x128xf32>
    %133 = arith.subf %129, %132 : vector<64x128xf32>
    %134 = math.exp %133 : vector<64x128xf32>
    %cst_56 = arith.constant dense<0.000000e+00> : vector<64xf32>
    %135 = vector.multi_reduction <add>, %134, %cst_56 [1] : vector<64x128xf32> to vector<64xf32>
    %136 = vector.shape_cast %135 : vector<64xf32> to vector<64x1xf32>
    %137 = tpu.reciprocal %136 {approx = true} : vector<64x1xf32> -> vector<64x1xf32>
    %138 = arith.truncf %134 : vector<64x128xf32> to vector<64x128xbf16>
    %139 = vector.extract_strided_slice %81 {offsets = [0, 8], sizes = [128, 8], strides = [1, 1]} : vector<128x16xbf16> to vector<128x8xbf16>
    %cst_57 = arith.constant dense<0.000000e+00> : vector<64x8xf32>
    %140 = tpu.matmul %138, %139, %cst_57 {dimension_numbers = #tpu.dot_dimension_numbers<[1], [0], [0], [1], [0, 0, 1, 1], [], []>} : vector<64x128xbf16>, vector<128x8xbf16>, vector<64x8xf32> -> vector<64x8xf32>
    %141 = vector.broadcast %137 : vector<64x1xf32> to vector<64x8xf32>
    %142 = arith.mulf %140, %141 : vector<64x8xf32>
    %143 = vector.extract_strided_slice %89 {offsets = [0, 8], sizes = [1, 8], strides = [1, 1]} : vector<1x16xf32> to vector<1x8xf32>
    %144 = vector.broadcast %143 : vector<1x8xf32> to vector<64x8xf32>
    %145 = arith.addf %142, %144 : vector<64x8xf32>
    %cst_58 = arith.constant 0.000000e+00 : f32
    %146 = vector.broadcast %cst_58 : f32 to vector<64x8xf32>
    %147 = arith.maximumf %145, %146 : vector<64x8xf32>
    %148 = arith.truncf %147 : vector<64x8xf32> to vector<64x8xbf16>
    %c0_59 = arith.constant 0 : index
    %c8_60 = arith.constant 8 : index
    %149 = vector.load %arg18[%c0_59, %c8_60] : memref<64x16xbf16, #tpu.memory_space<vmem>>, vector<64x8xbf16>
    tpu.vector_store %arg18[%c0_59, %c8_60], %148 {strides = array<i32>} : memref<64x16xbf16, #tpu.memory_space<vmem>>, vector<64x8xbf16>,
    %c0_61 = arith.constant 0 : index
    %c0_62 = arith.constant 0 : index
    %150 = vector.load %arg18[%c0_61, %c0_62] : memref<64x16xbf16, #tpu.memory_space<vmem>>, vector<64x16xbf16>
    %c0_63 = arith.constant 0 : index
    %c0_64 = arith.constant 0 : index
    %151 = vector.load %arg3[%c0_63, %c0_64] : memref<32x64xbf16, #tpu.memory_space<vmem>>, vector<32x64xbf16>
    %c0_65 = arith.constant 0 : index
    %c0_66 = arith.constant 0 : index
    %152 = vector.load %arg12[%c0_65, %c0_66] : memref<16x32xbf16, #tpu.memory_space<vmem>>, vector<16x32xbf16>
    %cst_67 = arith.constant dense<0.000000e+00> : vector<64x32xf32>
    %153 = tpu.matmul %150, %152, %cst_67 {dimension_numbers = #tpu.dot_dimension_numbers<[1], [0], [0], [1], [0, 0, 1, 1], [], []>} : vector<64x16xbf16>, vector<16x32xbf16>, vector<64x32xf32> -> vector<64x32xf32>
    %154 = vector.extract_strided_slice %153 {offsets = [0, 0], sizes = [64, 16], strides = [1, 1]} : vector<64x32xf32> to vector<64x16xf32>
    %155 = vector.extract_strided_slice %153 {offsets = [0, 16], sizes = [32, 16], strides = [1, 1]} : vector<64x32xf32> to vector<32x16xf32>
    %156 = arith.truncf %154 : vector<64x16xf32> to vector<64x16xbf16>
    %c0_68 = arith.constant 0 : index
    %c0_69 = arith.constant 0 : index
    %157 = vector.load %arg13[%c0_68, %c0_69] : memref<16x8xf32, #tpu.memory_space<vmem>>, vector<16x8xf32>
    %cst_70 = arith.constant dense<0.000000e+00> : vector<64x8xf32>
    %158 = tpu.matmul %154, %157, %cst_70 {dimension_numbers = #tpu.dot_dimension_numbers<[1], [0], [0], [1], [0, 0, 1, 1], [], []>} : vector<64x16xf32>, vector<16x8xf32>, vector<64x8xf32> -> vector<64x8xf32>
    %159 = tpu.transpose %158, [1, 0] : vector<64x8xf32> -> vector<8x64xf32>
    %c0_71 = arith.constant 0 : index
    %c0_72 = arith.constant 0 : index
    %160 = vector.load %arg14[%c0_71, %c0_72] : memref<16x8xf32, #tpu.memory_space<vmem>>, vector<16x8xf32>
    %cst_73 = arith.constant dense<0.000000e+00> : vector<32x8xf32>
    %161 = tpu.matmul %155, %160, %cst_73 {dimension_numbers = #tpu.dot_dimension_numbers<[1], [0], [0], [1], [0, 0, 1, 1], [], []>} : vector<32x16xf32>, vector<16x8xf32>, vector<32x8xf32> -> vector<32x8xf32>
    %cst_74 = arith.constant 0.000000e+00 : bf16
    %162 = vector.broadcast %cst_74 : bf16 to vector<32x64xbf16>
    %163 = arith.cmpf ogt, %151, %162 : vector<32x64xbf16>
    %c0_75 = arith.constant 0 : index
    %c0_76 = arith.constant 0 : index
    %164 = vector.load %arg15[%c0_75, %c0_76] : memref<1x16xf32, #tpu.memory_space<vmem>>, vector<1x16xf32>
    %165 = vector.extract_strided_slice %161 {offsets = [0, 0], sizes = [32, 1], strides = [1, 1]} : vector<32x8xf32> to vector<32x1xf32>
    %166 = vector.extract_strided_slice %159 {offsets = [0, 0], sizes = [1, 64], strides = [1, 1]} : vector<8x64xf32> to vector<1x64xf32>
    %167 = vector.broadcast %165 : vector<32x1xf32> to vector<32x64xf32>
    %168 = vector.broadcast %166 : vector<1x64xf32> to vector<32x64xf32>
    %169 = arith.addf %167, %168 : vector<32x64xf32>
    %cst_77 = arith.constant 2.000000e-01 : f32
    %170 = vector.broadcast %cst_77 : f32 to vector<32x64xf32>
    %171 = arith.mulf %170, %169 : vector<32x64xf32>
    %172 = arith.maximumf %169, %171 : vector<32x64xf32>
    %cst_78 = arith.constant -2.000000e+30 : f32
    %173 = vector.broadcast %cst_78 : f32 to vector<32x64xf32>
    %174 = arith.select %163, %172, %173 : vector<32x64xi1>, vector<32x64xf32>
    %cst_79 = arith.constant dense<0xFF800000> : vector<32xf32>
    %175 = vector.multi_reduction <maximumf>, %174, %cst_79 [1] : vector<32x64xf32> to vector<32xf32>
    %176 = vector.shape_cast %175 : vector<32xf32> to vector<32x1xf32>
    %177 = vector.broadcast %176 : vector<32x1xf32> to vector<32x64xf32>
    %178 = arith.subf %174, %177 : vector<32x64xf32>
    %179 = math.exp %178 : vector<32x64xf32>
    %cst_80 = arith.constant dense<0.000000e+00> : vector<32xf32>
    %180 = vector.multi_reduction <add>, %179, %cst_80 [1] : vector<32x64xf32> to vector<32xf32>
    %181 = vector.shape_cast %180 : vector<32xf32> to vector<32x1xf32>
    %182 = tpu.reciprocal %181 {approx = true} : vector<32x1xf32> -> vector<32x1xf32>
    %183 = arith.truncf %179 : vector<32x64xf32> to vector<32x64xbf16>
    %184 = vector.extract_strided_slice %156 {offsets = [0, 0], sizes = [64, 8], strides = [1, 1]} : vector<64x16xbf16> to vector<64x8xbf16>
    %cst_81 = arith.constant dense<0.000000e+00> : vector<32x8xf32>
    %185 = tpu.matmul %183, %184, %cst_81 {dimension_numbers = #tpu.dot_dimension_numbers<[1], [0], [0], [1], [0, 0, 1, 1], [], []>} : vector<32x64xbf16>, vector<64x8xbf16>, vector<32x8xf32> -> vector<32x8xf32>
    %186 = vector.broadcast %182 : vector<32x1xf32> to vector<32x8xf32>
    %187 = arith.mulf %185, %186 : vector<32x8xf32>
    %188 = vector.extract_strided_slice %164 {offsets = [0, 0], sizes = [1, 8], strides = [1, 1]} : vector<1x16xf32> to vector<1x8xf32>
    %189 = vector.broadcast %188 : vector<1x8xf32> to vector<32x8xf32>
    %190 = arith.addf %187, %189 : vector<32x8xf32>
    %191 = vector.extract_strided_slice %161 {offsets = [0, 1], sizes = [32, 1], strides = [1, 1]} : vector<32x8xf32> to vector<32x1xf32>
    %192 = vector.extract_strided_slice %159 {offsets = [1, 0], sizes = [1, 64], strides = [1, 1]} : vector<8x64xf32> to vector<1x64xf32>
    %193 = vector.broadcast %191 : vector<32x1xf32> to vector<32x64xf32>
    %194 = vector.broadcast %192 : vector<1x64xf32> to vector<32x64xf32>
    %195 = arith.addf %193, %194 : vector<32x64xf32>
    %cst_82 = arith.constant 2.000000e-01 : f32
    %196 = vector.broadcast %cst_82 : f32 to vector<32x64xf32>
    %197 = arith.mulf %196, %195 : vector<32x64xf32>
    %198 = arith.maximumf %195, %197 : vector<32x64xf32>
    %cst_83 = arith.constant -2.000000e+30 : f32
    %199 = vector.broadcast %cst_83 : f32 to vector<32x64xf32>
    %200 = arith.select %163, %198, %199 : vector<32x64xi1>, vector<32x64xf32>
    %cst_84 = arith.constant dense<0xFF800000> : vector<32xf32>
    %201 = vector.multi_reduction <maximumf>, %200, %cst_84 [1] : vector<32x64xf32> to vector<32xf32>
    %202 = vector.shape_cast %201 : vector<32xf32> to vector<32x1xf32>
    %203 = vector.broadcast %202 : vector<32x1xf32> to vector<32x64xf32>
    %204 = arith.subf %200, %203 : vector<32x64xf32>
    %205 = math.exp %204 : vector<32x64xf32>
    %cst_85 = arith.constant dense<0.000000e+00> : vector<32xf32>
    %206 = vector.multi_reduction <add>, %205, %cst_85 [1] : vector<32x64xf32> to vector<32xf32>
    %207 = vector.shape_cast %206 : vector<32xf32> to vector<32x1xf32>
    %208 = tpu.reciprocal %207 {approx = true} : vector<32x1xf32> -> vector<32x1xf32>
    %209 = arith.truncf %205 : vector<32x64xf32> to vector<32x64xbf16>
    %210 = vector.extract_strided_slice %156 {offsets = [0, 8], sizes = [64, 8], strides = [1, 1]} : vector<64x16xbf16> to vector<64x8xbf16>
    %cst_86 = arith.constant dense<0.000000e+00> : vector<32x8xf32>
    %211 = tpu.matmul %209, %210, %cst_86 {dimension_numbers = #tpu.dot_dimension_numbers<[1], [0], [0], [1], [0, 0, 1, 1], [], []>} : vector<32x64xbf16>, vector<64x8xbf16>, vector<32x8xf32> -> vector<32x8xf32>
    %212 = vector.broadcast %208 : vector<32x1xf32> to vector<32x8xf32>
    %213 = arith.mulf %211, %212 : vector<32x8xf32>
    %214 = vector.extract_strided_slice %164 {offsets = [0, 8], sizes = [1, 8], strides = [1, 1]} : vector<1x16xf32> to vector<1x8xf32>
    %215 = vector.broadcast %214 : vector<1x8xf32> to vector<32x8xf32>
    %216 = arith.addf %213, %215 : vector<32x8xf32>
    %217 = arith.addf %190, %216 : vector<32x8xf32>
    %cst_87 = arith.constant 5.000000e-01 : f32
    %218 = vector.broadcast %cst_87 : f32 to vector<32x8xf32>
    %219 = arith.mulf %217, %218 : vector<32x8xf32>
    %c0_88 = arith.constant 0 : index
    %c0_89 = arith.constant 0 : index
    %220 = vector.load %arg16[%c0_88, %c0_89] : memref<32x8xf32, #tpu.memory_space<vmem>>, vector<32x8xf32>
    tpu.vector_store %arg16[%c0_88, %c0_89], %219 {strides = array<i32>} : memref<32x8xf32, #tpu.memory_space<vmem>>, vector<32x8xf32>,
    return
  }
}

</mosaic_0001>

<llo_original>
// kernel: tpu_custom_call.1
$region0: #{tpu_custom_call.1}
  #allocation0 [shape = 'u32[]', space=smem, size = 0x4, offset = 0x4, fixed_abs, tag = 'smem constant byte address 0x4 - core index']
  #allocation1 [shape = 'u32[72,128]{1,0:T(1,128)}', space=vmem, size = 0x9000, scoped, tag = 'internal scratch']
  #allocation2 [shape = 'bf16[128,16]{1,0:T(8,128)(2,1)}', space=vmem, size = 0x8000, scoped, tag = 'scratch operand']
  #allocation3 [shape = 'bf16[64,16]{1,0:T(8,128)(2,1)}', space=vmem, size = 0x4000, scoped, tag = 'scratch operand']
  %s0 = inlined_call_operand.vmem [shape: bf16[256,16], index: 0, kind: input, shape index: {}]
  %s1 = inlined_call_operand.vmem [shape: bf16[128,256], index: 1, kind: input, shape index: {}]
  %s2 = inlined_call_operand.vmem [shape: bf16[64,128], index: 2, kind: input, shape index: {}]
  %s3 = inlined_call_operand.vmem [shape: bf16[32,64], index: 3, kind: input, shape index: {}]
  %s4 = inlined_call_operand.vmem [shape: bf16[16,32], index: 4, kind: input, shape index: {}]
  %s5 = inlined_call_operand.vmem [shape: f32[16,8], index: 5, kind: input, shape index: {}]
  %s6 = inlined_call_operand.vmem [shape: f32[16,8], index: 6, kind: input, shape index: {}]
  %s7 = inlined_call_operand.vmem [shape: f32[1,16], index: 7, kind: input, shape index: {}]
  %s8 = inlined_call_operand.vmem [shape: bf16[16,32], index: 8, kind: input, shape index: {}]
  %s9 = inlined_call_operand.vmem [shape: f32[16,8], index: 9, kind: input, shape index: {}]
  %s10 = inlined_call_operand.vmem [shape: f32[16,8], index: 10, kind: input, shape index: {}]
  %s11 = inlined_call_operand.vmem [shape: f32[1,16], index: 11, kind: input, shape index: {}]
  %s12 = inlined_call_operand.vmem [shape: bf16[16,32], index: 12, kind: input, shape index: {}]
  %s13 = inlined_call_operand.vmem [shape: f32[16,8], index: 13, kind: input, shape index: {}]
  %s14 = inlined_call_operand.vmem [shape: f32[16,8], index: 14, kind: input, shape index: {}]
  %s15 = inlined_call_operand.vmem [shape: f32[1,16], index: 15, kind: input, shape index: {}]
  %s16 = inlined_call_operand.vmem [shape: f32[32,8], index: 16, kind: output, shape index: {}]
  %s17 = sld [smem:[#allocation0]]
  $region74: #{tpu_custom_call.1} parent=0
    _
  %s19 = ssub.s32 1, %s17
  %s20 = scalar_select 0, %s19, %s17
  // Predicated region
  $region2: #{tpu_custom_call.1} parent=0 // pred_check
    _
  $region3: #{tpu_custom_call.1} parent=0 // pred_check_branch
    %22 = sbr.rel (0) target = $region5
  $region4: #{tpu_custom_call.1} parent=0 // pred_region
    _
  $region5: #{tpu_custom_call.1} parent=0 // pred_fallthru
    _
  // Predicated region
  $region6: #{tpu_custom_call.1} parent=0 // pred_check
    _
  $region7: #{tpu_custom_call.1} parent=0 // pred_check_branch
    %24 = sbr.rel (0) target = $region9
  $region8: #{tpu_custom_call.1} parent=0 // pred_region
    _
  $region9: #{tpu_custom_call.1} parent=0 // pred_fallthru
    _
  // Predicated region
  $region10: #{tpu_custom_call.1} parent=0 // pred_check
    _
  $region11: #{tpu_custom_call.1} parent=0 // pred_check_branch
    %26 = sbr.rel (0) target = $region13
  $region12: #{tpu_custom_call.1} parent=0 // pred_region
    _
  $region13: #{tpu_custom_call.1} parent=0 // pred_fallthru
    _
  // Predicated region
  $region14: #{tpu_custom_call.1} parent=0 // pred_check
    _
  $region15: #{tpu_custom_call.1} parent=0 // pred_check_branch
    %28 = sbr.rel (0) target = $region17
  $region16: #{tpu_custom_call.1} parent=0 // pred_region
    _
  $region17: #{tpu_custom_call.1} parent=0 // pred_fallthru
    _
  // Predicated region
  $region18: #{tpu_custom_call.1} parent=0 // pred_check
    _
  $region19: #{tpu_custom_call.1} parent=0 // pred_check_branch
    %30 = sbr.rel (0) target = $region21
  $region20: #{tpu_custom_call.1} parent=0 // pred_region
    _
  $region21: #{tpu_custom_call.1} parent=0 // pred_fallthru
    _
  // Predicated region
  $region22: #{tpu_custom_call.1} parent=0 // pred_check
    _
  $region23: #{tpu_custom_call.1} parent=0 // pred_check_branch
    %32 = sbr.rel (0) target = $region25
  $region24: #{tpu_custom_call.1} parent=0 // pred_region
    _
  $region25: #{tpu_custom_call.1} parent=0 // pred_fallthru
    _
  // Predicated region
  $region26: #{tpu_custom_call.1} parent=0 // pred_check
    _
  $region27: #{tpu_custom_call.1} parent=0 // pred_check_branch
    %34 = sbr.rel (0) target = $region29
  $region28: #{tpu_custom_call.1} parent=0 // pred_region
    _
  $region29: #{tpu_custom_call.1} parent=0 // pred_fallthru
    _
  // Predicated region
  $region30: #{tpu_custom_call.1} parent=0 // pred_check
    _
  $region31: #{tpu_custom_call.1} parent=0 // pred_check_branch
    %36 = sbr.rel (0) target = $region33
  $region32: #{tpu_custom_call.1} parent=0 // pred_region
    _
  $region33: #{tpu_custom_call.1} parent=0 // pred_fallthru
    _
  // Predicated region
  $region34: #{tpu_custom_call.1} parent=0 // pred_check
    _
  $region35: #{tpu_custom_call.1} parent=0 // pred_check_branch
    %38 = sbr.rel (0) target = $region37
  $region36: #{tpu_custom_call.1} parent=0 // pred_region
    _
  $region37: #{tpu_custom_call.1} parent=0 // pred_fallthru
    _
  // Predicated region
  $region38: #{tpu_custom_call.1} parent=0 // pred_check
    _
  $region39: #{tpu_custom_call.1} parent=0 // pred_check_branch
    %40 = sbr.rel (0) target = $region41
  $region40: #{tpu_custom_call.1} parent=0 // pred_region
    _
  $region41: #{tpu_custom_call.1} parent=0 // pred_fallthru
    _
  // Predicated region
  $region42: #{tpu_custom_call.1} parent=0 // pred_check
    _
  $region43: #{tpu_custom_call.1} parent=0 // pred_check_branch
    %42 = sbr.rel (0) target = $region45
  $region44: #{tpu_custom_call.1} parent=0 // pred_region
    _
  $region45: #{tpu_custom_call.1} parent=0 // pred_fallthru
    _
  // Predicated region
  $region46: #{tpu_custom_call.1} parent=0 // pred_check
    _
  $region47: #{tpu_custom_call.1} parent=0 // pred_check_branch
    %44 = sbr.rel (0) target = $region49
  $region48: #{tpu_custom_call.1} parent=0 // pred_region
    _
  $region49: #{tpu_custom_call.1} parent=0 // pred_fallthru
    _
  // Predicated region
  $region50: #{tpu_custom_call.1} parent=0 // pred_check
    _
  $region51: #{tpu_custom_call.1} parent=0 // pred_check_branch
    %46 = sbr.rel (0) target = $region53
  $region52: #{tpu_custom_call.1} parent=0 // pred_region
    _
  $region53: #{tpu_custom_call.1} parent=0 // pred_fallthru
    _
  // Predicated region
  $region54: #{tpu_custom_call.1} parent=0 // pred_check
    _
  $region55: #{tpu_custom_call.1} parent=0 // pred_check_branch
    %48 = sbr.rel (0) target = $region57
  $region56: #{tpu_custom_call.1} parent=0 // pred_region
    _
  $region57: #{tpu_custom_call.1} parent=0 // pred_fallthru
    _
  // Predicated region
  $region58: #{tpu_custom_call.1} parent=0 // pred_check
    _
  $region59: #{tpu_custom_call.1} parent=0 // pred_check_branch
    %50 = sbr.rel (0) target = $region61
  $region60: #{tpu_custom_call.1} parent=0 // pred_region
    _
  $region61: #{tpu_custom_call.1} parent=0 // pred_fallthru
    _
  // Predicated region
  $region62: #{tpu_custom_call.1} parent=0 // pred_check
    _
  $region63: #{tpu_custom_call.1} parent=0 // pred_check_branch
    %52 = sbr.rel (0) target = $region65
  $region64: #{tpu_custom_call.1} parent=0 // pred_region
    _
  $region65: #{tpu_custom_call.1} parent=0 // pred_fallthru
    _
  %v54 = vld [vmem:[%s0] sm:$0xf]
  %v55 = vld [vmem:[%s0 + $0x4] sm:$0xf]
  %v56 = vld [vmem:[%s0 + $0x8] sm:$0xf]
  %v57 = vld [vmem:[%s0 + $0xc] sm:$0xf]
  %v58 = vld [vmem:[%s0 + $0x10] sm:$0xf]
  %v59 = vld [vmem:[%s0 + $0x14] sm:$0xf]
  %v60 = vld [vmem:[%s0 + $0x18] sm:$0xf]
  %v61 = vld [vmem:[%s0 + $0x1c] sm:$0xf]
  %v62 = vld [vmem:[%s0 + $0x20] sm:$0xf]
  %v63 = vld [vmem:[%s0 + $0x24] sm:$0xf]
  %v64 = vld [vmem:[%s0 + $0x28] sm:$0xf]
  %v65 = vld [vmem:[%s0 + $0x2c] sm:$0xf]
  %v66 = vld [vmem:[%s0 + $0x30] sm:$0xf]
  %v67 = vld [vmem:[%s0 + $0x34] sm:$0xf]
  %v68 = vld [vmem:[%s0 + $0x38] sm:$0xf]
  %v69 = vld [vmem:[%s0 + $0x3c] sm:$0xf]
  %v70 = vld [vmem:[%s0 + $0x40] sm:$0xf]
  %v71 = vld [vmem:[%s0 + $0x44] sm:$0xf]
  %v72 = vld [vmem:[%s0 + $0x48] sm:$0xf]
  %v73 = vld [vmem:[%s0 + $0x4c] sm:$0xf]
  %v74 = vld [vmem:[%s0 + $0x50] sm:$0xf]
  %v75 = vld [vmem:[%s0 + $0x54] sm:$0xf]
  %v76 = vld [vmem:[%s0 + $0x58] sm:$0xf]
  %v77 = vld [vmem:[%s0 + $0x5c] sm:$0xf]
  %v78 = vld [vmem:[%s0 + $0x60] sm:$0xf]
  %v79 = vld [vmem:[%s0 + $0x64] sm:$0xf]
  %v80 = vld [vmem:[%s0 + $0x68] sm:$0xf]
  %v81 = vld [vmem:[%s0 + $0x6c] sm:$0xf]
  %v82 = vld [vmem:[%s0 + $0x70] sm:$0xf]
  %v83 = vld [vmem:[%s0 + $0x74] sm:$0xf]
  %v84 = vld [vmem:[%s0 + $0x78] sm:$0xf]
  %v85 = vld [vmem:[%s0 + $0x7c] sm:$0xf]
  %v86 = vld [vmem:[%s1] sm:$0xff]
  %v87 = vld [vmem:[%s1 + $0x8] sm:$0xff]
  %v88 = vld [vmem:[%s1 + $0x10] sm:$0xff]
  %v89 = vld [vmem:[%s1 + $0x18] sm:$0xff]
  %v90 = vld [vmem:[%s1 + $0x20] sm:$0xff]
  %v91 = vld [vmem:[%s1 + $0x28] sm:$0xff]
  %v92 = vld [vmem:[%s1 + $0x30] sm:$0xff]
  %v93 = vld [vmem:[%s1 + $0x38] sm:$0xff]
  %v94 = vld [vmem:[%s1 + $0x40] sm:$0xff]
  %v95 = vld [vmem:[%s1 + $0x48] sm:$0xff]
  %v96 = vld [vmem:[%s1 + $0x50] sm:$0xff]
  %v97 = vld [vmem:[%s1 + $0x58] sm:$0xff]
  %v98 = vld [vmem:[%s1 + $0x60] sm:$0xff]
  %v99 = vld [vmem:[%s1 + $0x68] sm:$0xff]
  %v100 = vld [vmem:[%s1 + $0x70] sm:$0xff]
  %v101 = vld [vmem:[%s1 + $0x78] sm:$0xff]
  %v102 = vld [vmem:[%s4] sm:$0xf]
  %v103 = vld [vmem:[%s4 + $0x4] sm:$0xf]
  %v136 = vunpack.c.l.b16 %v54
  %v137 = vunpack.c.l.b16 %v55
  %v138 = vunpack.c.l.b16 %v56
  %v139 = vunpack.c.l.b16 %v57
  %v140 = vunpack.c.l.b16 %v58
  %v141 = vunpack.c.l.b16 %v59
  %v142 = vunpack.c.l.b16 %v60
  %v143 = vunpack.c.l.b16 %v61
  %v144 = vunpack.c.l.b16 %v62
  %v145 = vunpack.c.l.b16 %v63
  %v146 = vunpack.c.l.b16 %v64
  %v147 = vunpack.c.l.b16 %v65
  %v148 = vunpack.c.l.b16 %v66
  %v149 = vunpack.c.l.b16 %v67
  %v150 = vunpack.c.l.b16 %v68
  %v151 = vunpack.c.l.b16 %v69
  %v152 = vunpack.c.l.b16 %v70
  %v153 = vunpack.c.l.b16 %v71
  %v154 = vunpack.c.l.b16 %v72
  %v155 = vunpack.c.l.b16 %v73
  %v156 = vunpack.c.l.b16 %v74
  %v157 = vunpack.c.l.b16 %v75
  %v158 = vunpack.c.l.b16 %v76
  %v159 = vunpack.c.l.b16 %v77
  %v160 = vunpack.c.l.b16 %v78
  %v161 = vunpack.c.l.b16 %v79
  %v162 = vunpack.c.l.b16 %v80
  %v163 = vunpack.c.l.b16 %v81
  %v164 = vunpack.c.l.b16 %v82
  %v165 = vunpack.c.l.b16 %v83
  %v166 = vunpack.c.l.b16 %v84
  %v167 = vunpack.c.l.b16 %v85
  %v168 = vpack.c.b16 %v137, %v136
  %v169 = vpack.c.b16 %v139, %v138
  %v170 = vpack.c.b16 %v141, %v140
  %v171 = vpack.c.b16 %v143, %v142
  %v172 = vpack.c.b16 %v145, %v144
  %v173 = vpack.c.b16 %v147, %v146
  %v174 = vpack.c.b16 %v149, %v148
  %v175 = vpack.c.b16 %v151, %v150
  %v176 = vpack.c.b16 %v153, %v152
  %v177 = vpack.c.b16 %v155, %v154
  %v178 = vpack.c.b16 %v157, %v156
  %v179 = vpack.c.b16 %v159, %v158
  %v180 = vpack.c.b16 %v161, %v160
  %v181 = vpack.c.b16 %v163, %v162
  %v182 = vpack.c.b16 %v165, %v164
  %v183 = vpack.c.b16 %v167, %v166
  %v186 = vunpack.c.l.b16 %v102
  %v187 = vunpack.c.l.b16 %v103
  %v188 = vpack.c.b16 %v187, %v186
  %vm190 = vcmask 130048
  %v192 = vsel %vm190, %v168, 0
  %v195 = vsel %vm190, %v169, 0
  %v198 = vsel %vm190, %v170, 0
  %v201 = vsel %vm190, %v171, 0
  %v204 = vsel %vm190, %v172, 0
  %v207 = vsel %vm190, %v173, 0
  %v210 = vsel %vm190, %v174, 0
  %v213 = vsel %vm190, %v175, 0
  %v216 = vsel %vm190, %v176, 0
  %v219 = vsel %vm190, %v177, 0
  %v222 = vsel %vm190, %v178, 0
  %v225 = vsel %vm190, %v179, 0
  %v228 = vsel %vm190, %v180, 0
  %v231 = vsel %vm190, %v181, 0
  %v234 = vsel %vm190, %v182, 0
  %v237 = vsel %vm190, %v183, 0
  %239 = vmatpush.bf16.msra.mxu0 0
  %240 = vmatpush.bf16.msra.mxu0 0
  %241 = vmatpush.bf16.msra.mxu0 0
  %242 = vmatpush.bf16.msra.mxu0 0
  %243 = vmatpush.bf16.msra.mxu0 0
  %244 = vmatpush.bf16.msra.mxu0 0
  %245 = vmatpush.bf16.msra.mxu0 0
  %246 = vmatpush.bf16.msra.mxu0 %v188
  %247 = vmatmul.bf16.gmra.mxu0 %v192
  %v248 = vpop.f32.mrf.mxu0
  %v249 = vadd.f32 0.0, %v248
  %v250 = vpop.f32.mrf.mxu0
  %v251 = vadd.f32 0.0, %v250
  %252 = vmatmul.bf16.gmra.mxu0 %v195
  %v253 = vpop.f32.mrf.mxu0
  %v254 = vadd.f32 0.0, %v253
  %v255 = vpop.f32.mrf.mxu0
  %v256 = vadd.f32 0.0, %v255
  %257 = vmatmul.bf16.gmra.mxu0 %v198
  %v258 = vpop.f32.mrf.mxu0
  %v259 = vadd.f32 0.0, %v258
  %v260 = vpop.f32.mrf.mxu0
  %v261 = vadd.f32 0.0, %v260
  %262 = vmatmul.bf16.gmra.mxu0 %v201
  %v263 = vpop.f32.mrf.mxu0
  %v264 = vadd.f32 0.0, %v263
  %v265 = vpop.f32.mrf.mxu0
  %v266 = vadd.f32 0.0, %v265
  %267 = vmatmul.bf16.gmra.mxu0 %v204
  %v268 = vpop.f32.mrf.mxu0
  %v269 = vadd.f32 0.0, %v268
  %v270 = vpop.f32.mrf.mxu0
  %v271 = vadd.f32 0.0, %v270
  %272 = vmatmul.bf16.gmra.mxu0 %v207
  %v273 = vpop.f32.mrf.mxu0
  %v274 = vadd.f32 0.0, %v273
  %v275 = vpop.f32.mrf.mxu0
  %v276 = vadd.f32 0.0, %v275
  %277 = vmatmul.bf16.gmra.mxu0 %v210
  %v278 = vpop.f32.mrf.mxu0
  %v279 = vadd.f32 0.0, %v278
  %v280 = vpop.f32.mrf.mxu0
  %v281 = vadd.f32 0.0, %v280
  %282 = vmatmul.bf16.gmra.mxu0 %v213
  %v283 = vpop.f32.mrf.mxu0
  %v284 = vadd.f32 0.0, %v283
  %v285 = vpop.f32.mrf.mxu0
  %v286 = vadd.f32 0.0, %v285
  %287 = vmatmul.bf16.gmra.mxu0 %v216
  %v288 = vpop.f32.mrf.mxu0
  %v289 = vadd.f32 0.0, %v288
  %v290 = vpop.f32.mrf.mxu0
  %v291 = vadd.f32 0.0, %v290
  %292 = vmatmul.bf16.gmra.mxu0 %v219
  %v293 = vpop.f32.mrf.mxu0
  %v294 = vadd.f32 0.0, %v293
  %v295 = vpop.f32.mrf.mxu0
  %v296 = vadd.f32 0.0, %v295
  %297 = vmatmul.bf16.gmra.mxu0 %v222
  %v298 = vpop.f32.mrf.mxu0
  %v299 = vadd.f32 0.0, %v298
  %v300 = vpop.f32.mrf.mxu0
  %v301 = vadd.f32 0.0, %v300
  %302 = vmatmul.bf16.gmra.mxu0 %v225
  %v303 = vpop.f32.mrf.mxu0
  %v304 = vadd.f32 0.0, %v303
  %v305 = vpop.f32.mrf.mxu0
  %v306 = vadd.f32 0.0, %v305
  %307 = vmatmul.bf16.gmra.mxu0 %v228
  %v308 = vpop.f32.mrf.mxu0
  %v309 = vadd.f32 0.0, %v308
  %v310 = vpop.f32.mrf.mxu0
  %v311 = vadd.f32 0.0, %v310
  %312 = vmatmul.bf16.gmra.mxu0 %v231
  %v313 = vpop.f32.mrf.mxu0
  %v314 = vadd.f32 0.0, %v313
  %v315 = vpop.f32.mrf.mxu0
  %v316 = vadd.f32 0.0, %v315
  %317 = vmatmul.bf16.gmra.mxu0 %v234
  %v318 = vpop.f32.mrf.mxu0
  %v319 = vadd.f32 0.0, %v318
  %v320 = vpop.f32.mrf.mxu0
  %v321 = vadd.f32 0.0, %v320
  %322 = vmatmul.bf16.gmra.mxu0 %v237
  %v323 = vpop.f32.mrf.mxu0
  %v324 = vadd.f32 0.0, %v323
  %v325 = vpop.f32.mrf.mxu0
  %v326 = vadd.f32 0.0, %v325
  %327 = vdwg.mxu0
  %v328 = vpack.c.bf16 %v249, %v249
  %v329 = vpack.c.bf16 %v251, %v251
  %v330 = vpack.c.bf16 %v254, %v254
  %v331 = vpack.c.bf16 %v256, %v256
  %v332 = vpack.c.bf16 %v259, %v259
  %v333 = vpack.c.bf16 %v261, %v261
  %v334 = vpack.c.bf16 %v264, %v264
  %v335 = vpack.c.bf16 %v266, %v266
  %v336 = vpack.c.bf16 %v269, %v269
  %v337 = vpack.c.bf16 %v271, %v271
  %v338 = vpack.c.bf16 %v274, %v274
  %v339 = vpack.c.bf16 %v276, %v276
  %v340 = vpack.c.bf16 %v279, %v279
  %v341 = vpack.c.bf16 %v281, %v281
  %v342 = vpack.c.bf16 %v284, %v284
  %v343 = vpack.c.bf16 %v286, %v286
  %v344 = vpack.c.bf16 %v289, %v289
  %v345 = vpack.c.bf16 %v291, %v291
  %v346 = vpack.c.bf16 %v294, %v294
  %v347 = vpack.c.bf16 %v296, %v296
  %v348 = vpack.c.bf16 %v299, %v299
  %v349 = vpack.c.bf16 %v301, %v301
  %v350 = vpack.c.bf16 %v304, %v304
  %v351 = vpack.c.bf16 %v306, %v306
  %v352 = vpack.c.bf16 %v309, %v309
  %v353 = vpack.c.bf16 %v311, %v311
  %v354 = vpack.c.bf16 %v314, %v314
  %v355 = vpack.c.bf16 %v316, %v316
  %v356 = vpack.c.bf16 %v319, %v319
  %v357 = vpack.c.bf16 %v321, %v321
  %v358 = vpack.c.bf16 %v324, %v324
  %v359 = vpack.c.bf16 %v326, %v326
  %v360 = vld [vmem:[%s5] sm:$0xff]
  %v361 = vld [vmem:[%s5 + $0x8] sm:$0xff]
  %v363 = vsel %vm190, %v249, 0
  %v366 = vsel %vm190, %v251, 0
  %v369 = vsel %vm190, %v254, 0
  %v372 = vsel %vm190, %v256, 0
  %v375 = vsel %vm190, %v259, 0
  %v378 = vsel %vm190, %v261, 0
  %v381 = vsel %vm190, %v264, 0
  %v384 = vsel %vm190, %v266, 0
  %v387 = vsel %vm190, %v269, 0
  %v390 = vsel %vm190, %v271, 0
  %v393 = vsel %vm190, %v274, 0
  %v396 = vsel %vm190, %v276, 0
  %v399 = vsel %vm190, %v279, 0
  %v402 = vsel %vm190, %v281, 0
  %v405 = vsel %vm190, %v284, 0
  %v408 = vsel %vm190, %v286, 0
  %v411 = vsel %vm190, %v289, 0
  %v414 = vsel %vm190, %v291, 0
  %v417 = vsel %vm190, %v294, 0
  %v420 = vsel %vm190, %v296, 0
  %v423 = vsel %vm190, %v299, 0
  %v426 = vsel %vm190, %v301, 0
  %v429 = vsel %vm190, %v304, 0
  %v432 = vsel %vm190, %v306, 0
  %v435 = vsel %vm190, %v309, 0
  %v438 = vsel %vm190, %v311, 0
  %v441 = vsel %vm190, %v314, 0
  %v444 = vsel %vm190, %v316, 0
  %v447 = vsel %vm190, %v319, 0
  %v450 = vsel %vm190, %v321, 0
  %v453 = vsel %vm190, %v324, 0
  %v456 = vsel %vm190, %v326, 0
  %458 = vmatpush.msra.mxu0 0.0
  %459 = vmatpush.msra.mxu0 0.0
  %460 = vmatpush.msra.mxu0 0.0
  %461 = vmatpush.msra.mxu0 0.0
  %462 = vmatpush.msra.mxu0 0.0
  %463 = vmatpush.msra.mxu0 0.0
  %464 = vmatpush.msra.mxu0 0.0
  %465 = vmatpush.msra.mxu0 0.0
  %466 = vmatpush.msra.mxu0 0.0
  %467 = vmatpush.msra.mxu0 0.0
  %468 = vmatpush.msra.mxu0 0.0
  %469 = vmatpush.msra.mxu0 0.0
  %470 = vmatpush.msra.mxu0 0.0
  %471 = vmatpush.msra.mxu0 0.0
  %472 = vmatpush.msra.mxu0 %v361
  %473 = vmatpush.msra.mxu0 %v360
  %474 = vmatmul.f32.gmra.mxu0 %v363
  %v475 = vpop.f32.mrf.mxu0
  %v476 = vadd.f32 0.0, %v475
  %477 = vmatmul.f32.gmra.mxu0 %v366
  %v478 = vpop.f32.mrf.mxu0
  %v479 = vadd.f32 0.0, %v478
  %480 = vmatmul.f32.gmra.mxu0 %v369
  %v481 = vpop.f32.mrf.mxu0
  %v482 = vadd.f32 0.0, %v481
  %483 = vmatmul.f32.gmra.mxu0 %v372
  %v484 = vpop.f32.mrf.mxu0
  %v485 = vadd.f32 0.0, %v484
  %486 = vmatmul.f32.gmra.mxu0 %v375
  %v487 = vpop.f32.mrf.mxu0
  %v488 = vadd.f32 0.0, %v487
  %489 = vmatmul.f32.gmra.mxu0 %v378
  %v490 = vpop.f32.mrf.mxu0
  %v491 = vadd.f32 0.0, %v490
  %492 = vmatmul.f32.gmra.mxu0 %v381
  %v493 = vpop.f32.mrf.mxu0
  %v494 = vadd.f32 0.0, %v493
  %495 = vmatmul.f32.gmra.mxu0 %v384
  %v496 = vpop.f32.mrf.mxu0
  %v497 = vadd.f32 0.0, %v496
  %498 = vmatmul.f32.gmra.mxu0 %v387
  %v499 = vpop.f32.mrf.mxu0
  %v500 = vadd.f32 0.0, %v499
  %501 = vmatmul.f32.gmra.mxu0 %v390
  %v502 = vpop.f32.mrf.mxu0
  %v503 = vadd.f32 0.0, %v502
  %504 = vmatmul.f32.gmra.mxu0 %v393
  %v505 = vpop.f32.mrf.mxu0
  %v506 = vadd.f32 0.0, %v505
  %507 = vmatmul.f32.gmra.mxu0 %v396
  %v508 = vpop.f32.mrf.mxu0
  %v509 = vadd.f32 0.0, %v508
  %510 = vmatmul.f32.gmra.mxu0 %v399
  %v511 = vpop.f32.mrf.mxu0
  %v512 = vadd.f32 0.0, %v511
  %513 = vmatmul.f32.gmra.mxu0 %v402
  %v514 = vpop.f32.mrf.mxu0
  %v515 = vadd.f32 0.0, %v514
  %516 = vmatmul.f32.gmra.mxu0 %v405
  %v517 = vpop.f32.mrf.mxu0
  %v518 = vadd.f32 0.0, %v517
  %519 = vmatmul.f32.gmra.mxu0 %v408
  %v520 = vpop.f32.mrf.mxu0
  %v521 = vadd.f32 0.0, %v520
  %522 = vmatmul.f32.gmra.mxu0 %v411
  %v523 = vpop.f32.mrf.mxu0
  %v524 = vadd.f32 0.0, %v523
  %525 = vmatmul.f32.gmra.mxu0 %v414
  %v526 = vpop.f32.mrf.mxu0
  %v527 = vadd.f32 0.0, %v526
  %528 = vmatmul.f32.gmra.mxu0 %v417
  %v529 = vpop.f32.mrf.mxu0
  %v530 = vadd.f32 0.0, %v529
  %531 = vmatmul.f32.gmra.mxu0 %v420
  %v532 = vpop.f32.mrf.mxu0
  %v533 = vadd.f32 0.0, %v532
  %534 = vmatmul.f32.gmra.mxu0 %v423
  %v535 = vpop.f32.mrf.mxu0
  %v536 = vadd.f32 0.0, %v535
  %537 = vmatmul.f32.gmra.mxu0 %v426
  %v538 = vpop.f32.mrf.mxu0
  %v539 = vadd.f32 0.0, %v538
  %540 = vmatmul.f32.gmra.mxu0 %v429
  %v541 = vpop.f32.mrf.mxu0
  %v542 = vadd.f32 0.0, %v541
  %543 = vmatmul.f32.gmra.mxu0 %v432
  %v544 = vpop.f32.mrf.mxu0
  %v545 = vadd.f32 0.0, %v544
  %546 = vmatmul.f32.gmra.mxu0 %v435
  %v547 = vpop.f32.mrf.mxu0
  %v548 = vadd.f32 0.0, %v547
  %549 = vmatmul.f32.gmra.mxu0 %v438
  %v550 = vpop.f32.mrf.mxu0
  %v551 = vadd.f32 0.0, %v550
  %552 = vmatmul.f32.gmra.mxu0 %v441
  %v553 = vpop.f32.mrf.mxu0
  %v554 = vadd.f32 0.0, %v553
  %555 = vmatmul.f32.gmra.mxu0 %v444
  %v556 = vpop.f32.mrf.mxu0
  %v557 = vadd.f32 0.0, %v556
  %558 = vmatmul.f32.gmra.mxu0 %v447
  %v559 = vpop.f32.mrf.mxu0
  %v560 = vadd.f32 0.0, %v559
  %561 = vmatmul.f32.gmra.mxu0 %v450
  %v562 = vpop.f32.mrf.mxu0
  %v563 = vadd.f32 0.0, %v562
  %564 = vmatmul.f32.gmra.mxu0 %v453
  %v565 = vpop.f32.mrf.mxu0
  %v566 = vadd.f32 0.0, %v565
  %567 = vmatmul.f32.gmra.mxu0 %v456
  %v568 = vpop.f32.mrf.mxu0
  %v569 = vadd.f32 0.0, %v568
  %570 = vdwg.mxu0
  %571 = vxpose.xlu0.b32.start [1/16] %v476, 128
  %572 = vxpose.xlu0.b32.cont [2/16] %v479, 128
  %573 = vxpose.xlu0.b32.cont [3/16] %v482, 128
  %574 = vxpose.xlu0.b32.cont [4/16] %v485, 128
  %575 = vxpose.xlu0.b32.cont [5/16] %v488, 128
  %576 = vxpose.xlu0.b32.cont [6/16] %v491, 128
  %577 = vxpose.xlu0.b32.cont [7/16] %v494, 128
  %578 = vxpose.xlu0.b32.cont [8/16] %v497, 128
  %579 = vxpose.xlu0.b32.cont [9/16] %v500, 128
  %580 = vxpose.xlu0.b32.cont [10/16] %v503, 128
  %581 = vxpose.xlu0.b32.cont [11/16] %v506, 128
  %582 = vxpose.xlu0.b32.cont [12/16] %v509, 128
  %583 = vxpose.xlu0.b32.cont [13/16] %v512, 128
  %584 = vxpose.xlu0.b32.cont [14/16] %v515, 128
  %585 = vxpose.xlu0.b32.cont [15/16] %v518, 128
  %586 = vxpose.xlu0.b32.end [16/16] %v521, 128
  %v587 = vpop.trf.xlu0
  %v588 = vpop.trf.xlu0
  %v589 = vpop.trf.xlu0
  %v590 = vpop.trf.xlu0
  %v591 = vpop.trf.xlu0
  %v592 = vpop.trf.xlu0
  %v593 = vpop.trf.xlu0
  %v594 = vpop.trf.xlu0
  %v595 = vpop.trf.xlu0
  %v596 = vpop.trf.xlu0
  %v597 = vpop.trf.xlu0
  %v598 = vpop.trf.xlu0
  %v599 = vpop.trf.xlu0
  %v600 = vpop.trf.xlu0
  %v601 = vpop.trf.xlu0
  %v602 = vpop.trf.xlu0
  %603 = vxpose.xlu0.b32.start [1/16] %v524, 128
  %604 = vxpose.xlu0.b32.cont [2/16] %v527, 128
  %605 = vxpose.xlu0.b32.cont [3/16] %v530, 128
  %606 = vxpose.xlu0.b32.cont [4/16] %v533, 128
  %607 = vxpose.xlu0.b32.cont [5/16] %v536, 128
  %608 = vxpose.xlu0.b32.cont [6/16] %v539, 128
  %609 = vxpose.xlu0.b32.cont [7/16] %v542, 128
  %610 = vxpose.xlu0.b32.cont [8/16] %v545, 128
  %611 = vxpose.xlu0.b32.cont [9/16] %v548, 128
  %612 = vxpose.xlu0.b32.cont [10/16] %v551, 128
  %613 = vxpose.xlu0.b32.cont [11/16] %v554, 128
  %614 = vxpose.xlu0.b32.cont [12/16] %v557, 128
  %615 = vxpose.xlu0.b32.cont [13/16] %v560, 128
  %616 = vxpose.xlu0.b32.cont [14/16] %v563, 128
  %617 = vxpose.xlu0.b32.cont [15/16] %v566, 128
  %618 = vxpose.xlu0.b32.end [16/16] %v569, 128
  %v619 = vpop.trf.xlu0
  %v620 = vpop.trf.xlu0
  %v621 = vpop.trf.xlu0
  %v622 = vpop.trf.xlu0
  %v623 = vpop.trf.xlu0
  %v624 = vpop.trf.xlu0
  %v625 = vpop.trf.xlu0
  %v626 = vpop.trf.xlu0
  %v627 = vpop.trf.xlu0
  %v628 = vpop.trf.xlu0
  %v629 = vpop.trf.xlu0
  %v630 = vpop.trf.xlu0
  %v631 = vpop.trf.xlu0
  %v632 = vpop.trf.xlu0
  %v633 = vpop.trf.xlu0
  %v634 = vpop.trf.xlu0
  %v635 = vld [vmem:[%s6] sm:$0xff]
  %v636 = vld [vmem:[%s6 + $0x8] sm:$0xff]
  %637 = vrot.lane.b32.xlu0 %v249, 112
  %v638 = vpop.permute.xlu0 %637
  %639 = vrot.lane.b32.xlu0 %v251, 112
  %v640 = vpop.permute.xlu0 %639
  %641 = vrot.lane.b32.xlu0 %v254, 112
  %v642 = vpop.permute.xlu0 %641
  %643 = vrot.lane.b32.xlu0 %v256, 112
  %v644 = vpop.permute.xlu0 %643
  %645 = vrot.lane.b32.xlu0 %v259, 112
  %v646 = vpop.permute.xlu0 %645
  %647 = vrot.lane.b32.xlu0 %v261, 112
  %v648 = vpop.permute.xlu0 %647
  %649 = vrot.lane.b32.xlu0 %v264, 112
  %v650 = vpop.permute.xlu0 %649
  %651 = vrot.lane.b32.xlu0 %v266, 112
  %v652 = vpop.permute.xlu0 %651
  %653 = vrot.lane.b32.xlu0 %v269, 112
  %v654 = vpop.permute.xlu0 %653
  %655 = vrot.lane.b32.xlu0 %v271, 112
  %v656 = vpop.permute.xlu0 %655
  %657 = vrot.lane.b32.xlu0 %v274, 112
  %v658 = vpop.permute.xlu0 %657
  %659 = vrot.lane.b32.xlu0 %v276, 112
  %v660 = vpop.permute.xlu0 %659
  %661 = vrot.lane.b32.xlu0 %v279, 112
  %v662 = vpop.permute.xlu0 %661
  %663 = vrot.lane.b32.xlu0 %v281, 112
  %v664 = vpop.permute.xlu0 %663
  %665 = vrot.lane.b32.xlu0 %v284, 112
  %v666 = vpop.permute.xlu0 %665
  %667 = vrot.lane.b32.xlu0 %v286, 112
  %v668 = vpop.permute.xlu0 %667
  %v669 = vsel %vm190, %v638, 0
  %v671 = vsel %vm190, %v640, 0
  %v673 = vsel %vm190, %v642, 0
  %v675 = vsel %vm190, %v644, 0
  %v677 = vsel %vm190, %v646, 0
  %v679 = vsel %vm190, %v648, 0
  %v681 = vsel %vm190, %v650, 0
  %v683 = vsel %vm190, %v652, 0
  %v685 = vsel %vm190, %v654, 0
  %v687 = vsel %vm190, %v656, 0
  %v689 = vsel %vm190, %v658, 0
  %v691 = vsel %vm190, %v660, 0
  %v693 = vsel %vm190, %v662, 0
  %v695 = vsel %vm190, %v664, 0
  %v697 = vsel %vm190, %v666, 0
  %v699 = vsel %vm190, %v668, 0
  %701 = vmatpush.msra.mxu0 0.0
  %702 = vmatpush.msra.mxu0 0.0
  %703 = vmatpush.msra.mxu0 0.0
  %704 = vmatpush.msra.mxu0 0.0
  %705 = vmatpush.msra.mxu0 0.0
  %706 = vmatpush.msra.mxu0 0.0
  %707 = vmatpush.msra.mxu0 0.0
  %708 = vmatpush.msra.mxu0 0.0
  %709 = vmatpush.msra.mxu0 0.0
  %710 = vmatpush.msra.mxu0 0.0
  %711 = vmatpush.msra.mxu0 0.0
  %712 = vmatpush.msra.mxu0 0.0
  %713 = vmatpush.msra.mxu0 0.0
  %714 = vmatpush.msra.mxu0 0.0
  %715 = vmatpush.msra.mxu0 %v636
  %716 = vmatpush.msra.mxu0 %v635
  %717 = vmatmul.f32.gmra.mxu0 %v669
  %v718 = vpop.f32.mrf.mxu0
  %v719 = vadd.f32 0.0, %v718
  %720 = vmatmul.f32.gmra.mxu0 %v671
  %v721 = vpop.f32.mrf.mxu0
  %v722 = vadd.f32 0.0, %v721
  %723 = vmatmul.f32.gmra.mxu0 %v673
  %v724 = vpop.f32.mrf.mxu0
  %v725 = vadd.f32 0.0, %v724
  %726 = vmatmul.f32.gmra.mxu0 %v675
  %v727 = vpop.f32.mrf.mxu0
  %v728 = vadd.f32 0.0, %v727
  %729 = vmatmul.f32.gmra.mxu0 %v677
  %v730 = vpop.f32.mrf.mxu0
  %v731 = vadd.f32 0.0, %v730
  %732 = vmatmul.f32.gmra.mxu0 %v679
  %v733 = vpop.f32.mrf.mxu0
  %v734 = vadd.f32 0.0, %v733
  %735 = vmatmul.f32.gmra.mxu0 %v681
  %v736 = vpop.f32.mrf.mxu0
  %v737 = vadd.f32 0.0, %v736
  %738 = vmatmul.f32.gmra.mxu0 %v683
  %v739 = vpop.f32.mrf.mxu0
  %v740 = vadd.f32 0.0, %v739
  %741 = vmatmul.f32.gmra.mxu0 %v685
  %v742 = vpop.f32.mrf.mxu0
  %v743 = vadd.f32 0.0, %v742
  %744 = vmatmul.f32.gmra.mxu0 %v687
  %v745 = vpop.f32.mrf.mxu0
  %v746 = vadd.f32 0.0, %v745
  %747 = vmatmul.f32.gmra.mxu0 %v689
  %v748 = vpop.f32.mrf.mxu0
  %v749 = vadd.f32 0.0, %v748
  %750 = vmatmul.f32.gmra.mxu0 %v691
  %v751 = vpop.f32.mrf.mxu0
  %v752 = vadd.f32 0.0, %v751
  %753 = vmatmul.f32.gmra.mxu0 %v693
  %v754 = vpop.f32.mrf.mxu0
  %v755 = vadd.f32 0.0, %v754
  %756 = vmatmul.f32.gmra.mxu0 %v695
  %v757 = vpop.f32.mrf.mxu0
  %v758 = vadd.f32 0.0, %v757
  %759 = vmatmul.f32.gmra.mxu0 %v697
  %v760 = vpop.f32.mrf.mxu0
  %v761 = vadd.f32 0.0, %v760
  %762 = vmatmul.f32.gmra.mxu0 %v699
  %v763 = vpop.f32.mrf.mxu0
  %v764 = vadd.f32 0.0, %v763
  %765 = vdwg.mxu0
  %v766 = vunpack.c.l.bf16 %v86
  %v767 = vunpack.c.h.bf16 %v86
  %v768 = vunpack.c.l.bf16 %v87
  %v769 = vunpack.c.h.bf16 %v87
  %v770 = vunpack.c.l.bf16 %v88
  %v771 = vunpack.c.h.bf16 %v88
  %v772 = vunpack.c.l.bf16 %v89
  %v773 = vunpack.c.h.bf16 %v89
  %v774 = vunpack.c.l.bf16 %v90
  %v775 = vunpack.c.h.bf16 %v90
  %v776 = vunpack.c.l.bf16 %v91
  %v777 = vunpack.c.h.bf16 %v91
  %v778 = vunpack.c.l.bf16 %v92
  %v779 = vunpack.c.h.bf16 %v92
  %v780 = vunpack.c.l.bf16 %v93
  %v781 = vunpack.c.h.bf16 %v93
  %v782 = vunpack.c.l.bf16 %v94
  %v783 = vunpack.c.h.bf16 %v94
  %v784 = vunpack.c.l.bf16 %v95
  %v785 = vunpack.c.h.bf16 %v95
  %v786 = vunpack.c.l.bf16 %v96
  %v787 = vunpack.c.h.bf16 %v96
  %v788 = vunpack.c.l.bf16 %v97
  %v789 = vunpack.c.h.bf16 %v97
  %v790 = vunpack.c.l.bf16 %v98
  %v791 = vunpack.c.h.bf16 %v98
  %v792 = vunpack.c.l.bf16 %v99
  %v793 = vunpack.c.h.bf16 %v99
  %v794 = vunpack.c.l.bf16 %v100
  %v795 = vunpack.c.h.bf16 %v100
  %v796 = vunpack.c.l.bf16 %v101
  %v797 = vunpack.c.h.bf16 %v101
  %vm798 = vcmp.gt.f32.partialorder %v766, 0.0
  %vm799 = vcmp.gt.f32.partialorder %v767, 0.0
  %vm800 = vcmp.gt.f32.partialorder %v768, 0.0
  %vm801 = vcmp.gt.f32.partialorder %v769, 0.0
  %vm802 = vcmp.gt.f32.partialorder %v770, 0.0
  %vm803 = vcmp.gt.f32.partialorder %v771, 0.0
  %vm804 = vcmp.gt.f32.partialorder %v772, 0.0
  %vm805 = vcmp.gt.f32.partialorder %v773, 0.0
  %vm806 = vcmp.gt.f32.partialorder %v774, 0.0
  %vm807 = vcmp.gt.f32.partialorder %v775, 0.0
  %vm808 = vcmp.gt.f32.partialorder %v776, 0.0
  %vm809 = vcmp.gt.f32.partialorder %v777, 0.0
  %vm810 = vcmp.gt.f32.partialorder %v778, 0.0
  %vm811 = vcmp.gt.f32.partialorder %v779, 0.0
  %vm812 = vcmp.gt.f32.partialorder %v780, 0.0
  %vm813 = vcmp.gt.f32.partialorder %v781, 0.0
  %vm814 = vcmp.gt.f32.partialorder %v782, 0.0
  %vm815 = vcmp.gt.f32.partialorder %v783, 0.0
  %vm816 = vcmp.gt.f32.partialorder %v784, 0.0
  %vm817 = vcmp.gt.f32.partialorder %v785, 0.0
  %vm818 = vcmp.gt.f32.partialorder %v786, 0.0
  %vm819 = vcmp.gt.f32.partialorder %v787, 0.0
  %vm820 = vcmp.gt.f32.partialorder %v788, 0.0
  %vm821 = vcmp.gt.f32.partialorder %v789, 0.0
  %vm822 = vcmp.gt.f32.partialorder %v790, 0.0
  %vm823 = vcmp.gt.f32.partialorder %v791, 0.0
  %vm824 = vcmp.gt.f32.partialorder %v792, 0.0
  %vm825 = vcmp.gt.f32.partialorder %v793, 0.0
  %vm826 = vcmp.gt.f32.partialorder %v794, 0.0
  %vm827 = vcmp.gt.f32.partialorder %v795, 0.0
  %vm828 = vcmp.gt.f32.partialorder %v796, 0.0
  %vm829 = vcmp.gt.f32.partialorder %v797, 0.0
  %v830 = vld [vmem:[%s7] sm:$0x1]
  %832 = vset.pattern.permute.xlu0 0
  %833 = vperm.xlu0 %832, %v719
  %v834 = vpop.permute.xlu0 %833
  %837 = vset.pattern.permute.xlu0 0
  %838 = vperm.xlu0 %837, %v722
  %v839 = vpop.permute.xlu0 %838
  %842 = vset.pattern.permute.xlu0 0
  %843 = vperm.xlu0 %842, %v725
  %v844 = vpop.permute.xlu0 %843
  %847 = vset.pattern.permute.xlu0 0
  %848 = vperm.xlu0 %847, %v728
  %v849 = vpop.permute.xlu0 %848
  %852 = vset.pattern.permute.xlu0 0
  %853 = vperm.xlu0 %852, %v731
  %v854 = vpop.permute.xlu0 %853
  %857 = vset.pattern.permute.xlu0 0
  %858 = vperm.xlu0 %857, %v734
  %v859 = vpop.permute.xlu0 %858
  %862 = vset.pattern.permute.xlu0 0
  %863 = vperm.xlu0 %862, %v737
  %v864 = vpop.permute.xlu0 %863
  %867 = vset.pattern.permute.xlu0 0
  %868 = vperm.xlu0 %867, %v740
  %v869 = vpop.permute.xlu0 %868
  %872 = vset.pattern.permute.xlu0 0
  %873 = vperm.xlu0 %872, %v743
  %v874 = vpop.permute.xlu0 %873
  %877 = vset.pattern.permute.xlu0 0
  %878 = vperm.xlu0 %877, %v746
  %v879 = vpop.permute.xlu0 %878
  %882 = vset.pattern.permute.xlu0 0
  %883 = vperm.xlu0 %882, %v749
  %v884 = vpop.permute.xlu0 %883
  %887 = vset.pattern.permute.xlu0 0
  %888 = vperm.xlu0 %887, %v752
  %v889 = vpop.permute.xlu0 %888
  %892 = vset.pattern.permute.xlu0 0
  %893 = vperm.xlu0 %892, %v755
  %v894 = vpop.permute.xlu0 %893
  %897 = vset.pattern.permute.xlu0 0
  %898 = vperm.xlu0 %897, %v758
  %v899 = vpop.permute.xlu0 %898
  %902 = vset.pattern.permute.xlu0 0
  %903 = vperm.xlu0 %902, %v761
  %v904 = vpop.permute.xlu0 %903
  %907 = vset.pattern.permute.xlu0 0
  %908 = vperm.xlu0 %907, %v764
  %v909 = vpop.permute.xlu0 %908
  %v911 = vperm.slane %v587, 0
  %v912 = vperm.slane %v619, 0
  %v913 = vadd.f32 %v834, %v911
  %v914 = vadd.f32 %v834, %v912
  %v915 = vadd.f32 %v839, %v911
  %v916 = vadd.f32 %v839, %v912
  %v917 = vadd.f32 %v844, %v911
  %v918 = vadd.f32 %v844, %v912
  %v919 = vadd.f32 %v849, %v911
  %v920 = vadd.f32 %v849, %v912
  %v921 = vadd.f32 %v854, %v911
  %v922 = vadd.f32 %v854, %v912
  %v923 = vadd.f32 %v859, %v911
  %v924 = vadd.f32 %v859, %v912
  %v925 = vadd.f32 %v864, %v911
  %v926 = vadd.f32 %v864, %v912
  %v927 = vadd.f32 %v869, %v911
  %v928 = vadd.f32 %v869, %v912
  %v929 = vadd.f32 %v874, %v911
  %v930 = vadd.f32 %v874, %v912
  %v931 = vadd.f32 %v879, %v911
  %v932 = vadd.f32 %v879, %v912
  %v933 = vadd.f32 %v884, %v911
  %v934 = vadd.f32 %v884, %v912
  %v935 = vadd.f32 %v889, %v911
  %v936 = vadd.f32 %v889, %v912
  %v937 = vadd.f32 %v894, %v911
  %v938 = vadd.f32 %v894, %v912
  %v939 = vadd.f32 %v899, %v911
  %v940 = vadd.f32 %v899, %v912
  %v941 = vadd.f32 %v904, %v911
  %v942 = vadd.f32 %v904, %v912
  %v943 = vadd.f32 %v909, %v911
  %v944 = vadd.f32 %v909, %v912
  %v945 = vmul.f32 %v913, 0.2
  %v946 = vmul.f32 %v914, 0.2
  %v947 = vmul.f32 %v915, 0.2
  %v948 = vmul.f32 %v916, 0.2
  %v949 = vmul.f32 %v917, 0.2
  %v950 = vmul.f32 %v918, 0.2
  %v951 = vmul.f32 %v919, 0.2
  %v952 = vmul.f32 %v920, 0.2
  %v953 = vmul.f32 %v921, 0.2
  %v954 = vmul.f32 %v922, 0.2
  %v955 = vmul.f32 %v923, 0.2
  %v956 = vmul.f32 %v924, 0.2
  %v957 = vmul.f32 %v925, 0.2
  %v958 = vmul.f32 %v926, 0.2
  %v959 = vmul.f32 %v927, 0.2
  %v960 = vmul.f32 %v928, 0.2
  %v961 = vmul.f32 %v929, 0.2
  %v962 = vmul.f32 %v930, 0.2
  %v963 = vmul.f32 %v931, 0.2
  %v964 = vmul.f32 %v932, 0.2
  %v965 = vmul.f32 %v933, 0.2
  %v966 = vmul.f32 %v934, 0.2
  %v967 = vmul.f32 %v935, 0.2
  %v968 = vmul.f32 %v936, 0.2
  %v969 = vmul.f32 %v937, 0.2
  %v970 = vmul.f32 %v938, 0.2
  %v971 = vmul.f32 %v939, 0.2
  %v972 = vmul.f32 %v940, 0.2
  %v973 = vmul.f32 %v941, 0.2
  %v974 = vmul.f32 %v942, 0.2
  %v975 = vmul.f32 %v943, 0.2
  %v976 = vmul.f32 %v944, 0.2
  %v977 = vmax.f32 %v913, %v945
  %v978 = vmax.f32 %v914, %v946
  %v979 = vmax.f32 %v915, %v947
  %v980 = vmax.f32 %v916, %v948
  %v981 = vmax.f32 %v917, %v949
  %v982 = vmax.f32 %v918, %v950
  %v983 = vmax.f32 %v919, %v951
  %v984 = vmax.f32 %v920, %v952
  %v985 = vmax.f32 %v921, %v953
  %v986 = vmax.f32 %v922, %v954
  %v987 = vmax.f32 %v923, %v955
  %v988 = vmax.f32 %v924, %v956
  %v989 = vmax.f32 %v925, %v957
  %v990 = vmax.f32 %v926, %v958
  %v991 = vmax.f32 %v927, %v959
  %v992 = vmax.f32 %v928, %v960
  %v993 = vmax.f32 %v929, %v961
  %v994 = vmax.f32 %v930, %v962
  %v995 = vmax.f32 %v931, %v963
  %v996 = vmax.f32 %v932, %v964
  %v997 = vmax.f32 %v933, %v965
  %v998 = vmax.f32 %v934, %v966
  %v999 = vmax.f32 %v935, %v967
  %v1000 = vmax.f32 %v936, %v968
  %v1001 = vmax.f32 %v937, %v969
  %v1002 = vmax.f32 %v938, %v970
  %v1003 = vmax.f32 %v939, %v971
  %v1004 = vmax.f32 %v940, %v972
  %v1005 = vmax.f32 %v941, %v973
  %v1006 = vmax.f32 %v942, %v974
  %v1007 = vmax.f32 %v943, %v975
  %v1008 = vmax.f32 %v944, %v976
  %v1009 = vsel %vm798, %v977, -2e+30
  %v1010 = vsel %vm799, %v978, -2e+30
  %v1011 = vsel %vm800, %v979, -2e+30
  %v1012 = vsel %vm801, %v980, -2e+30
  %v1013 = vsel %vm802, %v981, -2e+30
  %v1014 = vsel %vm803, %v982, -2e+30
  %v1015 = vsel %vm804, %v983, -2e+30
  %v1016 = vsel %vm805, %v984, -2e+30
  %v1017 = vsel %vm806, %v985, -2e+30
  %v1018 = vsel %vm807, %v986, -2e+30
  %v1019 = vsel %vm808, %v987, -2e+30
  %v1020 = vsel %vm809, %v988, -2e+30
  %v1021 = vsel %vm810, %v989, -2e+30
  %v1022 = vsel %vm811, %v990, -2e+30
  %v1023 = vsel %vm812, %v991, -2e+30
  %v1024 = vsel %vm813, %v992, -2e+30
  %v1025 = vsel %vm814, %v993, -2e+30
  %v1026 = vsel %vm815, %v994, -2e+30
  %v1027 = vsel %vm816, %v995, -2e+30
  %v1028 = vsel %vm817, %v996, -2e+30
  %v1029 = vsel %vm818, %v997, -2e+30
  %v1030 = vsel %vm819, %v998, -2e+30
  %v1031 = vsel %vm820, %v999, -2e+30
  %v1032 = vsel %vm821, %v1000, -2e+30
  %v1033 = vsel %vm822, %v1001, -2e+30
  %v1034 = vsel %vm823, %v1002, -2e+30
  %v1035 = vsel %vm824, %v1003, -2e+30
  %v1036 = vsel %vm825, %v1004, -2e+30
  %v1037 = vsel %vm826, %v1005, -2e+30
  %v1038 = vsel %vm827, %v1006, -2e+30
  %v1039 = vsel %vm828, %v1007, -2e+30
  %v1040 = vsel %vm829, %v1008, -2e+30
  %v1041 = vmax.f32 %v1009, %v1010
  %1042 = vmax.xlane.f32.xlu0 %v1041
  %v1043 = vpop.xlane.xlu0 %1042
  %v1044 = vmax.f32 %v1011, %v1012
  %1045 = vmax.xlane.f32.xlu0 %v1044
  %v1046 = vpop.xlane.xlu0 %1045
  %v1047 = vmax.f32 %v1013, %v1014
  %1048 = vmax.xlane.f32.xlu0 %v1047
  %v1049 = vpop.xlane.xlu0 %1048
  %v1050 = vmax.f32 %v1015, %v1016
  %1051 = vmax.xlane.f32.xlu0 %v1050
  %v1052 = vpop.xlane.xlu0 %1051
  %v1053 = vmax.f32 %v1017, %v1018
  %1054 = vmax.xlane.f32.xlu0 %v1053
  %v1055 = vpop.xlane.xlu0 %1054
  %v1056 = vmax.f32 %v1019, %v1020
  %1057 = vmax.xlane.f32.xlu0 %v1056
  %v1058 = vpop.xlane.xlu0 %1057
  %v1059 = vmax.f32 %v1021, %v1022
  %1060 = vmax.xlane.f32.xlu0 %v1059
  %v1061 = vpop.xlane.xlu0 %1060
  %v1062 = vmax.f32 %v1023, %v1024
  %1063 = vmax.xlane.f32.xlu0 %v1062
  %v1064 = vpop.xlane.xlu0 %1063
  %v1065 = vmax.f32 %v1025, %v1026
  %1066 = vmax.xlane.f32.xlu0 %v1065
  %v1067 = vpop.xlane.xlu0 %1066
  %v1068 = vmax.f32 %v1027, %v1028
  %1069 = vmax.xlane.f32.xlu0 %v1068
  %v1070 = vpop.xlane.xlu0 %1069
  %v1071 = vmax.f32 %v1029, %v1030
  %1072 = vmax.xlane.f32.xlu0 %v1071
  %v1073 = vpop.xlane.xlu0 %1072
  %v1074 = vmax.f32 %v1031, %v1032
  %1075 = vmax.xlane.f32.xlu0 %v1074
  %v1076 = vpop.xlane.xlu0 %1075
  %v1077 = vmax.f32 %v1033, %v1034
  %1078 = vmax.xlane.f32.xlu0 %v1077
  %v1079 = vpop.xlane.xlu0 %1078
  %v1080 = vmax.f32 %v1035, %v1036
  %1081 = vmax.xlane.f32.xlu0 %v1080
  %v1082 = vpop.xlane.xlu0 %1081
  %v1083 = vmax.f32 %v1037, %v1038
  %1084 = vmax.xlane.f32.xlu0 %v1083
  %v1085 = vpop.xlane.xlu0 %1084
  %v1086 = vmax.f32 %v1039, %v1040
  %1087 = vmax.xlane.f32.xlu0 %v1086
  %v1088 = vpop.xlane.xlu0 %1087
  %v1089 = vsub.f32 %v1009, %v1043
  %v1090 = vsub.f32 %v1010, %v1043
  %v1091 = vsub.f32 %v1011, %v1046
  %v1092 = vsub.f32 %v1012, %v1046
  %v1093 = vsub.f32 %v1013, %v1049
  %v1094 = vsub.f32 %v1014, %v1049
  %v1095 = vsub.f32 %v1015, %v1052
  %v1096 = vsub.f32 %v1016, %v1052
  %v1097 = vsub.f32 %v1017, %v1055
  %v1098 = vsub.f32 %v1018, %v1055
  %v1099 = vsub.f32 %v1019, %v1058
  %v1100 = vsub.f32 %v1020, %v1058
  %v1101 = vsub.f32 %v1021, %v1061
  %v1102 = vsub.f32 %v1022, %v1061
  %v1103 = vsub.f32 %v1023, %v1064
  %v1104 = vsub.f32 %v1024, %v1064
  %v1105 = vsub.f32 %v1025, %v1067
  %v1106 = vsub.f32 %v1026, %v1067
  %v1107 = vsub.f32 %v1027, %v1070
  %v1108 = vsub.f32 %v1028, %v1070
  %v1109 = vsub.f32 %v1029, %v1073
  %v1110 = vsub.f32 %v1030, %v1073
  %v1111 = vsub.f32 %v1031, %v1076
  %v1112 = vsub.f32 %v1032, %v1076
  %v1113 = vsub.f32 %v1033, %v1079
  %v1114 = vsub.f32 %v1034, %v1079
  %v1115 = vsub.f32 %v1035, %v1082
  %v1116 = vsub.f32 %v1036, %v1082
  %v1117 = vsub.f32 %v1037, %v1085
  %v1118 = vsub.f32 %v1038, %v1085
  %v1119 = vsub.f32 %v1039, %v1088
  %v1120 = vsub.f32 %v1040, %v1088
  %v1121 = vmul.f32 %v1089, 1.442695
  %v1122 = vpow.pop %v1121
  %v1123 = vmul.f32 %v1090, 1.442695
  %v1124 = vpow.pop %v1123
  %v1125 = vmul.f32 %v1091, 1.442695
  %v1126 = vpow.pop %v1125
  %v1127 = vmul.f32 %v1092, 1.442695
  %v1128 = vpow.pop %v1127
  %v1129 = vmul.f32 %v1093, 1.442695
  %v1130 = vpow.pop %v1129
  %v1131 = vmul.f32 %v1094, 1.442695
  %v1132 = vpow.pop %v1131
  %v1133 = vmul.f32 %v1095, 1.442695
  %v1134 = vpow.pop %v1133
  %v1135 = vmul.f32 %v1096, 1.442695
  %v1136 = vpow.pop %v1135
  %v1137 = vmul.f32 %v1097, 1.442695
  %v1138 = vpow.pop %v1137
  %v1139 = vmul.f32 %v1098, 1.442695
  %v1140 = vpow.pop %v1139
  %v1141 = vmul.f32 %v1099, 1.442695
  %v1142 = vpow.pop %v1141
  %v1143 = vmul.f32 %v1100, 1.442695
  %v1144 = vpow.pop %v1143
  %v1145 = vmul.f32 %v1101, 1.442695
  %v1146 = vpow.pop %v1145
  %v1147 = vmul.f32 %v1102, 1.442695
  %v1148 = vpow.pop %v1147
  %v1149 = vmul.f32 %v1103, 1.442695
  %v1150 = vpow.pop %v1149
  %v1151 = vmul.f32 %v1104, 1.442695
  %v1152 = vpow.pop %v1151
  %v1153 = vmul.f32 %v1105, 1.442695
  %v1154 = vpow.pop %v1153
  %v1155 = vmul.f32 %v1106, 1.442695
  %v1156 = vpow.pop %v1155
  %v1157 = vmul.f32 %v1107, 1.442695
  %v1158 = vpow.pop %v1157
  %v1159 = vmul.f32 %v1108, 1.442695
  %v1160 = vpow.pop %v1159
  %v1161 = vmul.f32 %v1109, 1.442695
  %v1162 = vpow.pop %v1161
  %v1163 = vmul.f32 %v1110, 1.442695
  %v1164 = vpow.pop %v1163
  %v1165 = vmul.f32 %v1111, 1.442695
  %v1166 = vpow.pop %v1165
  %v1167 = vmul.f32 %v1112, 1.442695
  %v1168 = vpow.pop %v1167
  %v1169 = vmul.f32 %v1113, 1.442695
  %v1170 = vpow.pop %v1169
  %v1171 = vmul.f32 %v1114, 1.442695
  %v1172 = vpow.pop %v1171
  %v1173 = vmul.f32 %v1115, 1.442695
  %v1174 = vpow.pop %v1173
  %v1175 = vmul.f32 %v1116, 1.442695
  %v1176 = vpow.pop %v1175
  %v1177 = vmul.f32 %v1117, 1.442695
  %v1178 = vpow.pop %v1177
  %v1179 = vmul.f32 %v1118, 1.442695
  %v1180 = vpow.pop %v1179
  %v1181 = vmul.f32 %v1119, 1.442695
  %v1182 = vpow.pop %v1181
  %v1183 = vmul.f32 %v1120, 1.442695
  %v1184 = vpow.pop %v1183
  %v1185 = vadd.f32 %v1122, %v1124
  %1186 = vadd.xlane.f32.xlu0 %v1185
  %v1187 = vpop.xlane.xlu0 %1186
  %v1188 = vadd.f32 %v1126, %v1128
  %1189 = vadd.xlane.f32.xlu0 %v1188
  %v1190 = vpop.xlane.xlu0 %1189
  %v1191 = vadd.f32 %v1130, %v1132
  %1192 = vadd.xlane.f32.xlu0 %v1191
  %v1193 = vpop.xlane.xlu0 %1192
  %v1194 = vadd.f32 %v1134, %v1136
  %1195 = vadd.xlane.f32.xlu0 %v1194
  %v1196 = vpop.xlane.xlu0 %1195
  %v1197 = vadd.f32 %v1138, %v1140
  %1198 = vadd.xlane.f32.xlu0 %v1197
  %v1199 = vpop.xlane.xlu0 %1198
  %v1200 = vadd.f32 %v1142, %v1144
  %1201 = vadd.xlane.f32.xlu0 %v1200
  %v1202 = vpop.xlane.xlu0 %1201
  %v1203 = vadd.f32 %v1146, %v1148
  %1204 = vadd.xlane.f32.xlu0 %v1203
  %v1205 = vpop.xlane.xlu0 %1204
  %v1206 = vadd.f32 %v1150, %v1152
  %1207 = vadd.xlane.f32.xlu0 %v1206
  %v1208 = vpop.xlane.xlu0 %1207
  %v1209 = vadd.f32 %v1154, %v1156
  %1210 = vadd.xlane.f32.xlu0 %v1209
  %v1211 = vpop.xlane.xlu0 %1210
  %v1212 = vadd.f32 %v1158, %v1160
  %1213 = vadd.xlane.f32.xlu0 %v1212
  %v1214 = vpop.xlane.xlu0 %1213
  %v1215 = vadd.f32 %v1162, %v1164
  %1216 = vadd.xlane.f32.xlu0 %v1215
  %v1217 = vpop.xlane.xlu0 %1216
  %v1218 = vadd.f32 %v1166, %v1168
  %1219 = vadd.xlane.f32.xlu0 %v1218
  %v1220 = vpop.xlane.xlu0 %1219
  %v1221 = vadd.f32 %v1170, %v1172
  %1222 = vadd.xlane.f32.xlu0 %v1221
  %v1223 = vpop.xlane.xlu0 %1222
  %v1224 = vadd.f32 %v1174, %v1176
  %1225 = vadd.xlane.f32.xlu0 %v1224
  %v1226 = vpop.xlane.xlu0 %1225
  %v1227 = vadd.f32 %v1178, %v1180
  %1228 = vadd.xlane.f32.xlu0 %v1227
  %v1229 = vpop.xlane.xlu0 %1228
  %v1230 = vadd.f32 %v1182, %v1184
  %1231 = vadd.xlane.f32.xlu0 %v1230
  %v1232 = vpop.xlane.xlu0 %1231
  %v1233 = vrcp.pop %v1187
  %v1234 = vrcp.pop %v1190
  %v1235 = vrcp.pop %v1193
  %v1236 = vrcp.pop %v1196
  %v1237 = vrcp.pop %v1199
  %v1238 = vrcp.pop %v1202
  %v1239 = vrcp.pop %v1205
  %v1240 = vrcp.pop %v1208
  %v1241 = vrcp.pop %v1211
  %v1242 = vrcp.pop %v1214
  %v1243 = vrcp.pop %v1217
  %v1244 = vrcp.pop %v1220
  %v1245 = vrcp.pop %v1223
  %v1246 = vrcp.pop %v1226
  %v1247 = vrcp.pop %v1229
  %v1248 = vrcp.pop %v1232
  %v1249 = vpack.c.bf16 %v1126, %v1122
  %v1250 = vpack.c.bf16 %v1128, %v1124
  %v1251 = vpack.c.bf16 %v1134, %v1130
  %v1252 = vpack.c.bf16 %v1136, %v1132
  %v1253 = vpack.c.bf16 %v1142, %v1138
  %v1254 = vpack.c.bf16 %v1144, %v1140
  %v1255 = vpack.c.bf16 %v1150, %v1146
  %v1256 = vpack.c.bf16 %v1152, %v1148
  %v1257 = vpack.c.bf16 %v1158, %v1154
  %v1258 = vpack.c.bf16 %v1160, %v1156
  %v1259 = vpack.c.bf16 %v1166, %v1162
  %v1260 = vpack.c.bf16 %v1168, %v1164
  %v1261 = vpack.c.bf16 %v1174, %v1170
  %v1262 = vpack.c.bf16 %v1176, %v1172
  %v1263 = vpack.c.bf16 %v1182, %v1178
  %v1264 = vpack.c.bf16 %v1184, %v1180
  %v1297 = vunpack.c.l.b16 %v328
  %v1298 = vunpack.c.l.b16 %v329
  %v1299 = vunpack.c.l.b16 %v330
  %v1300 = vunpack.c.l.b16 %v331
  %v1301 = vunpack.c.l.b16 %v332
  %v1302 = vunpack.c.l.b16 %v333
  %v1303 = vunpack.c.l.b16 %v334
  %v1304 = vunpack.c.l.b16 %v335
  %v1305 = vunpack.c.l.b16 %v336
  %v1306 = vunpack.c.l.b16 %v337
  %v1307 = vunpack.c.l.b16 %v338
  %v1308 = vunpack.c.l.b16 %v339
  %v1309 = vunpack.c.l.b16 %v340
  %v1310 = vunpack.c.l.b16 %v341
  %v1311 = vunpack.c.l.b16 %v342
  %v1312 = vunpack.c.l.b16 %v343
  %v1313 = vunpack.c.l.b16 %v344
  %v1314 = vunpack.c.l.b16 %v345
  %v1315 = vunpack.c.l.b16 %v346
  %v1316 = vunpack.c.l.b16 %v347
  %v1317 = vunpack.c.l.b16 %v348
  %v1318 = vunpack.c.l.b16 %v349
  %v1319 = vunpack.c.l.b16 %v350
  %v1320 = vunpack.c.l.b16 %v351
  %v1321 = vunpack.c.l.b16 %v352
  %v1322 = vunpack.c.l.b16 %v353
  %v1323 = vunpack.c.l.b16 %v354
  %v1324 = vunpack.c.l.b16 %v355
  %v1325 = vunpack.c.l.b16 %v356
  %v1326 = vunpack.c.l.b16 %v357
  %v1327 = vunpack.c.l.b16 %v358
  %v1328 = vunpack.c.l.b16 %v359
  %v1329 = vpack.c.b16 %v1298, %v1297
  %v1330 = vpack.c.b16 %v1300, %v1299
  %v1331 = vpack.c.b16 %v1302, %v1301
  %v1332 = vpack.c.b16 %v1304, %v1303
  %v1333 = vpack.c.b16 %v1306, %v1305
  %v1334 = vpack.c.b16 %v1308, %v1307
  %v1335 = vpack.c.b16 %v1310, %v1309
  %v1336 = vpack.c.b16 %v1312, %v1311
  %v1337 = vpack.c.b16 %v1314, %v1313
  %v1338 = vpack.c.b16 %v1316, %v1315
  %v1339 = vpack.c.b16 %v1318, %v1317
  %v1340 = vpack.c.b16 %v1320, %v1319
  %v1341 = vpack.c.b16 %v1322, %v1321
  %v1342 = vpack.c.b16 %v1324, %v1323
  %v1343 = vpack.c.b16 %v1326, %v1325
  %v1344 = vpack.c.b16 %v1328, %v1327
  %1361 = vmatpush.bf16.msra.mxu0 %v1336
  %1362 = vmatpush.bf16.msra.mxu0 %v1335
  %1363 = vmatpush.bf16.msra.mxu0 %v1334
  %1364 = vmatpush.bf16.msra.mxu0 %v1333
  %1365 = vmatpush.bf16.msra.mxu0 %v1332
  %1366 = vmatpush.bf16.msra.mxu0 %v1331
  %1367 = vmatpush.bf16.msra.mxu0 %v1330
  %1368 = vmatpush.bf16.msra.mxu0 %v1329
  %1369 = vmatmul.bf16.gmra.mxu0 %v1249
  %v1370 = vpop.f32.mrf.mxu0
  %v1371 = vadd.f32 0.0, %v1370
  %v1372 = vpop.f32.mrf.mxu0
  %v1373 = vadd.f32 0.0, %v1372
  %1374 = vmatmul.bf16.gmra.mxu0 %v1251
  %v1375 = vpop.f32.mrf.mxu0
  %v1376 = vadd.f32 0.0, %v1375
  %v1377 = vpop.f32.mrf.mxu0
  %v1378 = vadd.f32 0.0, %v1377
  %1379 = vmatmul.bf16.gmra.mxu0 %v1253
  %v1380 = vpop.f32.mrf.mxu0
  %v1381 = vadd.f32 0.0, %v1380
  %v1382 = vpop.f32.mrf.mxu0
  %v1383 = vadd.f32 0.0, %v1382
  %1384 = vmatmul.bf16.gmra.mxu0 %v1255
  %v1385 = vpop.f32.mrf.mxu0
  %v1386 = vadd.f32 0.0, %v1385
  %v1387 = vpop.f32.mrf.mxu0
  %v1388 = vadd.f32 0.0, %v1387
  %1389 = vmatmul.bf16.gmra.mxu0 %v1257
  %v1390 = vpop.f32.mrf.mxu0
  %v1391 = vadd.f32 0.0, %v1390
  %v1392 = vpop.f32.mrf.mxu0
  %v1393 = vadd.f32 0.0, %v1392
  %1394 = vmatmul.bf16.gmra.mxu0 %v1259
  %v1395 = vpop.f32.mrf.mxu0
  %v1396 = vadd.f32 0.0, %v1395
  %v1397 = vpop.f32.mrf.mxu0
  %v1398 = vadd.f32 0.0, %v1397
  %1399 = vmatmul.bf16.gmra.mxu0 %v1261
  %v1400 = vpop.f32.mrf.mxu0
  %v1401 = vadd.f32 0.0, %v1400
  %v1402 = vpop.f32.mrf.mxu0
  %v1403 = vadd.f32 0.0, %v1402
  %1404 = vmatmul.bf16.gmra.mxu0 %v1263
  %v1405 = vpop.f32.mrf.mxu0
  %v1406 = vadd.f32 0.0, %v1405
  %v1407 = vpop.f32.mrf.mxu0
  %v1408 = vadd.f32 0.0, %v1407
  %1409 = vdwg.mxu0
  %1410 = vmatpush.bf16.msra.mxu0 %v1344
  %1411 = vmatpush.bf16.msra.mxu0 %v1343
  %1412 = vmatpush.bf16.msra.mxu0 %v1342
  %1413 = vmatpush.bf16.msra.mxu0 %v1341
  %1414 = vmatpush.bf16.msra.mxu0 %v1340
  %1415 = vmatpush.bf16.msra.mxu0 %v1339
  %1416 = vmatpush.bf16.msra.mxu0 %v1338
  %1417 = vmatpush.bf16.msra.mxu0 %v1337
  %1418 = vmatmul.bf16.gmra.mxu0 %v1250
  %v1419 = vpop.f32.mrf.mxu0
  %v1420 = vadd.f32 %v1371, %v1419
  %v1421 = vpop.f32.mrf.mxu0
  %v1422 = vadd.f32 %v1373, %v1421
  %1423 = vmatmul.bf16.gmra.mxu0 %v1252
  %v1424 = vpop.f32.mrf.mxu0
  %v1425 = vadd.f32 %v1376, %v1424
  %v1426 = vpop.f32.mrf.mxu0
  %v1427 = vadd.f32 %v1378, %v1426
  %1428 = vmatmul.bf16.gmra.mxu0 %v1254
  %v1429 = vpop.f32.mrf.mxu0
  %v1430 = vadd.f32 %v1381, %v1429
  %v1431 = vpop.f32.mrf.mxu0
  %v1432 = vadd.f32 %v1383, %v1431
  %1433 = vmatmul.bf16.gmra.mxu0 %v1256
  %v1434 = vpop.f32.mrf.mxu0
  %v1435 = vadd.f32 %v1386, %v1434
  %v1436 = vpop.f32.mrf.mxu0
  %v1437 = vadd.f32 %v1388, %v1436
  %1438 = vmatmul.bf16.gmra.mxu0 %v1258
  %v1439 = vpop.f32.mrf.mxu0
  %v1440 = vadd.f32 %v1391, %v1439
  %v1441 = vpop.f32.mrf.mxu0
  %v1442 = vadd.f32 %v1393, %v1441
  %1443 = vmatmul.bf16.gmra.mxu0 %v1260
  %v1444 = vpop.f32.mrf.mxu0
  %v1445 = vadd.f32 %v1396, %v1444
  %v1446 = vpop.f32.mrf.mxu0
  %v1447 = vadd.f32 %v1398, %v1446
  %1448 = vmatmul.bf16.gmra.mxu0 %v1262
  %v1449 = vpop.f32.mrf.mxu0
  %v1450 = vadd.f32 %v1401, %v1449
  %v1451 = vpop.f32.mrf.mxu0
  %v1452 = vadd.f32 %v1403, %v1451
  %1453 = vmatmul.bf16.gmra.mxu0 %v1264
  %v1454 = vpop.f32.mrf.mxu0
  %v1455 = vadd.f32 %v1406, %v1454
  %v1456 = vpop.f32.mrf.mxu0
  %v1457 = vadd.f32 %v1408, %v1456
  %1458 = vdwg.mxu0
  %v1459 = vmul.f32 %v1420, %v1233
  %v1460 = vmul.f32 %v1422, %v1234
  %v1461 = vmul.f32 %v1425, %v1235
  %v1462 = vmul.f32 %v1427, %v1236
  %v1463 = vmul.f32 %v1430, %v1237
  %v1464 = vmul.f32 %v1432, %v1238
  %v1465 = vmul.f32 %v1435, %v1239
  %v1466 = vmul.f32 %v1437, %v1240
  %v1467 = vmul.f32 %v1440, %v1241
  %v1468 = vmul.f32 %v1442, %v1242
  %v1469 = vmul.f32 %v1445, %v1243
  %v1470 = vmul.f32 %v1447, %v1244
  %v1471 = vmul.f32 %v1450, %v1245
  %v1472 = vmul.f32 %v1452, %v1246
  %v1473 = vmul.f32 %v1455, %v1247
  %v1474 = vmul.f32 %v1457, %v1248
  %v1476 = vperm.slane %v830, 0
  %v1478 = vadd.f32 %v1459, %v1476
  %v1479 = vadd.f32 %v1460, %v1476
  %v1480 = vadd.f32 %v1461, %v1476
  %v1481 = vadd.f32 %v1462, %v1476
  %v1482 = vadd.f32 %v1463, %v1476
  %v1483 = vadd.f32 %v1464, %v1476
  %v1484 = vadd.f32 %v1465, %v1476
  %v1485 = vadd.f32 %v1466, %v1476
  %v1486 = vadd.f32 %v1467, %v1476
  %v1487 = vadd.f32 %v1468, %v1476
  %v1488 = vadd.f32 %v1469, %v1476
  %v1489 = vadd.f32 %v1470, %v1476
  %v1490 = vadd.f32 %v1471, %v1476
  %v1491 = vadd.f32 %v1472, %v1476
  %v1492 = vadd.f32 %v1473, %v1476
  %v1493 = vadd.f32 %v1474, %v1476
  %v1494 = vmax.f32 %v1478, 0.0
  %v1495 = vmax.f32 %v1479, 0.0
  %v1496 = vmax.f32 %v1480, 0.0
  %v1497 = vmax.f32 %v1481, 0.0
  %v1498 = vmax.f32 %v1482, 0.0
  %v1499 = vmax.f32 %v1483, 0.0
  %v1500 = vmax.f32 %v1484, 0.0
  %v1501 = vmax.f32 %v1485, 0.0
  %v1502 = vmax.f32 %v1486, 0.0
  %v1503 = vmax.f32 %v1487, 0.0
  %v1504 = vmax.f32 %v1488, 0.0
  %v1505 = vmax.f32 %v1489, 0.0
  %v1506 = vmax.f32 %v1490, 0.0
  %v1507 = vmax.f32 %v1491, 0.0
  %v1508 = vmax.f32 %v1492, 0.0
  %v1509 = vmax.f32 %v1493, 0.0
  %v1510 = vpack.c.bf16 %v1494, %v1494
  %v1511 = vpack.c.bf16 %v1495, %v1495
  %v1512 = vpack.c.bf16 %v1496, %v1496
  %v1513 = vpack.c.bf16 %v1497, %v1497
  %v1514 = vpack.c.bf16 %v1498, %v1498
  %v1515 = vpack.c.bf16 %v1499, %v1499
  %v1516 = vpack.c.bf16 %v1500, %v1500
  %v1517 = vpack.c.bf16 %v1501, %v1501
  %v1518 = vpack.c.bf16 %v1502, %v1502
  %v1519 = vpack.c.bf16 %v1503, %v1503
  %v1520 = vpack.c.bf16 %v1504, %v1504
  %v1521 = vpack.c.bf16 %v1505, %v1505
  %v1522 = vpack.c.bf16 %v1506, %v1506
  %v1523 = vpack.c.bf16 %v1507, %v1507
  %v1524 = vpack.c.bf16 %v1508, %v1508
  %v1525 = vpack.c.bf16 %v1509, %v1509
  %vm1526 = vcmask 60416
  %1527 = vst.msk [vmem:[#allocation2] sm:$0xf] %vm1526, %v1510
  %1528 = vst.msk [vmem:[#allocation2 + $0x4] sm:$0xf] %vm1526, %v1511
  %1529 = vst.msk [vmem:[#allocation2 + $0x8] sm:$0xf] %vm1526, %v1512
  %1530 = vst.msk [vmem:[#allocation2 + $0xc] sm:$0xf] %vm1526, %v1513
  %1531 = vst.msk [vmem:[#allocation2 + $0x10] sm:$0xf] %vm1526, %v1514
  %1532 = vst.msk [vmem:[#allocation2 + $0x14] sm:$0xf] %vm1526, %v1515
  %1533 = vst.msk [vmem:[#allocation2 + $0x18] sm:$0xf] %vm1526, %v1516
  %1534 = vst.msk [vmem:[#allocation2 + $0x1c] sm:$0xf] %vm1526, %v1517
  %1535 = vst.msk [vmem:[#allocation2 + $0x20] sm:$0xf] %vm1526, %v1518
  %1536 = vst.msk [vmem:[#allocation2 + $0x24] sm:$0xf] %vm1526, %v1519
  %1537 = vst.msk [vmem:[#allocation2 + $0x28] sm:$0xf] %vm1526, %v1520
  %1538 = vst.msk [vmem:[#allocation2 + $0x2c] sm:$0xf] %vm1526, %v1521
  %1539 = vst.msk [vmem:[#allocation2 + $0x30] sm:$0xf] %vm1526, %v1522
  %1540 = vst.msk [vmem:[#allocation2 + $0x34] sm:$0xf] %vm1526, %v1523
  %1541 = vst.msk [vmem:[#allocation2 + $0x38] sm:$0xf] %vm1526, %v1524
  %1542 = vst.msk [vmem:[#allocation2 + $0x3c] sm:$0xf] %vm1526, %v1525
  %1543 = vset.pattern.permute.xlu0 1
  %1544 = vperm.xlu0 %1543, %v719
  %v1545 = vpop.permute.xlu0 %1544
  %1547 = vset.pattern.permute.xlu0 1
  %1548 = vperm.xlu0 %1547, %v722
  %v1549 = vpop.permute.xlu0 %1548
  %1551 = vset.pattern.permute.xlu0 1
  %1552 = vperm.xlu0 %1551, %v725
  %v1553 = vpop.permute.xlu0 %1552
  %1555 = vset.pattern.permute.xlu0 1
  %1556 = vperm.xlu0 %1555, %v728
  %v1557 = vpop.permute.xlu0 %1556
  %1559 = vset.pattern.permute.xlu0 1
  %1560 = vperm.xlu0 %1559, %v731
  %v1561 = vpop.permute.xlu0 %1560
  %1563 = vset.pattern.permute.xlu0 1
  %1564 = vperm.xlu0 %1563, %v734
  %v1565 = vpop.permute.xlu0 %1564
  %1567 = vset.pattern.permute.xlu0 1
  %1568 = vperm.xlu0 %1567, %v737
  %v1569 = vpop.permute.xlu0 %1568
  %1571 = vset.pattern.permute.xlu0 1
  %1572 = vperm.xlu0 %1571, %v740
  %v1573 = vpop.permute.xlu0 %1572
  %1575 = vset.pattern.permute.xlu0 1
  %1576 = vperm.xlu0 %1575, %v743
  %v1577 = vpop.permute.xlu0 %1576
  %1579 = vset.pattern.permute.xlu0 1
  %1580 = vperm.xlu0 %1579, %v746
  %v1581 = vpop.permute.xlu0 %1580
  %1583 = vset.pattern.permute.xlu0 1
  %1584 = vperm.xlu0 %1583, %v749
  %v1585 = vpop.permute.xlu0 %1584
  %1587 = vset.pattern.permute.xlu0 1
  %1588 = vperm.xlu0 %1587, %v752
  %v1589 = vpop.permute.xlu0 %1588
  %1591 = vset.pattern.permute.xlu0 1
  %1592 = vperm.xlu0 %1591, %v755
  %v1593 = vpop.permute.xlu0 %1592
  %1595 = vset.pattern.permute.xlu0 1
  %1596 = vperm.xlu0 %1595, %v758
  %v1597 = vpop.permute.xlu0 %1596
  %1599 = vset.pattern.permute.xlu0 1
  %1600 = vperm.xlu0 %1599, %v761
  %v1601 = vpop.permute.xlu0 %1600
  %1603 = vset.pattern.permute.xlu0 1
  %1604 = vperm.xlu0 %1603, %v764
  %v1605 = vpop.permute.xlu0 %1604
  %v1607 = vperm.slane %v587, 1
  %v1608 = vperm.slane %v619, 1
  %v1609 = vadd.f32 %v1545, %v1607
  %v1610 = vadd.f32 %v1545, %v1608
  %v1611 = vadd.f32 %v1549, %v1607
  %v1612 = vadd.f32 %v1549, %v1608
  %v1613 = vadd.f32 %v1553, %v1607
  %v1614 = vadd.f32 %v1553, %v1608
  %v1615 = vadd.f32 %v1557, %v1607
  %v1616 = vadd.f32 %v1557, %v1608
  %v1617 = vadd.f32 %v1561, %v1607
  %v1618 = vadd.f32 %v1561, %v1608
  %v1619 = vadd.f32 %v1565, %v1607
  %v1620 = vadd.f32 %v1565, %v1608
  %v1621 = vadd.f32 %v1569, %v1607
  %v1622 = vadd.f32 %v1569, %v1608
  %v1623 = vadd.f32 %v1573, %v1607
  %v1624 = vadd.f32 %v1573, %v1608
  %v1625 = vadd.f32 %v1577, %v1607
  %v1626 = vadd.f32 %v1577, %v1608
  %v1627 = vadd.f32 %v1581, %v1607
  %v1628 = vadd.f32 %v1581, %v1608
  %v1629 = vadd.f32 %v1585, %v1607
  %v1630 = vadd.f32 %v1585, %v1608
  %v1631 = vadd.f32 %v1589, %v1607
  %v1632 = vadd.f32 %v1589, %v1608
  %v1633 = vadd.f32 %v1593, %v1607
  %v1634 = vadd.f32 %v1593, %v1608
  %v1635 = vadd.f32 %v1597, %v1607
  %v1636 = vadd.f32 %v1597, %v1608
  %v1637 = vadd.f32 %v1601, %v1607
  %v1638 = vadd.f32 %v1601, %v1608
  %v1639 = vadd.f32 %v1605, %v1607
  %v1640 = vadd.f32 %v1605, %v1608
  %v1641 = vmul.f32 %v1609, 0.2
  %v1642 = vmul.f32 %v1610, 0.2
  %v1643 = vmul.f32 %v1611, 0.2
  %v1644 = vmul.f32 %v1612, 0.2
  %v1645 = vmul.f32 %v1613, 0.2
  %v1646 = vmul.f32 %v1614, 0.2
  %v1647 = vmul.f32 %v1615, 0.2
  %v1648 = vmul.f32 %v1616, 0.2
  %v1649 = vmul.f32 %v1617, 0.2
  %v1650 = vmul.f32 %v1618, 0.2
  %v1651 = vmul.f32 %v1619, 0.2
  %v1652 = vmul.f32 %v1620, 0.2
  %v1653 = vmul.f32 %v1621, 0.2
  %v1654 = vmul.f32 %v1622, 0.2
  %v1655 = vmul.f32 %v1623, 0.2
  %v1656 = vmul.f32 %v1624, 0.2
  %v1657 = vmul.f32 %v1625, 0.2
  %v1658 = vmul.f32 %v1626, 0.2
  %v1659 = vmul.f32 %v1627, 0.2
  %v1660 = vmul.f32 %v1628, 0.2
  %v1661 = vmul.f32 %v1629, 0.2
  %v1662 = vmul.f32 %v1630, 0.2
  %v1663 = vmul.f32 %v1631, 0.2
  %v1664 = vmul.f32 %v1632, 0.2
  %v1665 = vmul.f32 %v1633, 0.2
  %v1666 = vmul.f32 %v1634, 0.2
  %v1667 = vmul.f32 %v1635, 0.2
  %v1668 = vmul.f32 %v1636, 0.2
  %v1669 = vmul.f32 %v1637, 0.2
  %v1670 = vmul.f32 %v1638, 0.2
  %v1671 = vmul.f32 %v1639, 0.2
  %v1672 = vmul.f32 %v1640, 0.2
  %v1673 = vmax.f32 %v1609, %v1641
  %v1674 = vmax.f32 %v1610, %v1642
  %v1675 = vmax.f32 %v1611, %v1643
  %v1676 = vmax.f32 %v1612, %v1644
  %v1677 = vmax.f32 %v1613, %v1645
  %v1678 = vmax.f32 %v1614, %v1646
  %v1679 = vmax.f32 %v1615, %v1647
  %v1680 = vmax.f32 %v1616, %v1648
  %v1681 = vmax.f32 %v1617, %v1649
  %v1682 = vmax.f32 %v1618, %v1650
  %v1683 = vmax.f32 %v1619, %v1651
  %v1684 = vmax.f32 %v1620, %v1652
  %v1685 = vmax.f32 %v1621, %v1653
  %v1686 = vmax.f32 %v1622, %v1654
  %v1687 = vmax.f32 %v1623, %v1655
  %v1688 = vmax.f32 %v1624, %v1656
  %v1689 = vmax.f32 %v1625, %v1657
  %v1690 = vmax.f32 %v1626, %v1658
  %v1691 = vmax.f32 %v1627, %v1659
  %v1692 = vmax.f32 %v1628, %v1660
  %v1693 = vmax.f32 %v1629, %v1661
  %v1694 = vmax.f32 %v1630, %v1662
  %v1695 = vmax.f32 %v1631, %v1663
  %v1696 = vmax.f32 %v1632, %v1664
  %v1697 = vmax.f32 %v1633, %v1665
  %v1698 = vmax.f32 %v1634, %v1666
  %v1699 = vmax.f32 %v1635, %v1667
  %v1700 = vmax.f32 %v1636, %v1668
  %v1701 = vmax.f32 %v1637, %v1669
  %v1702 = vmax.f32 %v1638, %v1670
  %v1703 = vmax.f32 %v1639, %v1671
  %v1704 = vmax.f32 %v1640, %v1672
  %v1705 = vsel %vm798, %v1673, -2e+30
  %v1706 = vsel %vm799, %v1674, -2e+30
  %v1707 = vsel %vm800, %v1675, -2e+30
  %v1708 = vsel %vm801, %v1676, -2e+30
  %v1709 = vsel %vm802, %v1677, -2e+30
  %v1710 = vsel %vm803, %v1678, -2e+30
  %v1711 = vsel %vm804, %v1679, -2e+30
  %v1712 = vsel %vm805, %v1680, -2e+30
  %v1713 = vsel %vm806, %v1681, -2e+30
  %v1714 = vsel %vm807, %v1682, -2e+30
  %v1715 = vsel %vm808, %v1683, -2e+30
  %v1716 = vsel %vm809, %v1684, -2e+30
  %v1717 = vsel %vm810, %v1685, -2e+30
  %v1718 = vsel %vm811, %v1686, -2e+30
  %v1719 = vsel %vm812, %v1687, -2e+30
  %v1720 = vsel %vm813, %v1688, -2e+30
  %v1721 = vsel %vm814, %v1689, -2e+30
  %v1722 = vsel %vm815, %v1690, -2e+30
  %v1723 = vsel %vm816, %v1691, -2e+30
  %v1724 = vsel %vm817, %v1692, -2e+30
  %v1725 = vsel %vm818, %v1693, -2e+30
  %v1726 = vsel %vm819, %v1694, -2e+30
  %v1727 = vsel %vm820, %v1695, -2e+30
  %v1728 = vsel %vm821, %v1696, -2e+30
  %v1729 = vsel %vm822, %v1697, -2e+30
  %v1730 = vsel %vm823, %v1698, -2e+30
  %v1731 = vsel %vm824, %v1699, -2e+30
  %v1732 = vsel %vm825, %v1700, -2e+30
  %v1733 = vsel %vm826, %v1701, -2e+30
  %v1734 = vsel %vm827, %v1702, -2e+30
  %v1735 = vsel %vm828, %v1703, -2e+30
  %v1736 = vsel %vm829, %v1704, -2e+30
  %v1737 = vmax.f32 %v1705, %v1706
  %1738 = vmax.xlane.f32.xlu0 %v1737
  %v1739 = vpop.xlane.xlu0 %1738
  %v1740 = vmax.f32 %v1707, %v1708
  %1741 = vmax.xlane.f32.xlu0 %v1740
  %v1742 = vpop.xlane.xlu0 %1741
  %v1743 = vmax.f32 %v1709, %v1710
  %1744 = vmax.xlane.f32.xlu0 %v1743
  %v1745 = vpop.xlane.xlu0 %1744
  %v1746 = vmax.f32 %v1711, %v1712
  %1747 = vmax.xlane.f32.xlu0 %v1746
  %v1748 = vpop.xlane.xlu0 %1747
  %v1749 = vmax.f32 %v1713, %v1714
  %1750 = vmax.xlane.f32.xlu0 %v1749
  %v1751 = vpop.xlane.xlu0 %1750
  %v1752 = vmax.f32 %v1715, %v1716
  %1753 = vmax.xlane.f32.xlu0 %v1752
  %v1754 = vpop.xlane.xlu0 %1753
  %v1755 = vmax.f32 %v1717, %v1718
  %1756 = vmax.xlane.f32.xlu0 %v1755
  %v1757 = vpop.xlane.xlu0 %1756
  %v1758 = vmax.f32 %v1719, %v1720
  %1759 = vmax.xlane.f32.xlu0 %v1758
  %v1760 = vpop.xlane.xlu0 %1759
  %v1761 = vmax.f32 %v1721, %v1722
  %1762 = vmax.xlane.f32.xlu0 %v1761
  %v1763 = vpop.xlane.xlu0 %1762
  %v1764 = vmax.f32 %v1723, %v1724
  %1765 = vmax.xlane.f32.xlu0 %v1764
  %v1766 = vpop.xlane.xlu0 %1765
  %v1767 = vmax.f32 %v1725, %v1726
  %1768 = vmax.xlane.f32.xlu0 %v1767
  %v1769 = vpop.xlane.xlu0 %1768
  %v1770 = vmax.f32 %v1727, %v1728
  %1771 = vmax.xlane.f32.xlu0 %v1770
  %v1772 = vpop.xlane.xlu0 %1771
  %v1773 = vmax.f32 %v1729, %v1730
  %1774 = vmax.xlane.f32.xlu0 %v1773
  %v1775 = vpop.xlane.xlu0 %1774
  %v1776 = vmax.f32 %v1731, %v1732
  %1777 = vmax.xlane.f32.xlu0 %v1776
  %v1778 = vpop.xlane.xlu0 %1777
  %v1779 = vmax.f32 %v1733, %v1734
  %1780 = vmax.xlane.f32.xlu0 %v1779
  %v1781 = vpop.xlane.xlu0 %1780
  %v1782 = vmax.f32 %v1735, %v1736
  %1783 = vmax.xlane.f32.xlu0 %v1782
  %v1784 = vpop.xlane.xlu0 %1783
  %v1785 = vsub.f32 %v1705, %v1739
  %v1786 = vsub.f32 %v1706, %v1739
  %v1787 = vsub.f32 %v1707, %v1742
  %v1788 = vsub.f32 %v1708, %v1742
  %v1789 = vsub.f32 %v1709, %v1745
  %v1790 = vsub.f32 %v1710, %v1745
  %v1791 = vsub.f32 %v1711, %v1748
  %v1792 = vsub.f32 %v1712, %v1748
  %v1793 = vsub.f32 %v1713, %v1751
  %v1794 = vsub.f32 %v1714, %v1751
  %v1795 = vsub.f32 %v1715, %v1754
  %v1796 = vsub.f32 %v1716, %v1754
  %v1797 = vsub.f32 %v1717, %v1757
  %v1798 = vsub.f32 %v1718, %v1757
  %v1799 = vsub.f32 %v1719, %v1760
  %v1800 = vsub.f32 %v1720, %v1760
  %v1801 = vsub.f32 %v1721, %v1763
  %v1802 = vsub.f32 %v1722, %v1763
  %v1803 = vsub.f32 %v1723, %v1766
  %v1804 = vsub.f32 %v1724, %v1766
  %v1805 = vsub.f32 %v1725, %v1769
  %v1806 = vsub.f32 %v1726, %v1769
  %v1807 = vsub.f32 %v1727, %v1772
  %v1808 = vsub.f32 %v1728, %v1772
  %v1809 = vsub.f32 %v1729, %v1775
  %v1810 = vsub.f32 %v1730, %v1775
  %v1811 = vsub.f32 %v1731, %v1778
  %v1812 = vsub.f32 %v1732, %v1778
  %v1813 = vsub.f32 %v1733, %v1781
  %v1814 = vsub.f32 %v1734, %v1781
  %v1815 = vsub.f32 %v1735, %v1784
  %v1816 = vsub.f32 %v1736, %v1784
  %v1817 = vmul.f32 %v1785, 1.442695
  %v1818 = vpow.pop %v1817
  %v1819 = vmul.f32 %v1786, 1.442695
  %v1820 = vpow.pop %v1819
  %v1821 = vmul.f32 %v1787, 1.442695
  %v1822 = vpow.pop %v1821
  %v1823 = vmul.f32 %v1788, 1.442695
  %v1824 = vpow.pop %v1823
  %v1825 = vmul.f32 %v1789, 1.442695
  %v1826 = vpow.pop %v1825
  %v1827 = vmul.f32 %v1790, 1.442695
  %v1828 = vpow.pop %v1827
  %v1829 = vmul.f32 %v1791, 1.442695
  %v1830 = vpow.pop %v1829
  %v1831 = vmul.f32 %v1792, 1.442695
  %v1832 = vpow.pop %v1831
  %v1833 = vmul.f32 %v1793, 1.442695
  %v1834 = vpow.pop %v1833
  %v1835 = vmul.f32 %v1794, 1.442695
  %v1836 = vpow.pop %v1835
  %v1837 = vmul.f32 %v1795, 1.442695
  %v1838 = vpow.pop %v1837
  %v1839 = vmul.f32 %v1796, 1.442695
  %v1840 = vpow.pop %v1839
  %v1841 = vmul.f32 %v1797, 1.442695
  %v1842 = vpow.pop %v1841
  %v1843 = vmul.f32 %v1798, 1.442695
  %v1844 = vpow.pop %v1843
  %v1845 = vmul.f32 %v1799, 1.442695
  %v1846 = vpow.pop %v1845
  %v1847 = vmul.f32 %v1800, 1.442695
  %v1848 = vpow.pop %v1847
  %v1849 = vmul.f32 %v1801, 1.442695
  %v1850 = vpow.pop %v1849
  %v1851 = vmul.f32 %v1802, 1.442695
  %v1852 = vpow.pop %v1851
  %v1853 = vmul.f32 %v1803, 1.442695
  %v1854 = vpow.pop %v1853
  %v1855 = vmul.f32 %v1804, 1.442695
  %v1856 = vpow.pop %v1855
  %v1857 = vmul.f32 %v1805, 1.442695
  %v1858 = vpow.pop %v1857
  %v1859 = vmul.f32 %v1806, 1.442695
  %v1860 = vpow.pop %v1859
  %v1861 = vmul.f32 %v1807, 1.442695
  %v1862 = vpow.pop %v1861
  %v1863 = vmul.f32 %v1808, 1.442695
  %v1864 = vpow.pop %v1863
  %v1865 = vmul.f32 %v1809, 1.442695
  %v1866 = vpow.pop %v1865
  %v1867 = vmul.f32 %v1810, 1.442695
  %v1868 = vpow.pop %v1867
  %v1869 = vmul.f32 %v1811, 1.442695
  %v1870 = vpow.pop %v1869
  %v1871 = vmul.f32 %v1812, 1.442695
  %v1872 = vpow.pop %v1871
  %v1873 = vmul.f32 %v1813, 1.442695
  %v1874 = vpow.pop %v1873
  %v1875 = vmul.f32 %v1814, 1.442695
  %v1876 = vpow.pop %v1875
  %v1877 = vmul.f32 %v1815, 1.442695
  %v1878 = vpow.pop %v1877
  %v1879 = vmul.f32 %v1816, 1.442695
  %v1880 = vpow.pop %v1879
  %v1881 = vadd.f32 %v1818, %v1820
  %1882 = vadd.xlane.f32.xlu0 %v1881
  %v1883 = vpop.xlane.xlu0 %1882
  %v1884 = vadd.f32 %v1822, %v1824
  %1885 = vadd.xlane.f32.xlu0 %v1884
  %v1886 = vpop.xlane.xlu0 %1885
  %v1887 = vadd.f32 %v1826, %v1828
  %1888 = vadd.xlane.f32.xlu0 %v1887
  %v1889 = vpop.xlane.xlu0 %1888
  %v1890 = vadd.f32 %v1830, %v1832
  %1891 = vadd.xlane.f32.xlu0 %v1890
  %v1892 = vpop.xlane.xlu0 %1891
  %v1893 = vadd.f32 %v1834, %v1836
  %1894 = vadd.xlane.f32.xlu0 %v1893
  %v1895 = vpop.xlane.xlu0 %1894
  %v1896 = vadd.f32 %v1838, %v1840
  %1897 = vadd.xlane.f32.xlu0 %v1896
  %v1898 = vpop.xlane.xlu0 %1897
  %v1899 = vadd.f32 %v1842, %v1844
  %1900 = vadd.xlane.f32.xlu0 %v1899
  %v1901 = vpop.xlane.xlu0 %1900
  %v1902 = vadd.f32 %v1846, %v1848
  %1903 = vadd.xlane.f32.xlu0 %v1902
  %v1904 = vpop.xlane.xlu0 %1903
  %v1905 = vadd.f32 %v1850, %v1852
  %1906 = vadd.xlane.f32.xlu0 %v1905
  %v1907 = vpop.xlane.xlu0 %1906
  %v1908 = vadd.f32 %v1854, %v1856
  %1909 = vadd.xlane.f32.xlu0 %v1908
  %v1910 = vpop.xlane.xlu0 %1909
  %v1911 = vadd.f32 %v1858, %v1860
  %1912 = vadd.xlane.f32.xlu0 %v1911
  %v1913 = vpop.xlane.xlu0 %1912
  %v1914 = vadd.f32 %v1862, %v1864
  %1915 = vadd.xlane.f32.xlu0 %v1914
  %v1916 = vpop.xlane.xlu0 %1915
  %v1917 = vadd.f32 %v1866, %v1868
  %1918 = vadd.xlane.f32.xlu0 %v1917
  %v1919 = vpop.xlane.xlu0 %1918
  %v1920 = vadd.f32 %v1870, %v1872
  %1921 = vadd.xlane.f32.xlu0 %v1920
  %v1922 = vpop.xlane.xlu0 %1921
  %v1923 = vadd.f32 %v1874, %v1876
  %1924 = vadd.xlane.f32.xlu0 %v1923
  %v1925 = vpop.xlane.xlu0 %1924
  %v1926 = vadd.f32 %v1878, %v1880
  %1927 = vadd.xlane.f32.xlu0 %v1926
  %v1928 = vpop.xlane.xlu0 %1927
  %v1929 = vrcp.pop %v1883
  %v1930 = vrcp.pop %v1886
  %v1931 = vrcp.pop %v1889
  %v1932 = vrcp.pop %v1892
  %v1933 = vrcp.pop %v1895
  %v1934 = vrcp.pop %v1898
  %v1935 = vrcp.pop %v1901
  %v1936 = vrcp.pop %v1904
  %v1937 = vrcp.pop %v1907
  %v1938 = vrcp.pop %v1910
  %v1939 = vrcp.pop %v1913
  %v1940 = vrcp.pop %v1916
  %v1941 = vrcp.pop %v1919
  %v1942 = vrcp.pop %v1922
  %v1943 = vrcp.pop %v1925
  %v1944 = vrcp.pop %v1928
  %v1945 = vpack.c.bf16 %v1822, %v1818
  %v1946 = vpack.c.bf16 %v1824, %v1820
  %v1947 = vpack.c.bf16 %v1830, %v1826
  %v1948 = vpack.c.bf16 %v1832, %v1828
  %v1949 = vpack.c.bf16 %v1838, %v1834
  %v1950 = vpack.c.bf16 %v1840, %v1836
  %v1951 = vpack.c.bf16 %v1846, %v1842
  %v1952 = vpack.c.bf16 %v1848, %v1844
  %v1953 = vpack.c.bf16 %v1854, %v1850
  %v1954 = vpack.c.bf16 %v1856, %v1852
  %v1955 = vpack.c.bf16 %v1862, %v1858
  %v1956 = vpack.c.bf16 %v1864, %v1860
  %v1957 = vpack.c.bf16 %v1870, %v1866
  %v1958 = vpack.c.bf16 %v1872, %v1868
  %v1959 = vpack.c.bf16 %v1878, %v1874
  %v1960 = vpack.c.bf16 %v1880, %v1876
  %1961 = vrot.lane.b32.xlu0 %v1329, 120
  %v1962 = vpop.permute.xlu0 %1961
  %1963 = vrot.lane.b32.xlu0 %v1330, 120
  %v1964 = vpop.permute.xlu0 %1963
  %1965 = vrot.lane.b32.xlu0 %v1331, 120
  %v1966 = vpop.permute.xlu0 %1965
  %1967 = vrot.lane.b32.xlu0 %v1332, 120
  %v1968 = vpop.permute.xlu0 %1967
  %1969 = vrot.lane.b32.xlu0 %v1333, 120
  %v1970 = vpop.permute.xlu0 %1969
  %1971 = vrot.lane.b32.xlu0 %v1334, 120
  %v1972 = vpop.permute.xlu0 %1971
  %1973 = vrot.lane.b32.xlu0 %v1335, 120
  %v1974 = vpop.permute.xlu0 %1973
  %1975 = vrot.lane.b32.xlu0 %v1336, 120
  %v1976 = vpop.permute.xlu0 %1975
  %1977 = vrot.lane.b32.xlu0 %v1337, 120
  %v1978 = vpop.permute.xlu0 %1977
  %1979 = vrot.lane.b32.xlu0 %v1338, 120
  %v1980 = vpop.permute.xlu0 %1979
  %1981 = vrot.lane.b32.xlu0 %v1339, 120
  %v1982 = vpop.permute.xlu0 %1981
  %1983 = vrot.lane.b32.xlu0 %v1340, 120
  %v1984 = vpop.permute.xlu0 %1983
  %1985 = vrot.lane.b32.xlu0 %v1341, 120
  %v1986 = vpop.permute.xlu0 %1985
  %1987 = vrot.lane.b32.xlu0 %v1342, 120
  %v1988 = vpop.permute.xlu0 %1987
  %1989 = vrot.lane.b32.xlu0 %v1343, 120
  %v1990 = vpop.permute.xlu0 %1989
  %1991 = vrot.lane.b32.xlu0 %v1344, 120
  %v1992 = vpop.permute.xlu0 %1991
  %2009 = vmatpush.bf16.msra.mxu0 %v1976
  %2010 = vmatpush.bf16.msra.mxu0 %v1974
  %2011 = vmatpush.bf16.msra.mxu0 %v1972
  %2012 = vmatpush.bf16.msra.mxu0 %v1970
  %2013 = vmatpush.bf16.msra.mxu0 %v1968
  %2014 = vmatpush.bf16.msra.mxu0 %v1966
  %2015 = vmatpush.bf16.msra.mxu0 %v1964
  %2016 = vmatpush.bf16.msra.mxu0 %v1962
  %2017 = vmatmul.bf16.gmra.mxu0 %v1945
  %v2018 = vpop.f32.mrf.mxu0
  %v2019 = vadd.f32 0.0, %v2018
  %v2020 = vpop.f32.mrf.mxu0
  %v2021 = vadd.f32 0.0, %v2020
  %2022 = vmatmul.bf16.gmra.mxu0 %v1947
  %v2023 = vpop.f32.mrf.mxu0
  %v2024 = vadd.f32 0.0, %v2023
  %v2025 = vpop.f32.mrf.mxu0
  %v2026 = vadd.f32 0.0, %v2025
  %2027 = vmatmul.bf16.gmra.mxu0 %v1949
  %v2028 = vpop.f32.mrf.mxu0
  %v2029 = vadd.f32 0.0, %v2028
  %v2030 = vpop.f32.mrf.mxu0
  %v2031 = vadd.f32 0.0, %v2030
  %2032 = vmatmul.bf16.gmra.mxu0 %v1951
  %v2033 = vpop.f32.mrf.mxu0
  %v2034 = vadd.f32 0.0, %v2033
  %v2035 = vpop.f32.mrf.mxu0
  %v2036 = vadd.f32 0.0, %v2035
  %2037 = vmatmul.bf16.gmra.mxu0 %v1953
  %v2038 = vpop.f32.mrf.mxu0
  %v2039 = vadd.f32 0.0, %v2038
  %v2040 = vpop.f32.mrf.mxu0
  %v2041 = vadd.f32 0.0, %v2040
  %2042 = vmatmul.bf16.gmra.mxu0 %v1955
  %v2043 = vpop.f32.mrf.mxu0
  %v2044 = vadd.f32 0.0, %v2043
  %v2045 = vpop.f32.mrf.mxu0
  %v2046 = vadd.f32 0.0, %v2045
  %2047 = vmatmul.bf16.gmra.mxu0 %v1957
  %v2048 = vpop.f32.mrf.mxu0
  %v2049 = vadd.f32 0.0, %v2048
  %v2050 = vpop.f32.mrf.mxu0
  %v2051 = vadd.f32 0.0, %v2050
  %2052 = vmatmul.bf16.gmra.mxu0 %v1959
  %v2053 = vpop.f32.mrf.mxu0
  %v2054 = vadd.f32 0.0, %v2053
  %v2055 = vpop.f32.mrf.mxu0
  %v2056 = vadd.f32 0.0, %v2055
  %2057 = vdwg.mxu0
  %2058 = vmatpush.bf16.msra.mxu0 %v1992
  %2059 = vmatpush.bf16.msra.mxu0 %v1990
  %2060 = vmatpush.bf16.msra.mxu0 %v1988
  %2061 = vmatpush.bf16.msra.mxu0 %v1986
  %2062 = vmatpush.bf16.msra.mxu0 %v1984
  %2063 = vmatpush.bf16.msra.mxu0 %v1982
  %2064 = vmatpush.bf16.msra.mxu0 %v1980
  %2065 = vmatpush.bf16.msra.mxu0 %v1978
  %2066 = vmatmul.bf16.gmra.mxu0 %v1946
  %v2067 = vpop.f32.mrf.mxu0
  %v2068 = vadd.f32 %v2019, %v2067
  %v2069 = vpop.f32.mrf.mxu0
  %v2070 = vadd.f32 %v2021, %v2069
  %2071 = vmatmul.bf16.gmra.mxu0 %v1948
  %v2072 = vpop.f32.mrf.mxu0
  %v2073 = vadd.f32 %v2024, %v2072
  %v2074 = vpop.f32.mrf.mxu0
  %v2075 = vadd.f32 %v2026, %v2074
  %2076 = vmatmul.bf16.gmra.mxu0 %v1950
  %v2077 = vpop.f32.mrf.mxu0
  %v2078 = vadd.f32 %v2029, %v2077
  %v2079 = vpop.f32.mrf.mxu0
  %v2080 = vadd.f32 %v2031, %v2079
  %2081 = vmatmul.bf16.gmra.mxu0 %v1952
  %v2082 = vpop.f32.mrf.mxu0
  %v2083 = vadd.f32 %v2034, %v2082
  %v2084 = vpop.f32.mrf.mxu0
  %v2085 = vadd.f32 %v2036, %v2084
  %2086 = vmatmul.bf16.gmra.mxu0 %v1954
  %v2087 = vpop.f32.mrf.mxu0
  %v2088 = vadd.f32 %v2039, %v2087
  %v2089 = vpop.f32.mrf.mxu0
  %v2090 = vadd.f32 %v2041, %v2089
  %2091 = vmatmul.bf16.gmra.mxu0 %v1956
  %v2092 = vpop.f32.mrf.mxu0
  %v2093 = vadd.f32 %v2044, %v2092
  %v2094 = vpop.f32.mrf.mxu0
  %v2095 = vadd.f32 %v2046, %v2094
  %2096 = vmatmul.bf16.gmra.mxu0 %v1958
  %v2097 = vpop.f32.mrf.mxu0
  %v2098 = vadd.f32 %v2049, %v2097
  %v2099 = vpop.f32.mrf.mxu0
  %v2100 = vadd.f32 %v2051, %v2099
  %2101 = vmatmul.bf16.gmra.mxu0 %v1960
  %v2102 = vpop.f32.mrf.mxu0
  %v2103 = vadd.f32 %v2054, %v2102
  %v2104 = vpop.f32.mrf.mxu0
  %v2105 = vadd.f32 %v2056, %v2104
  %2106 = vdwg.mxu0
  %v2107 = vmul.f32 %v2068, %v1929
  %v2108 = vmul.f32 %v2070, %v1930
  %v2109 = vmul.f32 %v2073, %v1931
  %v2110 = vmul.f32 %v2075, %v1932
  %v2111 = vmul.f32 %v2078, %v1933
  %v2112 = vmul.f32 %v2080, %v1934
  %v2113 = vmul.f32 %v2083, %v1935
  %v2114 = vmul.f32 %v2085, %v1936
  %v2115 = vmul.f32 %v2088, %v1937
  %v2116 = vmul.f32 %v2090, %v1938
  %v2117 = vmul.f32 %v2093, %v1939
  %v2118 = vmul.f32 %v2095, %v1940
  %v2119 = vmul.f32 %v2098, %v1941
  %v2120 = vmul.f32 %v2100, %v1942
  %v2121 = vmul.f32 %v2103, %v1943
  %v2122 = vmul.f32 %v2105, %v1944
  %2123 = vrot.lane.b32.xlu0 %v1476, 120
  %v2124 = vpop.permute.xlu0 %2123
  %v2126 = vadd.f32 %v2107, %v2124
  %v2127 = vadd.f32 %v2108, %v2124
  %v2128 = vadd.f32 %v2109, %v2124
  %v2129 = vadd.f32 %v2110, %v2124
  %v2130 = vadd.f32 %v2111, %v2124
  %v2131 = vadd.f32 %v2112, %v2124
  %v2132 = vadd.f32 %v2113, %v2124
  %v2133 = vadd.f32 %v2114, %v2124
  %v2134 = vadd.f32 %v2115, %v2124
  %v2135 = vadd.f32 %v2116, %v2124
  %v2136 = vadd.f32 %v2117, %v2124
  %v2137 = vadd.f32 %v2118, %v2124
  %v2138 = vadd.f32 %v2119, %v2124
  %v2139 = vadd.f32 %v2120, %v2124
  %v2140 = vadd.f32 %v2121, %v2124
  %v2141 = vadd.f32 %v2122, %v2124
  %v2142 = vmax.f32 %v2126, 0.0
  %v2143 = vmax.f32 %v2127, 0.0
  %v2144 = vmax.f32 %v2128, 0.0
  %v2145 = vmax.f32 %v2129, 0.0
  %v2146 = vmax.f32 %v2130, 0.0
  %v2147 = vmax.f32 %v2131, 0.0
  %v2148 = vmax.f32 %v2132, 0.0
  %v2149 = vmax.f32 %v2133, 0.0
  %v2150 = vmax.f32 %v2134, 0.0
  %v2151 = vmax.f32 %v2135, 0.0
  %v2152 = vmax.f32 %v2136, 0.0
  %v2153 = vmax.f32 %v2137, 0.0
  %v2154 = vmax.f32 %v2138, 0.0
  %v2155 = vmax.f32 %v2139, 0.0
  %v2156 = vmax.f32 %v2140, 0.0
  %v2157 = vmax.f32 %v2141, 0.0
  %v2158 = vpack.c.bf16 %v2142, %v2142
  %v2159 = vpack.c.bf16 %v2143, %v2143
  %v2160 = vpack.c.bf16 %v2144, %v2144
  %v2161 = vpack.c.bf16 %v2145, %v2145
  %v2162 = vpack.c.bf16 %v2146, %v2146
  %v2163 = vpack.c.bf16 %v2147, %v2147
  %v2164 = vpack.c.bf16 %v2148, %v2148
  %v2165 = vpack.c.bf16 %v2149, %v2149
  %v2166 = vpack.c.bf16 %v2150, %v2150
  %v2167 = vpack.c.bf16 %v2151, %v2151
  %v2168 = vpack.c.bf16 %v2152, %v2152
  %v2169 = vpack.c.bf16 %v2153, %v2153
  %v2170 = vpack.c.bf16 %v2154, %v2154
  %v2171 = vpack.c.bf16 %v2155, %v2155
  %v2172 = vpack.c.bf16 %v2156, %v2156
  %v2173 = vpack.c.bf16 %v2157, %v2157
  %2190 = vrot.lane.b32.xlu0 %v2158, 8
  %v2191 = vpop.permute.xlu0 %2190
  %2192 = vrot.lane.b32.xlu0 %v2159, 8
  %v2193 = vpop.permute.xlu0 %2192
  %2194 = vrot.lane.b32.xlu0 %v2160, 8
  %v2195 = vpop.permute.xlu0 %2194
  %2196 = vrot.lane.b32.xlu0 %v2161, 8
  %v2197 = vpop.permute.xlu0 %2196
  %2198 = vrot.lane.b32.xlu0 %v2162, 8
  %v2199 = vpop.permute.xlu0 %2198
  %2200 = vrot.lane.b32.xlu0 %v2163, 8
  %v2201 = vpop.permute.xlu0 %2200
  %2202 = vrot.lane.b32.xlu0 %v2164, 8
  %v2203 = vpop.permute.xlu0 %2202
  %2204 = vrot.lane.b32.xlu0 %v2165, 8
  %v2205 = vpop.permute.xlu0 %2204
  %2206 = vrot.lane.b32.xlu0 %v2166, 8
  %v2207 = vpop.permute.xlu0 %2206
  %2208 = vrot.lane.b32.xlu0 %v2167, 8
  %v2209 = vpop.permute.xlu0 %2208
  %2210 = vrot.lane.b32.xlu0 %v2168, 8
  %v2211 = vpop.permute.xlu0 %2210
  %2212 = vrot.lane.b32.xlu0 %v2169, 8
  %v2213 = vpop.permute.xlu0 %2212
  %2214 = vrot.lane.b32.xlu0 %v2170, 8
  %v2215 = vpop.permute.xlu0 %2214
  %2216 = vrot.lane.b32.xlu0 %v2171, 8
  %v2217 = vpop.permute.xlu0 %2216
  %2218 = vrot.lane.b32.xlu0 %v2172, 8
  %v2219 = vpop.permute.xlu0 %2218
  %2220 = vrot.lane.b32.xlu0 %v2173, 8
  %v2221 = vpop.permute.xlu0 %2220
  %vm2238 = vcmask 126016
  %2239 = vst.msk [vmem:[#allocation2] sm:$0xf] %vm2238, %v2191
  %2240 = vst.msk [vmem:[#allocation2 + $0x4] sm:$0xf] %vm2238, %v2193
  %2241 = vst.msk [vmem:[#allocation2 + $0x8] sm:$0xf] %vm2238, %v2195
  %2242 = vst.msk [vmem:[#allocation2 + $0xc] sm:$0xf] %vm2238, %v2197
  %2243 = vst.msk [vmem:[#allocation2 + $0x10] sm:$0xf] %vm2238, %v2199
  %2244 = vst.msk [vmem:[#allocation2 + $0x14] sm:$0xf] %vm2238, %v2201
  %2245 = vst.msk [vmem:[#allocation2 + $0x18] sm:$0xf] %vm2238, %v2203
  %2246 = vst.msk [vmem:[#allocation2 + $0x1c] sm:$0xf] %vm2238, %v2205
  %2247 = vst.msk [vmem:[#allocation2 + $0x20] sm:$0xf] %vm2238, %v2207
  %2248 = vst.msk [vmem:[#allocation2 + $0x24] sm:$0xf] %vm2238, %v2209
  %2249 = vst.msk [vmem:[#allocation2 + $0x28] sm:$0xf] %vm2238, %v2211
  %2250 = vst.msk [vmem:[#allocation2 + $0x2c] sm:$0xf] %vm2238, %v2213
  %2251 = vst.msk [vmem:[#allocation2 + $0x30] sm:$0xf] %vm2238, %v2215
  %2252 = vst.msk [vmem:[#allocation2 + $0x34] sm:$0xf] %vm2238, %v2217
  %2253 = vst.msk [vmem:[#allocation2 + $0x38] sm:$0xf] %vm2238, %v2219
  %2254 = vst.msk [vmem:[#allocation2 + $0x3c] sm:$0xf] %vm2238, %v2221
  %v2255 = vld [vmem:[#allocation2] sm:$0xf]
  %v2256 = vld [vmem:[#allocation2 + $0x4] sm:$0xf]
  %v2257 = vld [vmem:[#allocation2 + $0x8] sm:$0xf]
  %v2258 = vld [vmem:[#allocation2 + $0xc] sm:$0xf]
  %v2259 = vld [vmem:[#allocation2 + $0x10] sm:$0xf]
  %v2260 = vld [vmem:[#allocation2 + $0x14] sm:$0xf]
  %v2261 = vld [vmem:[#allocation2 + $0x18] sm:$0xf]
  %v2262 = vld [vmem:[#allocation2 + $0x1c] sm:$0xf]
  %v2263 = vld [vmem:[#allocation2 + $0x20] sm:$0xf]
  %v2264 = vld [vmem:[#allocation2 + $0x24] sm:$0xf]
  %v2265 = vld [vmem:[#allocation2 + $0x28] sm:$0xf]
  %v2266 = vld [vmem:[#allocation2 + $0x2c] sm:$0xf]
  %v2267 = vld [vmem:[#allocation2 + $0x30] sm:$0xf]
  %v2268 = vld [vmem:[#allocation2 + $0x34] sm:$0xf]
  %v2269 = vld [vmem:[#allocation2 + $0x38] sm:$0xf]
  %v2270 = vld [vmem:[#allocation2 + $0x3c] sm:$0xf]
  %v2271 = vld [vmem:[%s2] sm:$0xf]
  %v2272 = vld [vmem:[%s2 + $0x4] sm:$0xf]
  %v2273 = vld [vmem:[%s2 + $0x8] sm:$0xf]
  %v2274 = vld [vmem:[%s2 + $0xc] sm:$0xf]
  %v2275 = vld [vmem:[%s2 + $0x10] sm:$0xf]
  %v2276 = vld [vmem:[%s2 + $0x14] sm:$0xf]
  %v2277 = vld [vmem:[%s2 + $0x18] sm:$0xf]
  %v2278 = vld [vmem:[%s2 + $0x1c] sm:$0xf]
  %v2279 = vld [vmem:[%s8] sm:$0xf]
  %v2280 = vld [vmem:[%s8 + $0x4] sm:$0xf]
  %v2297 = vunpack.c.l.b16 %v2255
  %v2298 = vunpack.c.l.b16 %v2256
  %v2299 = vunpack.c.l.b16 %v2257
  %v2300 = vunpack.c.l.b16 %v2258
  %v2301 = vunpack.c.l.b16 %v2259
  %v2302 = vunpack.c.l.b16 %v2260
  %v2303 = vunpack.c.l.b16 %v2261
  %v2304 = vunpack.c.l.b16 %v2262
  %v2305 = vunpack.c.l.b16 %v2263
  %v2306 = vunpack.c.l.b16 %v2264
  %v2307 = vunpack.c.l.b16 %v2265
  %v2308 = vunpack.c.l.b16 %v2266
  %v2309 = vunpack.c.l.b16 %v2267
  %v2310 = vunpack.c.l.b16 %v2268
  %v2311 = vunpack.c.l.b16 %v2269
  %v2312 = vunpack.c.l.b16 %v2270
  %v2313 = vpack.c.b16 %v2298, %v2297
  %v2314 = vpack.c.b16 %v2300, %v2299
  %v2315 = vpack.c.b16 %v2302, %v2301
  %v2316 = vpack.c.b16 %v2304, %v2303
  %v2317 = vpack.c.b16 %v2306, %v2305
  %v2318 = vpack.c.b16 %v2308, %v2307
  %v2319 = vpack.c.b16 %v2310, %v2309
  %v2320 = vpack.c.b16 %v2312, %v2311
  %v2323 = vunpack.c.l.b16 %v2279
  %v2324 = vunpack.c.l.b16 %v2280
  %v2325 = vpack.c.b16 %v2324, %v2323
  %v2328 = vsel %vm190, %v2313, 0
  %v2331 = vsel %vm190, %v2314, 0
  %v2334 = vsel %vm190, %v2315, 0
  %v2337 = vsel %vm190, %v2316, 0
  %v2340 = vsel %vm190, %v2317, 0
  %v2343 = vsel %vm190, %v2318, 0
  %v2346 = vsel %vm190, %v2319, 0
  %v2349 = vsel %vm190, %v2320, 0
  %2351 = vmatpush.bf16.msra.mxu0 0
  %2352 = vmatpush.bf16.msra.mxu0 0
  %2353 = vmatpush.bf16.msra.mxu0 0
  %2354 = vmatpush.bf16.msra.mxu0 0
  %2355 = vmatpush.bf16.msra.mxu0 0
  %2356 = vmatpush.bf16.msra.mxu0 0
  %2357 = vmatpush.bf16.msra.mxu0 0
  %2358 = vmatpush.bf16.msra.mxu0 %v2325
  %2359 = vmatmul.bf16.gmra.mxu0 %v2328
  %v2360 = vpop.f32.mrf.mxu0
  %v2361 = vadd.f32 0.0, %v2360
  %v2362 = vpop.f32.mrf.mxu0
  %v2363 = vadd.f32 0.0, %v2362
  %2364 = vmatmul.bf16.gmra.mxu0 %v2331
  %v2365 = vpop.f32.mrf.mxu0
  %v2366 = vadd.f32 0.0, %v2365
  %v2367 = vpop.f32.mrf.mxu0
  %v2368 = vadd.f32 0.0, %v2367
  %2369 = vmatmul.bf16.gmra.mxu0 %v2334
  %v2370 = vpop.f32.mrf.mxu0
  %v2371 = vadd.f32 0.0, %v2370
  %v2372 = vpop.f32.mrf.mxu0
  %v2373 = vadd.f32 0.0, %v2372
  %2374 = vmatmul.bf16.gmra.mxu0 %v2337
  %v2375 = vpop.f32.mrf.mxu0
  %v2376 = vadd.f32 0.0, %v2375
  %v2377 = vpop.f32.mrf.mxu0
  %v2378 = vadd.f32 0.0, %v2377
  %2379 = vmatmul.bf16.gmra.mxu0 %v2340
  %v2380 = vpop.f32.mrf.mxu0
  %v2381 = vadd.f32 0.0, %v2380
  %v2382 = vpop.f32.mrf.mxu0
  %v2383 = vadd.f32 0.0, %v2382
  %2384 = vmatmul.bf16.gmra.mxu0 %v2343
  %v2385 = vpop.f32.mrf.mxu0
  %v2386 = vadd.f32 0.0, %v2385
  %v2387 = vpop.f32.mrf.mxu0
  %v2388 = vadd.f32 0.0, %v2387
  %2389 = vmatmul.bf16.gmra.mxu0 %v2346
  %v2390 = vpop.f32.mrf.mxu0
  %v2391 = vadd.f32 0.0, %v2390
  %v2392 = vpop.f32.mrf.mxu0
  %v2393 = vadd.f32 0.0, %v2392
  %2394 = vmatmul.bf16.gmra.mxu0 %v2349
  %v2395 = vpop.f32.mrf.mxu0
  %v2396 = vadd.f32 0.0, %v2395
  %v2397 = vpop.f32.mrf.mxu0
  %v2398 = vadd.f32 0.0, %v2397
  %2399 = vdwg.mxu0
  %v2400 = vpack.c.bf16 %v2361, %v2361
  %v2401 = vpack.c.bf16 %v2363, %v2363
  %v2402 = vpack.c.bf16 %v2366, %v2366
  %v2403 = vpack.c.bf16 %v2368, %v2368
  %v2404 = vpack.c.bf16 %v2371, %v2371
  %v2405 = vpack.c.bf16 %v2373, %v2373
  %v2406 = vpack.c.bf16 %v2376, %v2376
  %v2407 = vpack.c.bf16 %v2378, %v2378
  %v2408 = vpack.c.bf16 %v2381, %v2381
  %v2409 = vpack.c.bf16 %v2383, %v2383
  %v2410 = vpack.c.bf16 %v2386, %v2386
  %v2411 = vpack.c.bf16 %v2388, %v2388
  %v2412 = vpack.c.bf16 %v2391, %v2391
  %v2413 = vpack.c.bf16 %v2393, %v2393
  %v2414 = vpack.c.bf16 %v2396, %v2396
  %v2415 = vpack.c.bf16 %v2398, %v2398
  %v2416 = vld [vmem:[%s9] sm:$0xff]
  %v2417 = vld [vmem:[%s9 + $0x8] sm:$0xff]
  %v2419 = vsel %vm190, %v2361, 0
  %v2422 = vsel %vm190, %v2363, 0
  %v2425 = vsel %vm190, %v2366, 0
  %v2428 = vsel %vm190, %v2368, 0
  %v2431 = vsel %vm190, %v2371, 0
  %v2434 = vsel %vm190, %v2373, 0
  %v2437 = vsel %vm190, %v2376, 0
  %v2440 = vsel %vm190, %v2378, 0
  %v2443 = vsel %vm190, %v2381, 0
  %v2446 = vsel %vm190, %v2383, 0
  %v2449 = vsel %vm190, %v2386, 0
  %v2452 = vsel %vm190, %v2388, 0
  %v2455 = vsel %vm190, %v2391, 0
  %v2458 = vsel %vm190, %v2393, 0
  %v2461 = vsel %vm190, %v2396, 0
  %v2464 = vsel %vm190, %v2398, 0
  %2466 = vmatpush.msra.mxu0 0.0
  %2467 = vmatpush.msra.mxu0 0.0
  %2468 = vmatpush.msra.mxu0 0.0
  %2469 = vmatpush.msra.mxu0 0.0
  %2470 = vmatpush.msra.mxu0 0.0
  %2471 = vmatpush.msra.mxu0 0.0
  %2472 = vmatpush.msra.mxu0 0.0
  %2473 = vmatpush.msra.mxu0 0.0
  %2474 = vmatpush.msra.mxu0 0.0
  %2475 = vmatpush.msra.mxu0 0.0
  %2476 = vmatpush.msra.mxu0 0.0
  %2477 = vmatpush.msra.mxu0 0.0
  %2478 = vmatpush.msra.mxu0 0.0
  %2479 = vmatpush.msra.mxu0 0.0
  %2480 = vmatpush.msra.mxu0 %v2417
  %2481 = vmatpush.msra.mxu0 %v2416
  %2482 = vmatmul.f32.gmra.mxu0 %v2419
  %v2483 = vpop.f32.mrf.mxu0
  %v2484 = vadd.f32 0.0, %v2483
  %2485 = vmatmul.f32.gmra.mxu0 %v2422
  %v2486 = vpop.f32.mrf.mxu0
  %v2487 = vadd.f32 0.0, %v2486
  %2488 = vmatmul.f32.gmra.mxu0 %v2425
  %v2489 = vpop.f32.mrf.mxu0
  %v2490 = vadd.f32 0.0, %v2489
  %2491 = vmatmul.f32.gmra.mxu0 %v2428
  %v2492 = vpop.f32.mrf.mxu0
  %v2493 = vadd.f32 0.0, %v2492
  %2494 = vmatmul.f32.gmra.mxu0 %v2431
  %v2495 = vpop.f32.mrf.mxu0
  %v2496 = vadd.f32 0.0, %v2495
  %2497 = vmatmul.f32.gmra.mxu0 %v2434
  %v2498 = vpop.f32.mrf.mxu0
  %v2499 = vadd.f32 0.0, %v2498
  %2500 = vmatmul.f32.gmra.mxu0 %v2437
  %v2501 = vpop.f32.mrf.mxu0
  %v2502 = vadd.f32 0.0, %v2501
  %2503 = vmatmul.f32.gmra.mxu0 %v2440
  %v2504 = vpop.f32.mrf.mxu0
  %v2505 = vadd.f32 0.0, %v2504
  %2506 = vmatmul.f32.gmra.mxu0 %v2443
  %v2507 = vpop.f32.mrf.mxu0
  %v2508 = vadd.f32 0.0, %v2507
  %2509 = vmatmul.f32.gmra.mxu0 %v2446
  %v2510 = vpop.f32.mrf.mxu0
  %v2511 = vadd.f32 0.0, %v2510
  %2512 = vmatmul.f32.gmra.mxu0 %v2449
  %v2513 = vpop.f32.mrf.mxu0
  %v2514 = vadd.f32 0.0, %v2513
  %2515 = vmatmul.f32.gmra.mxu0 %v2452
  %v2516 = vpop.f32.mrf.mxu0
  %v2517 = vadd.f32 0.0, %v2516
  %2518 = vmatmul.f32.gmra.mxu0 %v2455
  %v2519 = vpop.f32.mrf.mxu0
  %v2520 = vadd.f32 0.0, %v2519
  %2521 = vmatmul.f32.gmra.mxu0 %v2458
  %v2522 = vpop.f32.mrf.mxu0
  %v2523 = vadd.f32 0.0, %v2522
  %2524 = vmatmul.f32.gmra.mxu0 %v2461
  %v2525 = vpop.f32.mrf.mxu0
  %v2526 = vadd.f32 0.0, %v2525
  %2527 = vmatmul.f32.gmra.mxu0 %v2464
  %v2528 = vpop.f32.mrf.mxu0
  %v2529 = vadd.f32 0.0, %v2528
  %2530 = vdwg.mxu0
  %2531 = vxpose.xlu0.b32.start [1/16] %v2484, 128
  %2532 = vxpose.xlu0.b32.cont [2/16] %v2487, 128
  %2533 = vxpose.xlu0.b32.cont [3/16] %v2490, 128
  %2534 = vxpose.xlu0.b32.cont [4/16] %v2493, 128
  %2535 = vxpose.xlu0.b32.cont [5/16] %v2496, 128
  %2536 = vxpose.xlu0.b32.cont [6/16] %v2499, 128
  %2537 = vxpose.xlu0.b32.cont [7/16] %v2502, 128
  %2538 = vxpose.xlu0.b32.cont [8/16] %v2505, 128
  %2539 = vxpose.xlu0.b32.cont [9/16] %v2508, 128
  %2540 = vxpose.xlu0.b32.cont [10/16] %v2511, 128
  %2541 = vxpose.xlu0.b32.cont [11/16] %v2514, 128
  %2542 = vxpose.xlu0.b32.cont [12/16] %v2517, 128
  %2543 = vxpose.xlu0.b32.cont [13/16] %v2520, 128
  %2544 = vxpose.xlu0.b32.cont [14/16] %v2523, 128
  %2545 = vxpose.xlu0.b32.cont [15/16] %v2526, 128
  %2546 = vxpose.xlu0.b32.end [16/16] %v2529, 128
  %v2547 = vpop.trf.xlu0
  %v2548 = vpop.trf.xlu0
  %v2549 = vpop.trf.xlu0
  %v2550 = vpop.trf.xlu0
  %v2551 = vpop.trf.xlu0
  %v2552 = vpop.trf.xlu0
  %v2553 = vpop.trf.xlu0
  %v2554 = vpop.trf.xlu0
  %v2555 = vpop.trf.xlu0
  %v2556 = vpop.trf.xlu0
  %v2557 = vpop.trf.xlu0
  %v2558 = vpop.trf.xlu0
  %v2559 = vpop.trf.xlu0
  %v2560 = vpop.trf.xlu0
  %v2561 = vpop.trf.xlu0
  %v2562 = vpop.trf.xlu0
  %v2563 = vld [vmem:[%s10] sm:$0xff]
  %v2564 = vld [vmem:[%s10 + $0x8] sm:$0xff]
  %2565 = vrot.lane.b32.xlu0 %v2361, 112
  %v2566 = vpop.permute.xlu0 %2565
  %2567 = vrot.lane.b32.xlu0 %v2363, 112
  %v2568 = vpop.permute.xlu0 %2567
  %2569 = vrot.lane.b32.xlu0 %v2366, 112
  %v2570 = vpop.permute.xlu0 %2569
  %2571 = vrot.lane.b32.xlu0 %v2368, 112
  %v2572 = vpop.permute.xlu0 %2571
  %2573 = vrot.lane.b32.xlu0 %v2371, 112
  %v2574 = vpop.permute.xlu0 %2573
  %2575 = vrot.lane.b32.xlu0 %v2373, 112
  %v2576 = vpop.permute.xlu0 %2575
  %2577 = vrot.lane.b32.xlu0 %v2376, 112
  %v2578 = vpop.permute.xlu0 %2577
  %2579 = vrot.lane.b32.xlu0 %v2378, 112
  %v2580 = vpop.permute.xlu0 %2579
  %v2581 = vsel %vm190, %v2566, 0
  %v2583 = vsel %vm190, %v2568, 0
  %v2585 = vsel %vm190, %v2570, 0
  %v2587 = vsel %vm190, %v2572, 0
  %v2589 = vsel %vm190, %v2574, 0
  %v2591 = vsel %vm190, %v2576, 0
  %v2593 = vsel %vm190, %v2578, 0
  %v2595 = vsel %vm190, %v2580, 0
  %2597 = vmatpush.msra.mxu0 0.0
  %2598 = vmatpush.msra.mxu0 0.0
  %2599 = vmatpush.msra.mxu0 0.0
  %2600 = vmatpush.msra.mxu0 0.0
  %2601 = vmatpush.msra.mxu0 0.0
  %2602 = vmatpush.msra.mxu0 0.0
  %2603 = vmatpush.msra.mxu0 0.0
  %2604 = vmatpush.msra.mxu0 0.0
  %2605 = vmatpush.msra.mxu0 0.0
  %2606 = vmatpush.msra.mxu0 0.0
  %2607 = vmatpush.msra.mxu0 0.0
  %2608 = vmatpush.msra.mxu0 0.0
  %2609 = vmatpush.msra.mxu0 0.0
  %2610 = vmatpush.msra.mxu0 0.0
  %2611 = vmatpush.msra.mxu0 %v2564
  %2612 = vmatpush.msra.mxu0 %v2563
  %2613 = vmatmul.f32.gmra.mxu0 %v2581
  %v2614 = vpop.f32.mrf.mxu0
  %v2615 = vadd.f32 0.0, %v2614
  %2616 = vmatmul.f32.gmra.mxu0 %v2583
  %v2617 = vpop.f32.mrf.mxu0
  %v2618 = vadd.f32 0.0, %v2617
  %2619 = vmatmul.f32.gmra.mxu0 %v2585
  %v2620 = vpop.f32.mrf.mxu0
  %v2621 = vadd.f32 0.0, %v2620
  %2622 = vmatmul.f32.gmra.mxu0 %v2587
  %v2623 = vpop.f32.mrf.mxu0
  %v2624 = vadd.f32 0.0, %v2623
  %2625 = vmatmul.f32.gmra.mxu0 %v2589
  %v2626 = vpop.f32.mrf.mxu0
  %v2627 = vadd.f32 0.0, %v2626
  %2628 = vmatmul.f32.gmra.mxu0 %v2591
  %v2629 = vpop.f32.mrf.mxu0
  %v2630 = vadd.f32 0.0, %v2629
  %2631 = vmatmul.f32.gmra.mxu0 %v2593
  %v2632 = vpop.f32.mrf.mxu0
  %v2633 = vadd.f32 0.0, %v2632
  %2634 = vmatmul.f32.gmra.mxu0 %v2595
  %v2635 = vpop.f32.mrf.mxu0
  %v2636 = vadd.f32 0.0, %v2635
  %2637 = vdwg.mxu0
  %v2638 = vunpack.c.l.bf16 %v2271
  %v2639 = vunpack.c.l.bf16 %v2272
  %v2640 = vunpack.c.l.bf16 %v2273
  %v2641 = vunpack.c.l.bf16 %v2274
  %v2642 = vunpack.c.l.bf16 %v2275
  %v2643 = vunpack.c.l.bf16 %v2276
  %v2644 = vunpack.c.l.bf16 %v2277
  %v2645 = vunpack.c.l.bf16 %v2278
  %vm2646 = vcmp.gt.f32.partialorder %v2638, 0.0
  %vm2647 = vcmp.gt.f32.partialorder %v2639, 0.0
  %vm2648 = vcmp.gt.f32.partialorder %v2640, 0.0
  %vm2649 = vcmp.gt.f32.partialorder %v2641, 0.0
  %vm2650 = vcmp.gt.f32.partialorder %v2642, 0.0
  %vm2651 = vcmp.gt.f32.partialorder %v2643, 0.0
  %vm2652 = vcmp.gt.f32.partialorder %v2644, 0.0
  %vm2653 = vcmp.gt.f32.partialorder %v2645, 0.0
  %v2654 = vld [vmem:[%s11] sm:$0x1]
  %2656 = vset.pattern.permute.xlu0 0
  %2657 = vperm.xlu0 %2656, %v2615
  %v2658 = vpop.permute.xlu0 %2657
  %2661 = vset.pattern.permute.xlu0 0
  %2662 = vperm.xlu0 %2661, %v2618
  %v2663 = vpop.permute.xlu0 %2662
  %2666 = vset.pattern.permute.xlu0 0
  %2667 = vperm.xlu0 %2666, %v2621
  %v2668 = vpop.permute.xlu0 %2667
  %2671 = vset.pattern.permute.xlu0 0
  %2672 = vperm.xlu0 %2671, %v2624
  %v2673 = vpop.permute.xlu0 %2672
  %2676 = vset.pattern.permute.xlu0 0
  %2677 = vperm.xlu0 %2676, %v2627
  %v2678 = vpop.permute.xlu0 %2677
  %2681 = vset.pattern.permute.xlu0 0
  %2682 = vperm.xlu0 %2681, %v2630
  %v2683 = vpop.permute.xlu0 %2682
  %2686 = vset.pattern.permute.xlu0 0
  %2687 = vperm.xlu0 %2686, %v2633
  %v2688 = vpop.permute.xlu0 %2687
  %2691 = vset.pattern.permute.xlu0 0
  %2692 = vperm.xlu0 %2691, %v2636
  %v2693 = vpop.permute.xlu0 %2692
  %v2695 = vperm.slane %v2547, 0
  %v2696 = vadd.f32 %v2658, %v2695
  %v2697 = vadd.f32 %v2663, %v2695
  %v2698 = vadd.f32 %v2668, %v2695
  %v2699 = vadd.f32 %v2673, %v2695
  %v2700 = vadd.f32 %v2678, %v2695
  %v2701 = vadd.f32 %v2683, %v2695
  %v2702 = vadd.f32 %v2688, %v2695
  %v2703 = vadd.f32 %v2693, %v2695
  %v2704 = vmul.f32 %v2696, 0.2
  %v2705 = vmul.f32 %v2697, 0.2
  %v2706 = vmul.f32 %v2698, 0.2
  %v2707 = vmul.f32 %v2699, 0.2
  %v2708 = vmul.f32 %v2700, 0.2
  %v2709 = vmul.f32 %v2701, 0.2
  %v2710 = vmul.f32 %v2702, 0.2
  %v2711 = vmul.f32 %v2703, 0.2
  %v2712 = vmax.f32 %v2696, %v2704
  %v2713 = vmax.f32 %v2697, %v2705
  %v2714 = vmax.f32 %v2698, %v2706
  %v2715 = vmax.f32 %v2699, %v2707
  %v2716 = vmax.f32 %v2700, %v2708
  %v2717 = vmax.f32 %v2701, %v2709
  %v2718 = vmax.f32 %v2702, %v2710
  %v2719 = vmax.f32 %v2703, %v2711
  %v2720 = vsel %vm2646, %v2712, -2e+30
  %v2721 = vsel %vm2647, %v2713, -2e+30
  %v2722 = vsel %vm2648, %v2714, -2e+30
  %v2723 = vsel %vm2649, %v2715, -2e+30
  %v2724 = vsel %vm2650, %v2716, -2e+30
  %v2725 = vsel %vm2651, %v2717, -2e+30
  %v2726 = vsel %vm2652, %v2718, -2e+30
  %v2727 = vsel %vm2653, %v2719, -2e+30
  %2728 = vmax.xlane.f32.xlu0 %v2720
  %v2729 = vpop.xlane.xlu0 %2728
  %2730 = vmax.xlane.f32.xlu0 %v2721
  %v2731 = vpop.xlane.xlu0 %2730
  %2732 = vmax.xlane.f32.xlu0 %v2722
  %v2733 = vpop.xlane.xlu0 %2732
  %2734 = vmax.xlane.f32.xlu0 %v2723
  %v2735 = vpop.xlane.xlu0 %2734
  %2736 = vmax.xlane.f32.xlu0 %v2724
  %v2737 = vpop.xlane.xlu0 %2736
  %2738 = vmax.xlane.f32.xlu0 %v2725
  %v2739 = vpop.xlane.xlu0 %2738
  %2740 = vmax.xlane.f32.xlu0 %v2726
  %v2741 = vpop.xlane.xlu0 %2740
  %2742 = vmax.xlane.f32.xlu0 %v2727
  %v2743 = vpop.xlane.xlu0 %2742
  %v2744 = vsub.f32 %v2720, %v2729
  %v2745 = vsub.f32 %v2721, %v2731
  %v2746 = vsub.f32 %v2722, %v2733
  %v2747 = vsub.f32 %v2723, %v2735
  %v2748 = vsub.f32 %v2724, %v2737
  %v2749 = vsub.f32 %v2725, %v2739
  %v2750 = vsub.f32 %v2726, %v2741
  %v2751 = vsub.f32 %v2727, %v2743
  %v2752 = vmul.f32 %v2744, 1.442695
  %v2753 = vpow.pop %v2752
  %v2754 = vmul.f32 %v2745, 1.442695
  %v2755 = vpow.pop %v2754
  %v2756 = vmul.f32 %v2746, 1.442695
  %v2757 = vpow.pop %v2756
  %v2758 = vmul.f32 %v2747, 1.442695
  %v2759 = vpow.pop %v2758
  %v2760 = vmul.f32 %v2748, 1.442695
  %v2761 = vpow.pop %v2760
  %v2762 = vmul.f32 %v2749, 1.442695
  %v2763 = vpow.pop %v2762
  %v2764 = vmul.f32 %v2750, 1.442695
  %v2765 = vpow.pop %v2764
  %v2766 = vmul.f32 %v2751, 1.442695
  %v2767 = vpow.pop %v2766
  %2768 = vadd.xlane.f32.xlu0 %v2753
  %v2769 = vpop.xlane.xlu0 %2768
  %2770 = vadd.xlane.f32.xlu0 %v2755
  %v2771 = vpop.xlane.xlu0 %2770
  %2772 = vadd.xlane.f32.xlu0 %v2757
  %v2773 = vpop.xlane.xlu0 %2772
  %2774 = vadd.xlane.f32.xlu0 %v2759
  %v2775 = vpop.xlane.xlu0 %2774
  %2776 = vadd.xlane.f32.xlu0 %v2761
  %v2777 = vpop.xlane.xlu0 %2776
  %2778 = vadd.xlane.f32.xlu0 %v2763
  %v2779 = vpop.xlane.xlu0 %2778
  %2780 = vadd.xlane.f32.xlu0 %v2765
  %v2781 = vpop.xlane.xlu0 %2780
  %2782 = vadd.xlane.f32.xlu0 %v2767
  %v2783 = vpop.xlane.xlu0 %2782
  %v2784 = vrcp.pop %v2769
  %v2785 = vrcp.pop %v2771
  %v2786 = vrcp.pop %v2773
  %v2787 = vrcp.pop %v2775
  %v2788 = vrcp.pop %v2777
  %v2789 = vrcp.pop %v2779
  %v2790 = vrcp.pop %v2781
  %v2791 = vrcp.pop %v2783
  %v2792 = vpack.c.bf16 %v2755, %v2753
  %v2793 = vpack.c.bf16 %v2759, %v2757
  %v2794 = vpack.c.bf16 %v2763, %v2761
  %v2795 = vpack.c.bf16 %v2767, %v2765
  %v2812 = vunpack.c.l.b16 %v2400
  %v2813 = vunpack.c.l.b16 %v2401
  %v2814 = vunpack.c.l.b16 %v2402
  %v2815 = vunpack.c.l.b16 %v2403
  %v2816 = vunpack.c.l.b16 %v2404
  %v2817 = vunpack.c.l.b16 %v2405
  %v2818 = vunpack.c.l.b16 %v2406
  %v2819 = vunpack.c.l.b16 %v2407
  %v2820 = vunpack.c.l.b16 %v2408
  %v2821 = vunpack.c.l.b16 %v2409
  %v2822 = vunpack.c.l.b16 %v2410
  %v2823 = vunpack.c.l.b16 %v2411
  %v2824 = vunpack.c.l.b16 %v2412
  %v2825 = vunpack.c.l.b16 %v2413
  %v2826 = vunpack.c.l.b16 %v2414
  %v2827 = vunpack.c.l.b16 %v2415
  %v2828 = vpack.c.b16 %v2813, %v2812
  %v2829 = vpack.c.b16 %v2815, %v2814
  %v2830 = vpack.c.b16 %v2817, %v2816
  %v2831 = vpack.c.b16 %v2819, %v2818
  %v2832 = vpack.c.b16 %v2821, %v2820
  %v2833 = vpack.c.b16 %v2823, %v2822
  %v2834 = vpack.c.b16 %v2825, %v2824
  %v2835 = vpack.c.b16 %v2827, %v2826
  %2844 = vmatpush.bf16.msra.mxu0 %v2835
  %2845 = vmatpush.bf16.msra.mxu0 %v2834
  %2846 = vmatpush.bf16.msra.mxu0 %v2833
  %2847 = vmatpush.bf16.msra.mxu0 %v2832
  %2848 = vmatpush.bf16.msra.mxu0 %v2831
  %2849 = vmatpush.bf16.msra.mxu0 %v2830
  %2850 = vmatpush.bf16.msra.mxu0 %v2829
  %2851 = vmatpush.bf16.msra.mxu0 %v2828
  %2852 = vmatmul.bf16.gmra.mxu0 %v2792
  %v2853 = vpop.f32.mrf.mxu0
  %v2854 = vadd.f32 0.0, %v2853
  %v2855 = vpop.f32.mrf.mxu0
  %v2856 = vadd.f32 0.0, %v2855
  %2857 = vmatmul.bf16.gmra.mxu0 %v2793
  %v2858 = vpop.f32.mrf.mxu0
  %v2859 = vadd.f32 0.0, %v2858
  %v2860 = vpop.f32.mrf.mxu0
  %v2861 = vadd.f32 0.0, %v2860
  %2862 = vmatmul.bf16.gmra.mxu0 %v2794
  %v2863 = vpop.f32.mrf.mxu0
  %v2864 = vadd.f32 0.0, %v2863
  %v2865 = vpop.f32.mrf.mxu0
  %v2866 = vadd.f32 0.0, %v2865
  %2867 = vmatmul.bf16.gmra.mxu0 %v2795
  %v2868 = vpop.f32.mrf.mxu0
  %v2869 = vadd.f32 0.0, %v2868
  %v2870 = vpop.f32.mrf.mxu0
  %v2871 = vadd.f32 0.0, %v2870
  %2872 = vdwg.mxu0
  %v2873 = vmul.f32 %v2854, %v2784
  %v2874 = vmul.f32 %v2856, %v2785
  %v2875 = vmul.f32 %v2859, %v2786
  %v2876 = vmul.f32 %v2861, %v2787
  %v2877 = vmul.f32 %v2864, %v2788
  %v2878 = vmul.f32 %v2866, %v2789
  %v2879 = vmul.f32 %v2869, %v2790
  %v2880 = vmul.f32 %v2871, %v2791
  %v2882 = vperm.slane %v2654, 0
  %v2884 = vadd.f32 %v2873, %v2882
  %v2885 = vadd.f32 %v2874, %v2882
  %v2886 = vadd.f32 %v2875, %v2882
  %v2887 = vadd.f32 %v2876, %v2882
  %v2888 = vadd.f32 %v2877, %v2882
  %v2889 = vadd.f32 %v2878, %v2882
  %v2890 = vadd.f32 %v2879, %v2882
  %v2891 = vadd.f32 %v2880, %v2882
  %v2892 = vmax.f32 %v2884, 0.0
  %v2893 = vmax.f32 %v2885, 0.0
  %v2894 = vmax.f32 %v2886, 0.0
  %v2895 = vmax.f32 %v2887, 0.0
  %v2896 = vmax.f32 %v2888, 0.0
  %v2897 = vmax.f32 %v2889, 0.0
  %v2898 = vmax.f32 %v2890, 0.0
  %v2899 = vmax.f32 %v2891, 0.0
  %v2900 = vpack.c.bf16 %v2892, %v2892
  %v2901 = vpack.c.bf16 %v2893, %v2893
  %v2902 = vpack.c.bf16 %v2894, %v2894
  %v2903 = vpack.c.bf16 %v2895, %v2895
  %v2904 = vpack.c.bf16 %v2896, %v2896
  %v2905 = vpack.c.bf16 %v2897, %v2897
  %v2906 = vpack.c.bf16 %v2898, %v2898
  %v2907 = vpack.c.bf16 %v2899, %v2899
  %2908 = vst.msk [vmem:[#allocation3] sm:$0xf] %vm1526, %v2900
  %2909 = vst.msk [vmem:[#allocation3 + $0x4] sm:$0xf] %vm1526, %v2901
  %2910 = vst.msk [vmem:[#allocation3 + $0x8] sm:$0xf] %vm1526, %v2902
  %2911 = vst.msk [vmem:[#allocation3 + $0xc] sm:$0xf] %vm1526, %v2903
  %2912 = vst.msk [vmem:[#allocation3 + $0x10] sm:$0xf] %vm1526, %v2904
  %2913 = vst.msk [vmem:[#allocation3 + $0x14] sm:$0xf] %vm1526, %v2905
  %2914 = vst.msk [vmem:[#allocation3 + $0x18] sm:$0xf] %vm1526, %v2906
  %2915 = vst.msk [vmem:[#allocation3 + $0x1c] sm:$0xf] %vm1526, %v2907
  %2916 = vset.pattern.permute.xlu0 1
  %2917 = vperm.xlu0 %2916, %v2615
  %v2918 = vpop.permute.xlu0 %2917
  %2920 = vset.pattern.permute.xlu0 1
  %2921 = vperm.xlu0 %2920, %v2618
  %v2922 = vpop.permute.xlu0 %2921
  %2924 = vset.pattern.permute.xlu0 1
  %2925 = vperm.xlu0 %2924, %v2621
  %v2926 = vpop.permute.xlu0 %2925
  %2928 = vset.pattern.permute.xlu0 1
  %2929 = vperm.xlu0 %2928, %v2624
  %v2930 = vpop.permute.xlu0 %2929
  %2932 = vset.pattern.permute.xlu0 1
  %2933 = vperm.xlu0 %2932, %v2627
  %v2934 = vpop.permute.xlu0 %2933
  %2936 = vset.pattern.permute.xlu0 1
  %2937 = vperm.xlu0 %2936, %v2630
  %v2938 = vpop.permute.xlu0 %2937
  %2940 = vset.pattern.permute.xlu0 1
  %2941 = vperm.xlu0 %2940, %v2633
  %v2942 = vpop.permute.xlu0 %2941
  %2944 = vset.pattern.permute.xlu0 1
  %2945 = vperm.xlu0 %2944, %v2636
  %v2946 = vpop.permute.xlu0 %2945
  %v2948 = vperm.slane %v2547, 1
  %v2949 = vadd.f32 %v2918, %v2948
  %v2950 = vadd.f32 %v2922, %v2948
  %v2951 = vadd.f32 %v2926, %v2948
  %v2952 = vadd.f32 %v2930, %v2948
  %v2953 = vadd.f32 %v2934, %v2948
  %v2954 = vadd.f32 %v2938, %v2948
  %v2955 = vadd.f32 %v2942, %v2948
  %v2956 = vadd.f32 %v2946, %v2948
  %v2957 = vmul.f32 %v2949, 0.2
  %v2958 = vmul.f32 %v2950, 0.2
  %v2959 = vmul.f32 %v2951, 0.2
  %v2960 = vmul.f32 %v2952, 0.2
  %v2961 = vmul.f32 %v2953, 0.2
  %v2962 = vmul.f32 %v2954, 0.2
  %v2963 = vmul.f32 %v2955, 0.2
  %v2964 = vmul.f32 %v2956, 0.2
  %v2965 = vmax.f32 %v2949, %v2957
  %v2966 = vmax.f32 %v2950, %v2958
  %v2967 = vmax.f32 %v2951, %v2959
  %v2968 = vmax.f32 %v2952, %v2960
  %v2969 = vmax.f32 %v2953, %v2961
  %v2970 = vmax.f32 %v2954, %v2962
  %v2971 = vmax.f32 %v2955, %v2963
  %v2972 = vmax.f32 %v2956, %v2964
  %v2973 = vsel %vm2646, %v2965, -2e+30
  %v2974 = vsel %vm2647, %v2966, -2e+30
  %v2975 = vsel %vm2648, %v2967, -2e+30
  %v2976 = vsel %vm2649, %v2968, -2e+30
  %v2977 = vsel %vm2650, %v2969, -2e+30
  %v2978 = vsel %vm2651, %v2970, -2e+30
  %v2979 = vsel %vm2652, %v2971, -2e+30
  %v2980 = vsel %vm2653, %v2972, -2e+30
  %2981 = vmax.xlane.f32.xlu0 %v2973
  %v2982 = vpop.xlane.xlu0 %2981
  %2983 = vmax.xlane.f32.xlu0 %v2974
  %v2984 = vpop.xlane.xlu0 %2983
  %2985 = vmax.xlane.f32.xlu0 %v2975
  %v2986 = vpop.xlane.xlu0 %2985
  %2987 = vmax.xlane.f32.xlu0 %v2976
  %v2988 = vpop.xlane.xlu0 %2987
  %2989 = vmax.xlane.f32.xlu0 %v2977
  %v2990 = vpop.xlane.xlu0 %2989
  %2991 = vmax.xlane.f32.xlu0 %v2978
  %v2992 = vpop.xlane.xlu0 %2991
  %2993 = vmax.xlane.f32.xlu0 %v2979
  %v2994 = vpop.xlane.xlu0 %2993
  %2995 = vmax.xlane.f32.xlu0 %v2980
  %v2996 = vpop.xlane.xlu0 %2995
  %v2997 = vsub.f32 %v2973, %v2982
  %v2998 = vsub.f32 %v2974, %v2984
  %v2999 = vsub.f32 %v2975, %v2986
  %v3000 = vsub.f32 %v2976, %v2988
  %v3001 = vsub.f32 %v2977, %v2990
  %v3002 = vsub.f32 %v2978, %v2992
  %v3003 = vsub.f32 %v2979, %v2994
  %v3004 = vsub.f32 %v2980, %v2996
  %v3005 = vmul.f32 %v2997, 1.442695
  %v3006 = vpow.pop %v3005
  %v3007 = vmul.f32 %v2998, 1.442695
  %v3008 = vpow.pop %v3007
  %v3009 = vmul.f32 %v2999, 1.442695
  %v3010 = vpow.pop %v3009
  %v3011 = vmul.f32 %v3000, 1.442695
  %v3012 = vpow.pop %v3011
  %v3013 = vmul.f32 %v3001, 1.442695
  %v3014 = vpow.pop %v3013
  %v3015 = vmul.f32 %v3002, 1.442695
  %v3016 = vpow.pop %v3015
  %v3017 = vmul.f32 %v3003, 1.442695
  %v3018 = vpow.pop %v3017
  %v3019 = vmul.f32 %v3004, 1.442695
  %v3020 = vpow.pop %v3019
  %3021 = vadd.xlane.f32.xlu0 %v3006
  %v3022 = vpop.xlane.xlu0 %3021
  %3023 = vadd.xlane.f32.xlu0 %v3008
  %v3024 = vpop.xlane.xlu0 %3023
  %3025 = vadd.xlane.f32.xlu0 %v3010
  %v3026 = vpop.xlane.xlu0 %3025
  %3027 = vadd.xlane.f32.xlu0 %v3012
  %v3028 = vpop.xlane.xlu0 %3027
  %3029 = vadd.xlane.f32.xlu0 %v3014
  %v3030 = vpop.xlane.xlu0 %3029
  %3031 = vadd.xlane.f32.xlu0 %v3016
  %v3032 = vpop.xlane.xlu0 %3031
  %3033 = vadd.xlane.f32.xlu0 %v3018
  %v3034 = vpop.xlane.xlu0 %3033
  %3035 = vadd.xlane.f32.xlu0 %v3020
  %v3036 = vpop.xlane.xlu0 %3035
  %v3037 = vrcp.pop %v3022
  %v3038 = vrcp.pop %v3024
  %v3039 = vrcp.pop %v3026
  %v3040 = vrcp.pop %v3028
  %v3041 = vrcp.pop %v3030
  %v3042 = vrcp.pop %v3032
  %v3043 = vrcp.pop %v3034
  %v3044 = vrcp.pop %v3036
  %v3045 = vpack.c.bf16 %v3008, %v3006
  %v3046 = vpack.c.bf16 %v3012, %v3010
  %v3047 = vpack.c.bf16 %v3016, %v3014
  %v3048 = vpack.c.bf16 %v3020, %v3018
  %3049 = vrot.lane.b32.xlu0 %v2828, 120
  %v3050 = vpop.permute.xlu0 %3049
  %3051 = vrot.lane.b32.xlu0 %v2829, 120
  %v3052 = vpop.permute.xlu0 %3051
  %3053 = vrot.lane.b32.xlu0 %v2830, 120
  %v3054 = vpop.permute.xlu0 %3053
  %3055 = vrot.lane.b32.xlu0 %v2831, 120
  %v3056 = vpop.permute.xlu0 %3055
  %3057 = vrot.lane.b32.xlu0 %v2832, 120
  %v3058 = vpop.permute.xlu0 %3057
  %3059 = vrot.lane.b32.xlu0 %v2833, 120
  %v3060 = vpop.permute.xlu0 %3059
  %3061 = vrot.lane.b32.xlu0 %v2834, 120
  %v3062 = vpop.permute.xlu0 %3061
  %3063 = vrot.lane.b32.xlu0 %v2835, 120
  %v3064 = vpop.permute.xlu0 %3063
  %3073 = vmatpush.bf16.msra.mxu0 %v3064
  %3074 = vmatpush.bf16.msra.mxu0 %v3062
  %3075 = vmatpush.bf16.msra.mxu0 %v3060
  %3076 = vmatpush.bf16.msra.mxu0 %v3058
  %3077 = vmatpush.bf16.msra.mxu0 %v3056
  %3078 = vmatpush.bf16.msra.mxu0 %v3054
  %3079 = vmatpush.bf16.msra.mxu0 %v3052
  %3080 = vmatpush.bf16.msra.mxu0 %v3050
  %3081 = vmatmul.bf16.gmra.mxu0 %v3045
  %v3082 = vpop.f32.mrf.mxu0
  %v3083 = vadd.f32 0.0, %v3082
  %v3084 = vpop.f32.mrf.mxu0
  %v3085 = vadd.f32 0.0, %v3084
  %3086 = vmatmul.bf16.gmra.mxu0 %v3046
  %v3087 = vpop.f32.mrf.mxu0
  %v3088 = vadd.f32 0.0, %v3087
  %v3089 = vpop.f32.mrf.mxu0
  %v3090 = vadd.f32 0.0, %v3089
  %3091 = vmatmul.bf16.gmra.mxu0 %v3047
  %v3092 = vpop.f32.mrf.mxu0
  %v3093 = vadd.f32 0.0, %v3092
  %v3094 = vpop.f32.mrf.mxu0
  %v3095 = vadd.f32 0.0, %v3094
  %3096 = vmatmul.bf16.gmra.mxu0 %v3048
  %v3097 = vpop.f32.mrf.mxu0
  %v3098 = vadd.f32 0.0, %v3097
  %v3099 = vpop.f32.mrf.mxu0
  %v3100 = vadd.f32 0.0, %v3099
  %3101 = vdwg.mxu0
  %v3102 = vmul.f32 %v3083, %v3037
  %v3103 = vmul.f32 %v3085, %v3038
  %v3104 = vmul.f32 %v3088, %v3039
  %v3105 = vmul.f32 %v3090, %v3040
  %v3106 = vmul.f32 %v3093, %v3041
  %v3107 = vmul.f32 %v3095, %v3042
  %v3108 = vmul.f32 %v3098, %v3043
  %v3109 = vmul.f32 %v3100, %v3044
  %3110 = vrot.lane.b32.xlu0 %v2882, 120
  %v3111 = vpop.permute.xlu0 %3110
  %v3113 = vadd.f32 %v3102, %v3111
  %v3114 = vadd.f32 %v3103, %v3111
  %v3115 = vadd.f32 %v3104, %v3111
  %v3116 = vadd.f32 %v3105, %v3111
  %v3117 = vadd.f32 %v3106, %v3111
  %v3118 = vadd.f32 %v3107, %v3111
  %v3119 = vadd.f32 %v3108, %v3111
  %v3120 = vadd.f32 %v3109, %v3111
  %v3121 = vmax.f32 %v3113, 0.0
  %v3122 = vmax.f32 %v3114, 0.0
  %v3123 = vmax.f32 %v3115, 0.0
  %v3124 = vmax.f32 %v3116, 0.0
  %v3125 = vmax.f32 %v3117, 0.0
  %v3126 = vmax.f32 %v3118, 0.0
  %v3127 = vmax.f32 %v3119, 0.0
  %v3128 = vmax.f32 %v3120, 0.0
  %v3129 = vpack.c.bf16 %v3121, %v3121
  %v3130 = vpack.c.bf16 %v3122, %v3122
  %v3131 = vpack.c.bf16 %v3123, %v3123
  %v3132 = vpack.c.bf16 %v3124, %v3124
  %v3133 = vpack.c.bf16 %v3125, %v3125
  %v3134 = vpack.c.bf16 %v3126, %v3126
  %v3135 = vpack.c.bf16 %v3127, %v3127
  %v3136 = vpack.c.bf16 %v3128, %v3128
  %3145 = vrot.lane.b32.xlu0 %v3129, 8
  %v3146 = vpop.permute.xlu0 %3145
  %3147 = vrot.lane.b32.xlu0 %v3130, 8
  %v3148 = vpop.permute.xlu0 %3147
  %3149 = vrot.lane.b32.xlu0 %v3131, 8
  %v3150 = vpop.permute.xlu0 %3149
  %3151 = vrot.lane.b32.xlu0 %v3132, 8
  %v3152 = vpop.permute.xlu0 %3151
  %3153 = vrot.lane.b32.xlu0 %v3133, 8
  %v3154 = vpop.permute.xlu0 %3153
  %3155 = vrot.lane.b32.xlu0 %v3134, 8
  %v3156 = vpop.permute.xlu0 %3155
  %3157 = vrot.lane.b32.xlu0 %v3135, 8
  %v3158 = vpop.permute.xlu0 %3157
  %3159 = vrot.lane.b32.xlu0 %v3136, 8
  %v3160 = vpop.permute.xlu0 %3159
  %3169 = vst.msk [vmem:[#allocation3] sm:$0xf] %vm2238, %v3146
  %3170 = vst.msk [vmem:[#allocation3 + $0x4] sm:$0xf] %vm2238, %v3148
  %3171 = vst.msk [vmem:[#allocation3 + $0x8] sm:$0xf] %vm2238, %v3150
  %3172 = vst.msk [vmem:[#allocation3 + $0xc] sm:$0xf] %vm2238, %v3152
  %3173 = vst.msk [vmem:[#allocation3 + $0x10] sm:$0xf] %vm2238, %v3154
  %3174 = vst.msk [vmem:[#allocation3 + $0x14] sm:$0xf] %vm2238, %v3156
  %3175 = vst.msk [vmem:[#allocation3 + $0x18] sm:$0xf] %vm2238, %v3158
  %3176 = vst.msk [vmem:[#allocation3 + $0x1c] sm:$0xf] %vm2238, %v3160
  %v3177 = vld [vmem:[#allocation3] sm:$0xf]
  %v3178 = vld [vmem:[#allocation3 + $0x4] sm:$0xf]
  %v3179 = vld [vmem:[#allocation3 + $0x8] sm:$0xf]
  %v3180 = vld [vmem:[#allocation3 + $0xc] sm:$0xf]
  %v3181 = vld [vmem:[#allocation3 + $0x10] sm:$0xf]
  %v3182 = vld [vmem:[#allocation3 + $0x14] sm:$0xf]
  %v3183 = vld [vmem:[#allocation3 + $0x18] sm:$0xf]
  %v3184 = vld [vmem:[#allocation3 + $0x1c] sm:$0xf]
  %v3185 = vld [vmem:[%s3] sm:$0xf]
  %v3186 = vld [vmem:[%s3 + $0x4] sm:$0xf]
  %v3187 = vld [vmem:[%s3 + $0x8] sm:$0xf]
  %v3188 = vld [vmem:[%s3 + $0xc] sm:$0xf]
  %v3189 = vld [vmem:[%s12] sm:$0xf]
  %v3190 = vld [vmem:[%s12 + $0x4] sm:$0xf]
  %v3199 = vunpack.c.l.b16 %v3177
  %v3200 = vunpack.c.l.b16 %v3178
  %v3201 = vunpack.c.l.b16 %v3179
  %v3202 = vunpack.c.l.b16 %v3180
  %v3203 = vunpack.c.l.b16 %v3181
  %v3204 = vunpack.c.l.b16 %v3182
  %v3205 = vunpack.c.l.b16 %v3183
  %v3206 = vunpack.c.l.b16 %v3184
  %v3207 = vpack.c.b16 %v3200, %v3199
  %v3208 = vpack.c.b16 %v3202, %v3201
  %v3209 = vpack.c.b16 %v3204, %v3203
  %v3210 = vpack.c.b16 %v3206, %v3205
  %v3213 = vunpack.c.l.b16 %v3189
  %v3214 = vunpack.c.l.b16 %v3190
  %v3215 = vpack.c.b16 %v3214, %v3213
  %v3218 = vsel %vm190, %v3207, 0
  %v3221 = vsel %vm190, %v3208, 0
  %v3224 = vsel %vm190, %v3209, 0
  %v3227 = vsel %vm190, %v3210, 0
  %3229 = vmatpush.bf16.msra.mxu0 0
  %3230 = vmatpush.bf16.msra.mxu0 0
  %3231 = vmatpush.bf16.msra.mxu0 0
  %3232 = vmatpush.bf16.msra.mxu0 0
  %3233 = vmatpush.bf16.msra.mxu0 0
  %3234 = vmatpush.bf16.msra.mxu0 0
  %3235 = vmatpush.bf16.msra.mxu0 0
  %3236 = vmatpush.bf16.msra.mxu0 %v3215
  %3237 = vmatmul.bf16.gmra.mxu0 %v3218
  %v3238 = vpop.f32.mrf.mxu0
  %v3239 = vadd.f32 0.0, %v3238
  %v3240 = vpop.f32.mrf.mxu0
  %v3241 = vadd.f32 0.0, %v3240
  %3242 = vmatmul.bf16.gmra.mxu0 %v3221
  %v3243 = vpop.f32.mrf.mxu0
  %v3244 = vadd.f32 0.0, %v3243
  %v3245 = vpop.f32.mrf.mxu0
  %v3246 = vadd.f32 0.0, %v3245
  %3247 = vmatmul.bf16.gmra.mxu0 %v3224
  %v3248 = vpop.f32.mrf.mxu0
  %v3249 = vadd.f32 0.0, %v3248
  %v3250 = vpop.f32.mrf.mxu0
  %v3251 = vadd.f32 0.0, %v3250
  %3252 = vmatmul.bf16.gmra.mxu0 %v3227
  %v3253 = vpop.f32.mrf.mxu0
  %v3254 = vadd.f32 0.0, %v3253
  %v3255 = vpop.f32.mrf.mxu0
  %v3256 = vadd.f32 0.0, %v3255
  %3257 = vdwg.mxu0
  %v3258 = vpack.c.bf16 %v3239, %v3239
  %v3259 = vpack.c.bf16 %v3241, %v3241
  %v3260 = vpack.c.bf16 %v3244, %v3244
  %v3261 = vpack.c.bf16 %v3246, %v3246
  %v3262 = vpack.c.bf16 %v3249, %v3249
  %v3263 = vpack.c.bf16 %v3251, %v3251
  %v3264 = vpack.c.bf16 %v3254, %v3254
  %v3265 = vpack.c.bf16 %v3256, %v3256
  %v3266 = vld [vmem:[%s13] sm:$0xff]
  %v3267 = vld [vmem:[%s13 + $0x8] sm:$0xff]
  %v3269 = vsel %vm190, %v3239, 0
  %v3272 = vsel %vm190, %v3241, 0
  %v3275 = vsel %vm190, %v3244, 0
  %v3278 = vsel %vm190, %v3246, 0
  %v3281 = vsel %vm190, %v3249, 0
  %v3284 = vsel %vm190, %v3251, 0
  %v3287 = vsel %vm190, %v3254, 0
  %v3290 = vsel %vm190, %v3256, 0
  %3292 = vmatpush.msra.mxu0 0.0
  %3293 = vmatpush.msra.mxu0 0.0
  %3294 = vmatpush.msra.mxu0 0.0
  %3295 = vmatpush.msra.mxu0 0.0
  %3296 = vmatpush.msra.mxu0 0.0
  %3297 = vmatpush.msra.mxu0 0.0
  %3298 = vmatpush.msra.mxu0 0.0
  %3299 = vmatpush.msra.mxu0 0.0
  %3300 = vmatpush.msra.mxu0 0.0
  %3301 = vmatpush.msra.mxu0 0.0
  %3302 = vmatpush.msra.mxu0 0.0
  %3303 = vmatpush.msra.mxu0 0.0
  %3304 = vmatpush.msra.mxu0 0.0
  %3305 = vmatpush.msra.mxu0 0.0
  %3306 = vmatpush.msra.mxu0 %v3267
  %3307 = vmatpush.msra.mxu0 %v3266
  %3308 = vmatmul.f32.gmra.mxu0 %v3269
  %v3309 = vpop.f32.mrf.mxu0
  %v3310 = vadd.f32 0.0, %v3309
  %3311 = vmatmul.f32.gmra.mxu0 %v3272
  %v3312 = vpop.f32.mrf.mxu0
  %v3313 = vadd.f32 0.0, %v3312
  %3314 = vmatmul.f32.gmra.mxu0 %v3275
  %v3315 = vpop.f32.mrf.mxu0
  %v3316 = vadd.f32 0.0, %v3315
  %3317 = vmatmul.f32.gmra.mxu0 %v3278
  %v3318 = vpop.f32.mrf.mxu0
  %v3319 = vadd.f32 0.0, %v3318
  %3320 = vmatmul.f32.gmra.mxu0 %v3281
  %v3321 = vpop.f32.mrf.mxu0
  %v3322 = vadd.f32 0.0, %v3321
  %3323 = vmatmul.f32.gmra.mxu0 %v3284
  %v3324 = vpop.f32.mrf.mxu0
  %v3325 = vadd.f32 0.0, %v3324
  %3326 = vmatmul.f32.gmra.mxu0 %v3287
  %v3327 = vpop.f32.mrf.mxu0
  %v3328 = vadd.f32 0.0, %v3327
  %3329 = vmatmul.f32.gmra.mxu0 %v3290
  %v3330 = vpop.f32.mrf.mxu0
  %v3331 = vadd.f32 0.0, %v3330
  %3332 = vdwg.mxu0
  %3333 = vxpose.xlu0.b32.start [1/16] %v3310, 128
  %3334 = vxpose.xlu0.b32.cont [2/16] %v3313, 128
  %3335 = vxpose.xlu0.b32.cont [3/16] %v3316, 128
  %3336 = vxpose.xlu0.b32.cont [4/16] %v3319, 128
  %3337 = vxpose.xlu0.b32.cont [5/16] %v3322, 128
  %3338 = vxpose.xlu0.b32.cont [6/16] %v3325, 128
  %3339 = vxpose.xlu0.b32.cont [7/16] %v3328, 128
  %3340 = vxpose.xlu0.b32.cont [8/16] %v3331, 128
  %3341 = vxpose.xlu0.b32.cont [9/16] 0.0, 128
  %3342 = vxpose.xlu0.b32.cont [10/16] 0.0, 128
  %3343 = vxpose.xlu0.b32.cont [11/16] 0.0, 128
  %3344 = vxpose.xlu0.b32.cont [12/16] 0.0, 128
  %3345 = vxpose.xlu0.b32.cont [13/16] 0.0, 128
  %3346 = vxpose.xlu0.b32.cont [14/16] 0.0, 128
  %3347 = vxpose.xlu0.b32.cont [15/16] 0.0, 128
  %3348 = vxpose.xlu0.b32.end [16/16] 0.0, 128
  %v3349 = vpop.trf.xlu0
  %v3350 = vpop.trf.xlu0
  %v3351 = vpop.trf.xlu0
  %v3352 = vpop.trf.xlu0
  %v3353 = vpop.trf.xlu0
  %v3354 = vpop.trf.xlu0
  %v3355 = vpop.trf.xlu0
  %v3356 = vpop.trf.xlu0
  %v3357 = vpop.trf.xlu0
  %v3358 = vpop.trf.xlu0
  %v3359 = vpop.trf.xlu0
  %v3360 = vpop.trf.xlu0
  %v3361 = vpop.trf.xlu0
  %v3362 = vpop.trf.xlu0
  %v3363 = vpop.trf.xlu0
  %v3364 = vpop.trf.xlu0
  %v3365 = vld [vmem:[%s14] sm:$0xff]
  %v3366 = vld [vmem:[%s14 + $0x8] sm:$0xff]
  %3367 = vrot.lane.b32.xlu0 %v3239, 112
  %v3368 = vpop.permute.xlu0 %3367
  %3369 = vrot.lane.b32.xlu0 %v3241, 112
  %v3370 = vpop.permute.xlu0 %3369
  %3371 = vrot.lane.b32.xlu0 %v3244, 112
  %v3372 = vpop.permute.xlu0 %3371
  %3373 = vrot.lane.b32.xlu0 %v3246, 112
  %v3374 = vpop.permute.xlu0 %3373
  %v3375 = vsel %vm190, %v3368, 0
  %v3377 = vsel %vm190, %v3370, 0
  %v3379 = vsel %vm190, %v3372, 0
  %v3381 = vsel %vm190, %v3374, 0
  %3383 = vmatpush.msra.mxu0 0.0
  %3384 = vmatpush.msra.mxu0 0.0
  %3385 = vmatpush.msra.mxu0 0.0
  %3386 = vmatpush.msra.mxu0 0.0
  %3387 = vmatpush.msra.mxu0 0.0
  %3388 = vmatpush.msra.mxu0 0.0
  %3389 = vmatpush.msra.mxu0 0.0
  %3390 = vmatpush.msra.mxu0 0.0
  %3391 = vmatpush.msra.mxu0 0.0
  %3392 = vmatpush.msra.mxu0 0.0
  %3393 = vmatpush.msra.mxu0 0.0
  %3394 = vmatpush.msra.mxu0 0.0
  %3395 = vmatpush.msra.mxu0 0.0
  %3396 = vmatpush.msra.mxu0 0.0
  %3397 = vmatpush.msra.mxu0 %v3366
  %3398 = vmatpush.msra.mxu0 %v3365
  %3399 = vmatmul.f32.gmra.mxu0 %v3375
  %v3400 = vpop.f32.mrf.mxu0
  %v3401 = vadd.f32 0.0, %v3400
  %3402 = vmatmul.f32.gmra.mxu0 %v3377
  %v3403 = vpop.f32.mrf.mxu0
  %v3404 = vadd.f32 0.0, %v3403
  %3405 = vmatmul.f32.gmra.mxu0 %v3379
  %v3406 = vpop.f32.mrf.mxu0
  %v3407 = vadd.f32 0.0, %v3406
  %3408 = vmatmul.f32.gmra.mxu0 %v3381
  %v3409 = vpop.f32.mrf.mxu0
  %v3410 = vadd.f32 0.0, %v3409
  %3411 = vdwg.mxu0
  %v3412 = vunpack.c.l.bf16 %v3185
  %v3413 = vunpack.c.l.bf16 %v3186
  %v3414 = vunpack.c.l.bf16 %v3187
  %v3415 = vunpack.c.l.bf16 %v3188
  %vm3416 = vcmp.gt.f32.partialorder %v3412, 0.0
  %vm3417 = vcmp.gt.f32.partialorder %v3413, 0.0
  %vm3418 = vcmp.gt.f32.partialorder %v3414, 0.0
  %vm3419 = vcmp.gt.f32.partialorder %v3415, 0.0
  %v3420 = vld [vmem:[%s15] sm:$0x1]
  %3422 = vset.pattern.permute.xlu0 0
  %3423 = vperm.xlu0 %3422, %v3401
  %v3424 = vpop.permute.xlu0 %3423
  %3427 = vset.pattern.permute.xlu0 0
  %3428 = vperm.xlu0 %3427, %v3404
  %v3429 = vpop.permute.xlu0 %3428
  %3432 = vset.pattern.permute.xlu0 0
  %3433 = vperm.xlu0 %3432, %v3407
  %v3434 = vpop.permute.xlu0 %3433
  %3437 = vset.pattern.permute.xlu0 0
  %3438 = vperm.xlu0 %3437, %v3410
  %v3439 = vpop.permute.xlu0 %3438
  %v3441 = vperm.slane %v3349, 0
  %v3442 = vadd.f32 %v3424, %v3441
  %v3443 = vadd.f32 %v3429, %v3441
  %v3444 = vadd.f32 %v3434, %v3441
  %v3445 = vadd.f32 %v3439, %v3441
  %v3446 = vmul.f32 %v3442, 0.2
  %v3447 = vmul.f32 %v3443, 0.2
  %v3448 = vmul.f32 %v3444, 0.2
  %v3449 = vmul.f32 %v3445, 0.2
  %v3450 = vmax.f32 %v3442, %v3446
  %v3451 = vmax.f32 %v3443, %v3447
  %v3452 = vmax.f32 %v3444, %v3448
  %v3453 = vmax.f32 %v3445, %v3449
  %v3454 = vsel %vm3416, %v3450, -2e+30
  %v3455 = vsel %vm3417, %v3451, -2e+30
  %v3456 = vsel %vm3418, %v3452, -2e+30
  %v3457 = vsel %vm3419, %v3453, -2e+30
  %vm3458 = vcmask 523264
  %v3459 = vsel %vm3458, %v3454, -inf
  %3460 = vmax.xlane.f32.xlu0 %v3459
  %v3461 = vpop.xlane.xlu0 %3460
  %v3462 = vsel %vm3458, %v3455, -inf
  %3463 = vmax.xlane.f32.xlu0 %v3462
  %v3464 = vpop.xlane.xlu0 %3463
  %v3465 = vsel %vm3458, %v3456, -inf
  %3466 = vmax.xlane.f32.xlu0 %v3465
  %v3467 = vpop.xlane.xlu0 %3466
  %v3468 = vsel %vm3458, %v3457, -inf
  %3469 = vmax.xlane.f32.xlu0 %v3468
  %v3470 = vpop.xlane.xlu0 %3469
  %v3471 = vsub.f32 %v3454, %v3461
  %v3472 = vsub.f32 %v3455, %v3464
  %v3473 = vsub.f32 %v3456, %v3467
  %v3474 = vsub.f32 %v3457, %v3470
  %v3475 = vmul.f32 %v3471, 1.442695
  %v3476 = vpow.pop %v3475
  %v3477 = vmul.f32 %v3472, 1.442695
  %v3478 = vpow.pop %v3477
  %v3479 = vmul.f32 %v3473, 1.442695
  %v3480 = vpow.pop %v3479
  %v3481 = vmul.f32 %v3474, 1.442695
  %v3482 = vpow.pop %v3481
  %v3483 = vsel %vm3458, %v3476, 0.0
  %3484 = vadd.xlane.f32.xlu0 %v3483
  %v3485 = vpop.xlane.xlu0 %3484
  %v3486 = vsel %vm3458, %v3478, 0.0
  %3487 = vadd.xlane.f32.xlu0 %v3486
  %v3488 = vpop.xlane.xlu0 %3487
  %v3489 = vsel %vm3458, %v3480, 0.0
  %3490 = vadd.xlane.f32.xlu0 %v3489
  %v3491 = vpop.xlane.xlu0 %3490
  %v3492 = vsel %vm3458, %v3482, 0.0
  %3493 = vadd.xlane.f32.xlu0 %v3492
  %v3494 = vpop.xlane.xlu0 %3493
  %v3495 = vrcp.pop %v3485
  %v3496 = vrcp.pop %v3488
  %v3497 = vrcp.pop %v3491
  %v3498 = vrcp.pop %v3494
  %v3499 = vpack.c.bf16 %v3478, %v3476
  %v3500 = vpack.c.bf16 %v3482, %v3480
  %v3509 = vunpack.c.l.b16 %v3258
  %v3510 = vunpack.c.l.b16 %v3259
  %v3511 = vunpack.c.l.b16 %v3260
  %v3512 = vunpack.c.l.b16 %v3261
  %v3513 = vunpack.c.l.b16 %v3262
  %v3514 = vunpack.c.l.b16 %v3263
  %v3515 = vunpack.c.l.b16 %v3264
  %v3516 = vunpack.c.l.b16 %v3265
  %v3517 = vpack.c.b16 %v3510, %v3509
  %v3518 = vpack.c.b16 %v3512, %v3511
  %v3519 = vpack.c.b16 %v3514, %v3513
  %v3520 = vpack.c.b16 %v3516, %v3515
  %v3526 = vsel %vm3458, %v3499, 0
  %v3529 = vsel %vm3458, %v3500, 0
  %3531 = vmatpush.bf16.msra.mxu0 0
  %3532 = vmatpush.bf16.msra.mxu0 0
  %3533 = vmatpush.bf16.msra.mxu0 0
  %3534 = vmatpush.bf16.msra.mxu0 0
  %3535 = vmatpush.bf16.msra.mxu0 %v3520
  %3536 = vmatpush.bf16.msra.mxu0 %v3519
  %3537 = vmatpush.bf16.msra.mxu0 %v3518
  %3538 = vmatpush.bf16.msra.mxu0 %v3517
  %3539 = vmatmul.bf16.gmra.mxu0 %v3526
  %v3540 = vpop.f32.mrf.mxu0
  %v3541 = vadd.f32 0.0, %v3540
  %v3542 = vpop.f32.mrf.mxu0
  %v3543 = vadd.f32 0.0, %v3542
  %3544 = vmatmul.bf16.gmra.mxu0 %v3529
  %v3545 = vpop.f32.mrf.mxu0
  %v3546 = vadd.f32 0.0, %v3545
  %v3547 = vpop.f32.mrf.mxu0
  %v3548 = vadd.f32 0.0, %v3547
  %3549 = vdwg.mxu0
  %v3550 = vmul.f32 %v3541, %v3495
  %v3551 = vmul.f32 %v3543, %v3496
  %v3552 = vmul.f32 %v3546, %v3497
  %v3553 = vmul.f32 %v3548, %v3498
  %v3555 = vperm.slane %v3420, 0
  %v3557 = vadd.f32 %v3550, %v3555
  %v3558 = vadd.f32 %v3551, %v3555
  %v3559 = vadd.f32 %v3552, %v3555
  %v3560 = vadd.f32 %v3553, %v3555
  %3561 = vset.pattern.permute.xlu0 1
  %3562 = vperm.xlu0 %3561, %v3401
  %v3563 = vpop.permute.xlu0 %3562
  %3565 = vset.pattern.permute.xlu0 1
  %3566 = vperm.xlu0 %3565, %v3404
  %v3567 = vpop.permute.xlu0 %3566
  %3569 = vset.pattern.permute.xlu0 1
  %3570 = vperm.xlu0 %3569, %v3407
  %v3571 = vpop.permute.xlu0 %3570
  %3573 = vset.pattern.permute.xlu0 1
  %3574 = vperm.xlu0 %3573, %v3410
  %v3575 = vpop.permute.xlu0 %3574
  %v3577 = vperm.slane %v3349, 1
  %v3578 = vadd.f32 %v3563, %v3577
  %v3579 = vadd.f32 %v3567, %v3577
  %v3580 = vadd.f32 %v3571, %v3577
  %v3581 = vadd.f32 %v3575, %v3577
  %v3582 = vmul.f32 %v3578, 0.2
  %v3583 = vmul.f32 %v3579, 0.2
  %v3584 = vmul.f32 %v3580, 0.2
  %v3585 = vmul.f32 %v3581, 0.2
  %v3586 = vmax.f32 %v3578, %v3582
  %v3587 = vmax.f32 %v3579, %v3583
  %v3588 = vmax.f32 %v3580, %v3584
  %v3589 = vmax.f32 %v3581, %v3585
  %v3590 = vsel %vm3416, %v3586, -2e+30
  %v3591 = vsel %vm3417, %v3587, -2e+30
  %v3592 = vsel %vm3418, %v3588, -2e+30
  %v3593 = vsel %vm3419, %v3589, -2e+30
  %v3594 = vsel %vm3458, %v3590, -inf
  %3595 = vmax.xlane.f32.xlu0 %v3594
  %v3596 = vpop.xlane.xlu0 %3595
  %v3597 = vsel %vm3458, %v3591, -inf
  %3598 = vmax.xlane.f32.xlu0 %v3597
  %v3599 = vpop.xlane.xlu0 %3598
  %v3600 = vsel %vm3458, %v3592, -inf
  %3601 = vmax.xlane.f32.xlu0 %v3600
  %v3602 = vpop.xlane.xlu0 %3601
  %v3603 = vsel %vm3458, %v3593, -inf
  %3604 = vmax.xlane.f32.xlu0 %v3603
  %v3605 = vpop.xlane.xlu0 %3604
  %v3606 = vsub.f32 %v3590, %v3596
  %v3607 = vsub.f32 %v3591, %v3599
  %v3608 = vsub.f32 %v3592, %v3602
  %v3609 = vsub.f32 %v3593, %v3605
  %v3610 = vmul.f32 %v3606, 1.442695
  %v3611 = vpow.pop %v3610
  %v3612 = vmul.f32 %v3607, 1.442695
  %v3613 = vpow.pop %v3612
  %v3614 = vmul.f32 %v3608, 1.442695
  %v3615 = vpow.pop %v3614
  %v3616 = vmul.f32 %v3609, 1.442695
  %v3617 = vpow.pop %v3616
  %v3618 = vsel %vm3458, %v3611, 0.0
  %3619 = vadd.xlane.f32.xlu0 %v3618
  %v3620 = vpop.xlane.xlu0 %3619
  %v3621 = vsel %vm3458, %v3613, 0.0
  %3622 = vadd.xlane.f32.xlu0 %v3621
  %v3623 = vpop.xlane.xlu0 %3622
  %v3624 = vsel %vm3458, %v3615, 0.0
  %3625 = vadd.xlane.f32.xlu0 %v3624
  %v3626 = vpop.xlane.xlu0 %3625
  %v3627 = vsel %vm3458, %v3617, 0.0
  %3628 = vadd.xlane.f32.xlu0 %v3627
  %v3629 = vpop.xlane.xlu0 %3628
  %v3630 = vrcp.pop %v3620
  %v3631 = vrcp.pop %v3623
  %v3632 = vrcp.pop %v3626
  %v3633 = vrcp.pop %v3629
  %v3634 = vpack.c.bf16 %v3613, %v3611
  %v3635 = vpack.c.bf16 %v3617, %v3615
  %3636 = vrot.lane.b32.xlu0 %v3517, 120
  %v3637 = vpop.permute.xlu0 %3636
  %3638 = vrot.lane.b32.xlu0 %v3518, 120
  %v3639 = vpop.permute.xlu0 %3638
  %3640 = vrot.lane.b32.xlu0 %v3519, 120
  %v3641 = vpop.permute.xlu0 %3640
  %3642 = vrot.lane.b32.xlu0 %v3520, 120
  %v3643 = vpop.permute.xlu0 %3642
  %v3649 = vsel %vm3458, %v3634, 0
  %v3652 = vsel %vm3458, %v3635, 0
  %3654 = vmatpush.bf16.msra.mxu0 0
  %3655 = vmatpush.bf16.msra.mxu0 0
  %3656 = vmatpush.bf16.msra.mxu0 0
  %3657 = vmatpush.bf16.msra.mxu0 0
  %3658 = vmatpush.bf16.msra.mxu0 %v3643
  %3659 = vmatpush.bf16.msra.mxu0 %v3641
  %3660 = vmatpush.bf16.msra.mxu0 %v3639
  %3661 = vmatpush.bf16.msra.mxu0 %v3637
  %3662 = vmatmul.bf16.gmra.mxu0 %v3649
  %v3663 = vpop.f32.mrf.mxu0
  %v3664 = vadd.f32 0.0, %v3663
  %v3665 = vpop.f32.mrf.mxu0
  %v3666 = vadd.f32 0.0, %v3665
  %3667 = vmatmul.bf16.gmra.mxu0 %v3652
  %v3668 = vpop.f32.mrf.mxu0
  %v3669 = vadd.f32 0.0, %v3668
  %v3670 = vpop.f32.mrf.mxu0
  %v3671 = vadd.f32 0.0, %v3670
  %3672 = vdwg.mxu0
  %v3673 = vmul.f32 %v3664, %v3630
  %v3674 = vmul.f32 %v3666, %v3631
  %v3675 = vmul.f32 %v3669, %v3632
  %v3676 = vmul.f32 %v3671, %v3633
  %3677 = vrot.lane.b32.xlu0 %v3555, 120
  %v3678 = vpop.permute.xlu0 %3677
  %v3680 = vadd.f32 %v3673, %v3678
  %v3681 = vadd.f32 %v3674, %v3678
  %v3682 = vadd.f32 %v3675, %v3678
  %v3683 = vadd.f32 %v3676, %v3678
  %v3684 = vadd.f32 %v3557, %v3680
  %v3685 = vadd.f32 %v3558, %v3681
  %v3686 = vadd.f32 %v3559, %v3682
  %v3687 = vadd.f32 %v3560, %v3683
  %v3688 = vmul.f32 %v3684, 0.5
  %v3689 = vmul.f32 %v3685, 0.5
  %v3690 = vmul.f32 %v3686, 0.5
  %v3691 = vmul.f32 %v3687, 0.5
  %vm3692 = vcmask 64512
  %3693 = vst.msk [vmem:[%s16] sm:$0xff] %vm3692, %v3688
  %3694 = vst.msk [vmem:[%s16 + $0x8] sm:$0xff] %vm3692, %v3689
  %3695 = vst.msk [vmem:[%s16 + $0x10] sm:$0xff] %vm3692, %v3690
  %3696 = vst.msk [vmem:[%s16 + $0x18] sm:$0xff] %vm3692, %v3691
  // Predicated region
  $region66: #{tpu_custom_call.1} parent=0 // pred_check
    _
  $region67: #{tpu_custom_call.1} parent=0 // pred_check_branch
    %3698 = sbr.rel (0) target = $region69
  $region68: #{tpu_custom_call.1} parent=0 // pred_region
    _
  $region69: #{tpu_custom_call.1} parent=0 // pred_fallthru
    _
  // Predicated region
  $region70: #{tpu_custom_call.1} parent=0 // pred_check
    _
  $region71: #{tpu_custom_call.1} parent=0 // pred_check_branch
    %3700 = sbr.rel (0) target = $region73
  $region72: #{tpu_custom_call.1} parent=0 // pred_region
    _
  $region73: #{tpu_custom_call.1} parent=0 // pred_fallthru
    _

</llo_original>
